<compile_context>
chip_gen: v7x
topology: tpu7x:2x2x1
jax: 0.10.0
libtpu: 0.0.40
codegen_flags: <defaults>
</compile_context>

<pallas_src>
import jax
import jax.numpy as jnp
from jax import lax
from jax.experimental import pallas as pl
from jax.experimental.pallas import tpu as pltpu


CO_PAD = 128     # lane-dense output-channel padding
KD_ALIGN = 16    # bf16 sublane alignment for the reduction dim (NOT 128)
VMEM_LIMIT = 32 * 1024 * 1024   # safe on v5e/v6e (128 MiB) and v7x (64 MiB)


def _cdiv(a, b):
    return (a + b - 1) // b


def _round_up(x, m):
    return _cdiv(x, m) * m


def _pick_tile(m, row_bytes, *, tm_cap=4096, block_bytes=4 << 20, min_steps=2):
    """Pick a 16-aligned row-tile TM and padded extent Mp = TM * num_steps.

    - 16-aligned rows: bf16 packs 2 rows/sublane, avoids masked relayouts.
    - >= min_steps grid steps so the 'parallel' axis shards across both v7x
      TensorCores even for tiny batches.
    - block kept under `block_bytes` so double-buffered tiles fit comfortably
      inside the scoped VMEM limit on every generation.
    """
    cap = min(tm_cap, max(16, (block_bytes // max(row_bytes, 1)) // 16 * 16))
    steps = max(min_steps, _cdiv(m, cap))
    tm = _round_up(_cdiv(m, steps), 16)
    return tm, tm * steps


# ----------------------------- Pallas kernels ------------------------------

def conv_relu_pool_kernel(xcol_ref, w_ref, b_ref, o_ref):
    # xcol_ref: (4, TM, Kd) bf16  -- axis 0 = 2x2 pool-window position
    # w_ref:    (Kd, 128)   bf16
    # b_ref:    (1, 128)    f32
    # o_ref:    (TM, 128)   bf16  -- rows ordered (n, ho, wo)
    w = w_ref[...]
    # 4 sequential matmuls with a running max: only one (TM, 128) f32 live
    # intermediate instead of a (4*TM, 128) one.
    m = jnp.dot(xcol_ref[0], w, preferred_element_type=jnp.float32)
    for p in range(1, xcol_ref.shape[0]):
        m = jnp.maximum(m, jnp.dot(xcol_ref[p], w,
                                   preferred_element_type=jnp.float32))
    o_ref[...] = jnp.maximum(m + b_ref[...], 0.0).astype(o_ref.dtype)


def linear_kernel(x_ref, w_ref, b_ref, o_ref):
    # x_ref: (TN, F) bf16, w_ref: (F, 128) bf16, b_ref: (1, 128) f32
    o_ref[...] = (jnp.dot(x_ref[...], w_ref[...],
                          preferred_element_type=jnp.float32)
                  + b_ref[...]).astype(o_ref.dtype)


# ------------------------------ Wrappers ------------------------------------

def conv_relu_pool(xcol, w_flat, b_row, co_true):
    """xcol: (4, M, Kd) bf16, w_flat: (Kd, 128) bf16, b_row: (1, 128) f32."""
    P, M, Kd = xcol.shape
    TM, Mp = _pick_tile(M, P * Kd * xcol.dtype.itemsize)
    if Mp != M:
        xcol = jnp.pad(xcol, ((0, 0), (0, Mp - M), (0, 0)))

    # Cost estimate from true (unpadded) work.
    flops = 2 * P * M * Kd * co_true
    bytes_accessed = (P * M * Kd * 2) + (Kd * co_true * 2) + (co_true * 4) \
        + (M * co_true * 2)

    out = pl.pallas_call(
        conv_relu_pool_kernel,
        out_shape=jax.ShapeDtypeStruct((Mp, CO_PAD), jnp.bfloat16),
        grid=(Mp // TM,),
        in_specs=[
            pl.BlockSpec((P, TM, Kd), lambda m: (0, m, 0)),
            pl.BlockSpec((Kd, CO_PAD), lambda m: (0, 0)),
            pl.BlockSpec((1, CO_PAD), lambda m: (0, 0)),
        ],
        out_specs=pl.BlockSpec((TM, CO_PAD), lambda m: (m, 0)),
        compiler_params=pltpu.CompilerParams(
            dimension_semantics=("parallel",),
            vmem_limit_bytes=VMEM_LIMIT),
        cost_estimate=pl.CostEstimate(flops=flops, transcendentals=0,
                                      bytes_accessed=bytes_accessed),
    )(xcol, w_flat, b_row)
    return out[:M, :co_true]


def linear(x, w_t, b_row, o_true):
    """x: (N, F) bf16, w_t: (F, 128) bf16, b_row: (1, 128) f32."""
    N, F = x.shape
    O = w_t.shape[1]
    TN, Np = _pick_tile(N, F * x.dtype.itemsize)
    if Np != N:
        x = jnp.pad(x, ((0, Np - N), (0, 0)))

    out = pl.pallas_call(
        linear_kernel,
        out_shape=jax.ShapeDtypeStruct((Np, O), jnp.float32),
        grid=(Np // TN,),
        in_specs=[
            pl.BlockSpec((TN, F), lambda i: (i, 0)),
            pl.BlockSpec((F, O), lambda i: (0, 0)),
            pl.BlockSpec((1, O), lambda i: (0, 0)),
        ],
        out_specs=pl.BlockSpec((TN, O), lambda i: (i, 0)),
        compiler_params=pltpu.CompilerParams(
            dimension_semantics=("parallel",),
            vmem_limit_bytes=VMEM_LIMIT),
        cost_estimate=pl.CostEstimate(
            flops=2 * N * F * o_true, transcendentals=0,
            bytes_accessed=N * F * 2 + F * o_true * 2 + o_true * 4
            + N * o_true * 4),
    )(x, w_t, b_row)
    return out[:N, :o_true]


def im2col_pool_groups(x, K=5, pad=2):
    """x: (N, H, W, C) NHWC -> (4, N*(H//2)*(W//2), K*K*C).

    Feature order per output pixel is (di, dj, c), matching a (K, K, Cin, Cout)
    weight flattened over its first three axes.  Group axis enumerates the
    four positions of the 2x2 max-pool window.
    """
    N, H, W, C = x.shape
    xp = jnp.pad(x, ((0, 0), (pad, pad), (pad, pad), (0, 0)))
    cols = []
    for di in range(K):
        for dj in range(K):
            cols.append(xp[:, di:di + H, dj:dj + W, :])
    col = jnp.stack(cols, axis=3).reshape(N, H, W, K * K * C)
    Ho, Wo = H // 2, W // 2
    groups = []
    for ph in range(2):
        for pw in range(2):
            groups.append(col[:, ph::2, pw::2, :].reshape(N * Ho * Wo, K * K * C))
    return jnp.stack(groups, axis=0)


def _prep_conv_params(w_hwio, b, cout):
    """Flatten HWIO weight, pad Kd to /16 (bf16 sublanes) and Cout to 128."""
    kh, kw, cin, co = w_hwio.shape
    assert co == cout
    kd = kh * kw * cin
    kd_p = _round_up(kd, KD_ALIGN)
    w_flat = jnp.pad(w_hwio.reshape(kd, co),
                     ((0, kd_p - kd), (0, CO_PAD - co))).astype(jnp.bfloat16)
    b_row = jnp.pad(b.reshape(1, co),
                    ((0, 0), (0, CO_PAD - co))).astype(jnp.float32)
    return w_flat, b_row, kd, kd_p


@jax.jit
def cnn_forward(x_nchw, params):
    w1, b1, w2, b2, wf, bf = params          # w1/w2 are HWIO
    x = jnp.transpose(x_nchw, (0, 2, 3, 1)).astype(jnp.bfloat16)  # NCHW -> NHWC
    N = x.shape[0]

    # conv1 + relu + maxpool(2): (N,28,28,1) -> (N,14,14,16)
    xcol1 = im2col_pool_groups(x)                                 # (4, N*196, 25)
    w1f, b1f, kd1, kd1p = _prep_conv_params(w1, b1, 16)
    if kd1p != kd1:                                               # 25 -> 32 only
        xcol1 = jnp.pad(xcol1, ((0, 0), (0, 0), (0, kd1p - kd1)))
    h1 = conv_relu_pool(xcol1, w1f, b1f, 16).reshape(N, 14, 14, 16)  # bf16

    # conv2 + relu + maxpool(2): (N,14,14,16) -> (N,7,7,32)
    xcol2 = im2col_pool_groups(h1)                                # (4, N*49, 400)
    w2f, b2f, kd2, kd2p = _prep_conv_params(w2, b2, 32)
    if kd2p != kd2:
        xcol2 = jnp.pad(xcol2, ((0, 0), (0, 0), (0, kd2p - kd2)))
    h2 = conv_relu_pool(xcol2, w2f, b2f, 32).reshape(N, 7, 7, 32)    # bf16

    # Linear(1568 -> 10): fold the PyTorch (C,H,W) flatten order into the
    # weight (one-time permute) so h2 can be flattened for free in NHWC order.
    flat = h2.reshape(N, 7 * 7 * 32)                              # (h, w, c) order
    w_fc = jnp.transpose(wf.reshape(10, 32, 7, 7), (0, 2, 3, 1)).reshape(10, -1)
    w_t = jnp.pad(w_fc.T, ((0, 0), (0, CO_PAD - 10))).astype(jnp.bfloat16)
    b_row = jnp.pad(bf.reshape(1, -1),
                    ((0, 0), (0, CO_PAD - 10))).astype(jnp.float32)
    return linear(flat, w_t, b_row, 10)


# --------------------------- pure-JAX reference -----------------------------

def reference(x_nchw, params):
    w1, b1, w2, b2, wf, bf = params

    def conv(x, w_hwio, b):
        w_oihw = jnp.transpose(w_hwio, (3, 2, 0, 1))
        y = lax.conv_general_dilated(
            x, w_oihw, window_strides=(1, 1), padding=((2, 2), (2, 2)),
            dimension_numbers=("NCHW", "OIHW", "NCHW"))
        return y + b[None, :, None, None]

    def pool(x):
        return lax.reduce_window(x, -jnp.inf, lax.max,
                                 (1, 1, 2, 2), (1, 1, 2, 2), "VALID")

    h = pool(jax.nn.relu(conv(x_nchw, w1, b1)))
    h = pool(jax.nn.relu(conv(h, w2, b2)))
    h = h.reshape(x_nchw.shape[0], -1)
    return h @ wf.T + bf[None, :]


# --------------------------------- main --------------------------------------

if __name__ == "__main__":
    key = jax.random.PRNGKey(0)
    k = jax.random.split(key, 7)

    x = jax.random.normal(k[0], (2, 1, 28, 28), jnp.float32)

    # deterministic synthetic parameters (shapes from CNN.__init__)
    w1 = jax.random.normal(k[1], (5, 5, 1, 16), jnp.float32) * 0.1    # HWIO
    b1 = jax.random.normal(k[2], (16,), jnp.float32) * 0.1
    w2 = jax.random.normal(k[3], (5, 5, 16, 32), jnp.float32) * 0.05  # HWIO
    b2 = jax.random.normal(k[4], (32,), jnp.float32) * 0.05
    wf = jax.random.normal(k[5], (10, 32 * 7 * 7), jnp.float32) * 0.05
    bf = jax.random.normal(k[6], (10,), jnp.float32) * 0.05
    params = (w1, b1, w2, b2, wf, bf)

    out = cnn_forward(x, params)
    out = jax.block_until_ready(out)
    assert out.shape == (2, 10)

    ref = reference(x, params)
    assert jnp.allclose(out, ref, atol=5e-2, rtol=5e-2), (
        float(jnp.max(jnp.abs(out - ref))))

    print("KERNEL_OK")
</pallas_src>

<mosaic_0001>
module attributes {stable_mosaic.version = 11 : i64} {
  func.func @conv_relu_pool_kernel(%arg0: i32, %arg1: memref<4x208x32xbf16, #tpu.memory_space<vmem>>, %arg2: memref<32x128xbf16, #tpu.memory_space<vmem>>, %arg3: memref<1x128xf32, #tpu.memory_space<vmem>>, %arg4: memref<208x128xbf16, #tpu.memory_space<vmem>>) attributes {dimension_semantics = [#tpu.dimension_semantics<parallel>], iteration_bounds = array<i64: 2>, scalar_prefetch = 0 : i64, scratch_operands = 0 : i64, tpu.core_type = #tpu.core_type<tc>, window_params = [{transform_indices = @transform_0, window_bounds = array<i64: 4, 208, 32>}, {pipeline_mode = #tpu.pipeline_mode<synchronous>, transform_indices = @transform_1, window_bounds = array<i64: 32, 128>}, {pipeline_mode = #tpu.pipeline_mode<synchronous>, transform_indices = @transform_2, window_bounds = array<i64: 1, 128>}, {transform_indices = @transform_3, window_bounds = array<i64: 208, 128>}]} {
    %c0 = arith.constant 0 : index
    %c0_0 = arith.constant 0 : index
    %0 = vector.load %arg2[%c0, %c0_0] : memref<32x128xbf16, #tpu.memory_space<vmem>>, vector<32x128xbf16>
    %c0_1 = arith.constant 0 : index
    %c0_2 = arith.constant 0 : index
    %c0_3 = arith.constant 0 : index
    %1 = vector.load %arg1[%c0_1, %c0_2, %c0_3] : memref<4x208x32xbf16, #tpu.memory_space<vmem>>, vector<1x208x32xbf16>
    %2 = vector.shape_cast %1 : vector<1x208x32xbf16> to vector<208x32xbf16>
    %cst = arith.constant dense<0.000000e+00> : vector<208x128xf32>
    %3 = tpu.matmul %2, %0, %cst {dimension_numbers = #tpu.dot_dimension_numbers<[1], [0], [0], [1], [0, 0, 1, 1], [], []>} : vector<208x32xbf16>, vector<32x128xbf16>, vector<208x128xf32> -> vector<208x128xf32>
    %c1 = arith.constant 1 : index
    %c0_4 = arith.constant 0 : index
    %c0_5 = arith.constant 0 : index
    %4 = vector.load %arg1[%c1, %c0_4, %c0_5] : memref<4x208x32xbf16, #tpu.memory_space<vmem>>, vector<1x208x32xbf16>
    %5 = vector.shape_cast %4 : vector<1x208x32xbf16> to vector<208x32xbf16>
    %cst_6 = arith.constant dense<0.000000e+00> : vector<208x128xf32>
    %6 = tpu.matmul %5, %0, %cst_6 {dimension_numbers = #tpu.dot_dimension_numbers<[1], [0], [0], [1], [0, 0, 1, 1], [], []>} : vector<208x32xbf16>, vector<32x128xbf16>, vector<208x128xf32> -> vector<208x128xf32>
    %7 = arith.maximumf %3, %6 : vector<208x128xf32>
    %c2 = arith.constant 2 : index
    %c0_7 = arith.constant 0 : index
    %c0_8 = arith.constant 0 : index
    %8 = vector.load %arg1[%c2, %c0_7, %c0_8] : memref<4x208x32xbf16, #tpu.memory_space<vmem>>, vector<1x208x32xbf16>
    %9 = vector.shape_cast %8 : vector<1x208x32xbf16> to vector<208x32xbf16>
    %cst_9 = arith.constant dense<0.000000e+00> : vector<208x128xf32>
    %10 = tpu.matmul %9, %0, %cst_9 {dimension_numbers = #tpu.dot_dimension_numbers<[1], [0], [0], [1], [0, 0, 1, 1], [], []>} : vector<208x32xbf16>, vector<32x128xbf16>, vector<208x128xf32> -> vector<208x128xf32>
    %11 = arith.maximumf %7, %10 : vector<208x128xf32>
    %c3 = arith.constant 3 : index
    %c0_10 = arith.constant 0 : index
    %c0_11 = arith.constant 0 : index
    %12 = vector.load %arg1[%c3, %c0_10, %c0_11] : memref<4x208x32xbf16, #tpu.memory_space<vmem>>, vector<1x208x32xbf16>
    %13 = vector.shape_cast %12 : vector<1x208x32xbf16> to vector<208x32xbf16>
    %cst_12 = arith.constant dense<0.000000e+00> : vector<208x128xf32>
    %14 = tpu.matmul %13, %0, %cst_12 {dimension_numbers = #tpu.dot_dimension_numbers<[1], [0], [0], [1], [0, 0, 1, 1], [], []>} : vector<208x32xbf16>, vector<32x128xbf16>, vector<208x128xf32> -> vector<208x128xf32>
    %15 = arith.maximumf %11, %14 : vector<208x128xf32>
    %c0_13 = arith.constant 0 : index
    %c0_14 = arith.constant 0 : index
    %16 = vector.load %arg3[%c0_13, %c0_14] : memref<1x128xf32, #tpu.memory_space<vmem>>, vector<1x128xf32>
    %17 = vector.broadcast %16 : vector<1x128xf32> to vector<208x128xf32>
    %18 = arith.addf %15, %17 : vector<208x128xf32>
    %cst_15 = arith.constant 0.000000e+00 : f32
    %19 = vector.broadcast %cst_15 : f32 to vector<208x128xf32>
    %20 = arith.maximumf %18, %19 : vector<208x128xf32>
    %21 = arith.truncf %20 : vector<208x128xf32> to vector<208x128xbf16>
    %c0_16 = arith.constant 0 : index
    %c0_17 = arith.constant 0 : index
    %22 = vector.load %arg4[%c0_16, %c0_17] : memref<208x128xbf16, #tpu.memory_space<vmem>>, vector<208x128xbf16>
    tpu.vector_store %arg4[%c0_16, %c0_17], %21 {strides = array<i32>} : memref<208x128xbf16, #tpu.memory_space<vmem>>, vector<208x128xbf16>,
    return
  }
  func.func @transform_0(%arg0: i32) -> (i32, i32, i32) {
    %c0_i32 = arith.constant 0 : i32
    %c0_i32_0 = arith.constant 0 : i32
    %c0_i32_1 = arith.constant 0 : i32
    return %c0_i32, %arg0, %c0_i32_0 : i32, i32, i32
  }
  func.func @transform_1(%arg0: i32) -> (i32, i32) {
    %c0_i32 = arith.constant 0 : i32
    %c0_i32_0 = arith.constant 0 : i32
    %c0_i32_1 = arith.constant 0 : i32
    return %c0_i32, %c0_i32_0 : i32, i32
  }
  func.func @transform_2(%arg0: i32) -> (i32, i32) {
    %c0_i32 = arith.constant 0 : i32
    %c0_i32_0 = arith.constant 0 : i32
    %c0_i32_1 = arith.constant 0 : i32
    return %c0_i32, %c0_i32_0 : i32, i32
  }
  func.func @transform_3(%arg0: i32) -> (i32, i32) {
    %c0_i32 = arith.constant 0 : i32
    %c0_i32_0 = arith.constant 0 : i32
    return %arg0, %c0_i32 : i32, i32
  }
}

module attributes {stable_mosaic.version = 11 : i64} {
  func.func @conv_relu_pool_kernel(%arg0: i32, %arg1: memref<4x64x400xbf16, #tpu.memory_space<vmem>>, %arg2: memref<400x128xbf16, #tpu.memory_space<vmem>>, %arg3: memref<1x128xf32, #tpu.memory_space<vmem>>, %arg4: memref<64x128xbf16, #tpu.memory_space<vmem>>) attributes {dimension_semantics = [#tpu.dimension_semantics<parallel>], iteration_bounds = array<i64: 2>, scalar_prefetch = 0 : i64, scratch_operands = 0 : i64, tpu.core_type = #tpu.core_type<tc>, window_params = [{transform_indices = @transform_0, window_bounds = array<i64: 4, 64, 400>}, {pipeline_mode = #tpu.pipeline_mode<synchronous>, transform_indices = @transform_1, window_bounds = array<i64: 400, 128>}, {pipeline_mode = #tpu.pipeline_mode<synchronous>, transform_indices = @transform_2, window_bounds = array<i64: 1, 128>}, {transform_indices = @transform_3, window_bounds = array<i64: 64, 128>}]} {
    %c0 = arith.constant 0 : index
    %c0_0 = arith.constant 0 : index
    %0 = vector.load %arg2[%c0, %c0_0] : memref<400x128xbf16, #tpu.memory_space<vmem>>, vector<400x128xbf16>
    %c0_1 = arith.constant 0 : index
    %c0_2 = arith.constant 0 : index
    %c0_3 = arith.constant 0 : index
    %1 = vector.load %arg1[%c0_1, %c0_2, %c0_3] : memref<4x64x400xbf16, #tpu.memory_space<vmem>>, vector<1x64x400xbf16>
    %2 = vector.shape_cast %1 : vector<1x64x400xbf16> to vector<64x400xbf16>
    %cst = arith.constant dense<0.000000e+00> : vector<64x128xf32>
    %3 = tpu.matmul %2, %0, %cst {dimension_numbers = #tpu.dot_dimension_numbers<[1], [0], [0], [1], [0, 0, 1, 1], [], []>} : vector<64x400xbf16>, vector<400x128xbf16>, vector<64x128xf32> -> vector<64x128xf32>
    %c1 = arith.constant 1 : index
    %c0_4 = arith.constant 0 : index
    %c0_5 = arith.constant 0 : index
    %4 = vector.load %arg1[%c1, %c0_4, %c0_5] : memref<4x64x400xbf16, #tpu.memory_space<vmem>>, vector<1x64x400xbf16>
    %5 = vector.shape_cast %4 : vector<1x64x400xbf16> to vector<64x400xbf16>
    %cst_6 = arith.constant dense<0.000000e+00> : vector<64x128xf32>
    %6 = tpu.matmul %5, %0, %cst_6 {dimension_numbers = #tpu.dot_dimension_numbers<[1], [0], [0], [1], [0, 0, 1, 1], [], []>} : vector<64x400xbf16>, vector<400x128xbf16>, vector<64x128xf32> -> vector<64x128xf32>
    %7 = arith.maximumf %3, %6 : vector<64x128xf32>
    %c2 = arith.constant 2 : index
    %c0_7 = arith.constant 0 : index
    %c0_8 = arith.constant 0 : index
    %8 = vector.load %arg1[%c2, %c0_7, %c0_8] : memref<4x64x400xbf16, #tpu.memory_space<vmem>>, vector<1x64x400xbf16>
    %9 = vector.shape_cast %8 : vector<1x64x400xbf16> to vector<64x400xbf16>
    %cst_9 = arith.constant dense<0.000000e+00> : vector<64x128xf32>
    %10 = tpu.matmul %9, %0, %cst_9 {dimension_numbers = #tpu.dot_dimension_numbers<[1], [0], [0], [1], [0, 0, 1, 1], [], []>} : vector<64x400xbf16>, vector<400x128xbf16>, vector<64x128xf32> -> vector<64x128xf32>
    %11 = arith.maximumf %7, %10 : vector<64x128xf32>
    %c3 = arith.constant 3 : index
    %c0_10 = arith.constant 0 : index
    %c0_11 = arith.constant 0 : index
    %12 = vector.load %arg1[%c3, %c0_10, %c0_11] : memref<4x64x400xbf16, #tpu.memory_space<vmem>>, vector<1x64x400xbf16>
    %13 = vector.shape_cast %12 : vector<1x64x400xbf16> to vector<64x400xbf16>
    %cst_12 = arith.constant dense<0.000000e+00> : vector<64x128xf32>
    %14 = tpu.matmul %13, %0, %cst_12 {dimension_numbers = #tpu.dot_dimension_numbers<[1], [0], [0], [1], [0, 0, 1, 1], [], []>} : vector<64x400xbf16>, vector<400x128xbf16>, vector<64x128xf32> -> vector<64x128xf32>
    %15 = arith.maximumf %11, %14 : vector<64x128xf32>
    %c0_13 = arith.constant 0 : index
    %c0_14 = arith.constant 0 : index
    %16 = vector.load %arg3[%c0_13, %c0_14] : memref<1x128xf32, #tpu.memory_space<vmem>>, vector<1x128xf32>
    %17 = vector.broadcast %16 : vector<1x128xf32> to vector<64x128xf32>
    %18 = arith.addf %15, %17 : vector<64x128xf32>
    %cst_15 = arith.constant 0.000000e+00 : f32
    %19 = vector.broadcast %cst_15 : f32 to vector<64x128xf32>
    %20 = arith.maximumf %18, %19 : vector<64x128xf32>
    %21 = arith.truncf %20 : vector<64x128xf32> to vector<64x128xbf16>
    %c0_16 = arith.constant 0 : index
    %c0_17 = arith.constant 0 : index
    %22 = vector.load %arg4[%c0_16, %c0_17] : memref<64x128xbf16, #tpu.memory_space<vmem>>, vector<64x128xbf16>
    tpu.vector_store %arg4[%c0_16, %c0_17], %21 {strides = array<i32>} : memref<64x128xbf16, #tpu.memory_space<vmem>>, vector<64x128xbf16>,
    return
  }
  func.func @transform_0(%arg0: i32) -> (i32, i32, i32) {
    %c0_i32 = arith.constant 0 : i32
    %c0_i32_0 = arith.constant 0 : i32
    %c0_i32_1 = arith.constant 0 : i32
    return %c0_i32, %arg0, %c0_i32_0 : i32, i32, i32
  }
  func.func @transform_1(%arg0: i32) -> (i32, i32) {
    %c0_i32 = arith.constant 0 : i32
    %c0_i32_0 = arith.constant 0 : i32
    %c0_i32_1 = arith.constant 0 : i32
    return %c0_i32, %c0_i32_0 : i32, i32
  }
  func.func @transform_2(%arg0: i32) -> (i32, i32) {
    %c0_i32 = arith.constant 0 : i32
    %c0_i32_0 = arith.constant 0 : i32
    %c0_i32_1 = arith.constant 0 : i32
    return %c0_i32, %c0_i32_0 : i32, i32
  }
  func.func @transform_3(%arg0: i32) -> (i32, i32) {
    %c0_i32 = arith.constant 0 : i32
    %c0_i32_0 = arith.constant 0 : i32
    return %arg0, %c0_i32 : i32, i32
  }
}

module attributes {stable_mosaic.version = 11 : i64} {
  func.func @linear_kernel(%arg0: i32, %arg1: memref<16x1568xbf16, #tpu.memory_space<vmem>>, %arg2: memref<1568x128xbf16, #tpu.memory_space<vmem>>, %arg3: memref<1x128xf32, #tpu.memory_space<vmem>>, %arg4: memref<16x128xf32, #tpu.memory_space<vmem>>) attributes {dimension_semantics = [#tpu.dimension_semantics<parallel>], iteration_bounds = array<i64: 2>, scalar_prefetch = 0 : i64, scratch_operands = 0 : i64, tpu.core_type = #tpu.core_type<tc>, window_params = [{transform_indices = @transform_0, window_bounds = array<i64: 16, 1568>}, {pipeline_mode = #tpu.pipeline_mode<synchronous>, transform_indices = @transform_1, window_bounds = array<i64: 1568, 128>}, {pipeline_mode = #tpu.pipeline_mode<synchronous>, transform_indices = @transform_2, window_bounds = array<i64: 1, 128>}, {transform_indices = @transform_3, window_bounds = array<i64: 16, 128>}]} {
    %c0 = arith.constant 0 : index
    %c0_0 = arith.constant 0 : index
    %0 = vector.load %arg1[%c0, %c0_0] : memref<16x1568xbf16, #tpu.memory_space<vmem>>, vector<16x1568xbf16>
    %c0_1 = arith.constant 0 : index
    %c0_2 = arith.constant 0 : index
    %1 = vector.load %arg2[%c0_1, %c0_2] : memref<1568x128xbf16, #tpu.memory_space<vmem>>, vector<1568x128xbf16>
    %cst = arith.constant dense<0.000000e+00> : vector<16x128xf32>
    %2 = tpu.matmul %0, %1, %cst {dimension_numbers = #tpu.dot_dimension_numbers<[1], [0], [0], [1], [0, 0, 1, 1], [], []>} : vector<16x1568xbf16>, vector<1568x128xbf16>, vector<16x128xf32> -> vector<16x128xf32>
    %c0_3 = arith.constant 0 : index
    %c0_4 = arith.constant 0 : index
    %3 = vector.load %arg3[%c0_3, %c0_4] : memref<1x128xf32, #tpu.memory_space<vmem>>, vector<1x128xf32>
    %4 = vector.broadcast %3 : vector<1x128xf32> to vector<16x128xf32>
    %5 = arith.addf %2, %4 : vector<16x128xf32>
    %c0_5 = arith.constant 0 : index
    %c0_6 = arith.constant 0 : index
    %6 = vector.load %arg4[%c0_5, %c0_6] : memref<16x128xf32, #tpu.memory_space<vmem>>, vector<16x128xf32>
    tpu.vector_store %arg4[%c0_5, %c0_6], %5 {strides = array<i32>} : memref<16x128xf32, #tpu.memory_space<vmem>>, vector<16x128xf32>,
    return
  }
  func.func @transform_0(%arg0: i32) -> (i32, i32) {
    %c0_i32 = arith.constant 0 : i32
    %c0_i32_0 = arith.constant 0 : i32
    return %arg0, %c0_i32 : i32, i32
  }
  func.func @transform_1(%arg0: i32) -> (i32, i32) {
    %c0_i32 = arith.constant 0 : i32
    %c0_i32_0 = arith.constant 0 : i32
    %c0_i32_1 = arith.constant 0 : i32
    return %c0_i32, %c0_i32_0 : i32, i32
  }
  func.func @transform_2(%arg0: i32) -> (i32, i32) {
    %c0_i32 = arith.constant 0 : i32
    %c0_i32_0 = arith.constant 0 : i32
    %c0_i32_1 = arith.constant 0 : i32
    return %c0_i32, %c0_i32_0 : i32, i32
  }
  func.func @transform_3(%arg0: i32) -> (i32, i32) {
    %c0_i32 = arith.constant 0 : i32
    %c0_i32_0 = arith.constant 0 : i32
    return %arg0, %c0_i32 : i32, i32
  }
}

</mosaic_0001>

<llo_original>
// kernel: cnn_forward.3
$region0: #{cnn_forward.3}
  #allocation0 [shape = 'u32[]', space=smem, size = 0x4, offset = 0x4, fixed_abs, tag = 'smem constant byte address 0x4 - core index']
  #allocation1 [shape = 'u32[144,128]{1,0:T(1,128)}', space=vmem, size = 0x12000, scoped, tag = 'internal scratch']
  %s0 = inlined_call_operand.vmem [shape: bf16[4,416,32], index: 0, kind: input, shape index: {}]
  %s1 = inlined_call_operand.vmem [shape: bf16[32,128], index: 1, kind: input, shape index: {}]
  %s2 = inlined_call_operand.vmem [shape: f32[1,128], index: 2, kind: input, shape index: {}]
  %s3 = inlined_call_operand.vmem [shape: bf16[416,128], index: 3, kind: output, shape index: {}]
  %s4 = sld [smem:[#allocation0]]
  $region86: #{cnn_forward.3} parent=0
    _
  %s6 = ssub.s32 1, %s4
  %s7 = scalar_select 0, %s6, %s4
  $region1: #{cnn_forward.3} parent=0
    #allocation2 [shape = 'u8[425984]{0}', space=vmem, size = 0x68000, scoped, tag = 'input window, operand 0']
    loop: start=0, step=1, limit=4
    $region2: #{cnn_forward.3} parent=1 // loop_pre_header
      _
    $region3: #{cnn_forward.3} parent=1 // loop_header
      %s9 = sphi 0, %s13
      %p10 = scmp.ge.s32.totalorder %s9, 4
      %s19 = sphi 0, %s21
      %s22 = sphi 0, %s19
      %s23 = sphi 0, %s22
      %s39 = sphi 0, %s23
      %s43 = sphi 0, %s43
      %s45 = sphi 0, %s43
      %s46 = sphi 0, %s45
      %s60 = sphi 0, %s46
      %s64 = sphi 0, %s64
      %s66 = sphi 0, %s64
      %s67 = sphi 0, %s66
      %s81 = sphi 0, %s67
      %s87 = sphi 0, %s89
      %s90 = sphi 0, %s87
      %s91 = sphi 0, %s90
      %s107 = sphi 0, %s91
    $region4: #{cnn_forward.3} parent=1 // loop_header_branch
      %12 = sbr.rel (%p10) target = $region8
    $region5: #{cnn_forward.3} parent=1 // loop_body
      %s14 = ssub.s32 %s9, 1
      %s15 = ssub.s32 %s9, 2
      %s16 = sadd.s32 %s9, 1
      %s17 = ssub.s32 %s9, %s16
      %p18 = scmp.eq.s32.totalorder %s17, 0
      %s20 = sadd.s32 %s19, 1
      %s21 = scalar_select %p18, %s19, %s20
      %p24 = pneg %p18
      %p25 = scmp.eq.s32.totalorder %s9, 1
      %p26 = por %p24, %p25
      %p27 = scmp.ne.s32.totalorder %s19, %s22
      %p28 = scmp.eq.s32.totalorder %s9, 0
      %p29 = por %p27, %p28
      %p30 = scmp.ne.s32.totalorder %s19, %s22
      %p31 = scmp.eq.s32.totalorder %s14, 1
      %p32 = por %p30, %p31
      %p33 = scmp.ne.s32.totalorder %s22, %s23
      %p34 = scmp.eq.s32.totalorder %s14, 0
      %p35 = por %p33, %p34
      %p36 = scmp.ne.s32.totalorder %s22, %s23
      %p37 = scmp.eq.s32.totalorder %s15, 1
      %p38 = por %p36, %p37
      %p40 = scmp.ne.s32.totalorder %s23, %s39
      %p41 = scmp.eq.s32.totalorder %s15, 0
      %p42 = por %p40, %p41
      %s44 = sadd.s32 %s43, 1
      %p47 = scmp.eq.s32.totalorder %s9, 1
      %p48 = scmp.ne.s32.totalorder %s43, %s45
      %p49 = scmp.eq.s32.totalorder %s9, 0
      %p50 = por %p48, %p49
      %p51 = scmp.ne.s32.totalorder %s43, %s45
      %p52 = scmp.eq.s32.totalorder %s14, 1
      %p53 = por %p51, %p52
      %p54 = scmp.ne.s32.totalorder %s45, %s46
      %p55 = scmp.eq.s32.totalorder %s14, 0
      %p56 = por %p54, %p55
      %p57 = scmp.ne.s32.totalorder %s45, %s46
      %p58 = scmp.eq.s32.totalorder %s15, 1
      %p59 = por %p57, %p58
      %p61 = scmp.ne.s32.totalorder %s46, %s60
      %p62 = scmp.eq.s32.totalorder %s15, 0
      %p63 = por %p61, %p62
      %s65 = sadd.s32 %s64, 1
      %p68 = scmp.eq.s32.totalorder %s9, 1
      %p69 = scmp.ne.s32.totalorder %s64, %s66
      %p70 = scmp.eq.s32.totalorder %s9, 0
      %p71 = por %p69, %p70
      %p72 = scmp.ne.s32.totalorder %s64, %s66
      %p73 = scmp.eq.s32.totalorder %s14, 1
      %p74 = por %p72, %p73
      %p75 = scmp.ne.s32.totalorder %s66, %s67
      %p76 = scmp.eq.s32.totalorder %s14, 0
      %p77 = por %p75, %p76
      %p78 = scmp.ne.s32.totalorder %s66, %s67
      %p79 = scmp.eq.s32.totalorder %s15, 1
      %p80 = por %p78, %p79
      %p82 = scmp.ne.s32.totalorder %s67, %s81
      %p83 = scmp.eq.s32.totalorder %s15, 0
      %p84 = por %p82, %p83
      %s85 = ssub.s32 %s9, %s16
      %p86 = scmp.eq.s32.totalorder %s85, 0
      %s88 = sadd.s32 %s87, 1
      %s89 = scalar_select %p86, %s87, %s88
      %p92 = pneg %p86
      %p93 = scmp.eq.s32.totalorder %s9, 1
      %p94 = por %p92, %p93
      %p95 = scmp.ne.s32.totalorder %s87, %s90
      %p96 = scmp.eq.s32.totalorder %s9, 0
      %p97 = por %p95, %p96
      %p98 = scmp.ne.s32.totalorder %s87, %s90
      %p99 = scmp.eq.s32.totalorder %s14, 1
      %p100 = por %p98, %p99
      %p101 = scmp.ne.s32.totalorder %s90, %s91
      %p102 = scmp.eq.s32.totalorder %s14, 0
      %p103 = por %p101, %p102
      %p104 = scmp.ne.s32.totalorder %s90, %s91
      %p105 = scmp.eq.s32.totalorder %s15, 1
      %p106 = por %p104, %p105
      %p108 = scmp.ne.s32.totalorder %s91, %s107
      %p109 = scmp.eq.s32.totalorder %s15, 0
      %p110 = por %p108, %p109
      %p111 = scmp.le.s32.totalorder 1, %s9
      %p112 = scmp.lt.s32.totalorder %s9, 3
      %p113 = pnand %p111, %p112
      %p114 = pneg %p113
      // Predicated region
      $region9: #{cnn_forward.3} parent=5 // pred_check
        _
      $region10: #{cnn_forward.3} parent=5 // pred_check_branch
        %116 = sbr.rel (%p113) target = $region12
      $region11: #{cnn_forward.3} parent=5 // pred_region
        %s117 = ssub.s32 %s9, 1
        // Predicated region
        $region13: #{cnn_forward.3} parent=11 // pred_check
          %p118 = pneg %p56
        $region14: #{cnn_forward.3} parent=11 // pred_check_branch
          %120 = sbr.rel (%p118) target = $region16
        $region15: #{cnn_forward.3} parent=11 // pred_region
          _
        $region16: #{cnn_forward.3} parent=11 // pred_fallthru
          _
        // Predicated region
        $region17: #{cnn_forward.3} parent=11 // pred_check
          %p121 = pneg %p77
        $region18: #{cnn_forward.3} parent=11 // pred_check_branch
          %123 = sbr.rel (%p121) target = $region20
        $region19: #{cnn_forward.3} parent=11 // pred_region
          _
        $region20: #{cnn_forward.3} parent=11 // pred_fallthru
          _
      $region12: #{cnn_forward.3} parent=5 // pred_fallthru
        _
      %p124 = scmp.lt.s32.totalorder %s9, 2
      // Predicated region
      $region21: #{cnn_forward.3} parent=5 // pred_check
        %p125 = pneg %p124
      $region22: #{cnn_forward.3} parent=5 // pred_check_branch
        %127 = sbr.rel (%p125) target = $region24
      $region23: #{cnn_forward.3} parent=5 // pred_region
        // Predicated region
        $region25: #{cnn_forward.3} parent=23 // pred_check
          %p128 = pneg %p29
        $region26: #{cnn_forward.3} parent=23 // pred_check_branch
          %130 = sbr.rel (%p128) target = $region28
        $region27: #{cnn_forward.3} parent=23 // pred_region
          %s131 = sand.u32 %s19, 1
          %s132 = sand.u32 %s19, 1
          %s133 = smul.addr %s132, 416
          %s134 = scalar_lea.vmem [#allocation2], %s133
          %s135 = smul.u32 26, %s9
          %s136 = smul.addr %s135, 4
          %s137 = scalar_lea.vmem %s0, %s136
          // Predicated region
          $region29: #{cnn_forward.3} parent=27 // pred_check
            _
          $region30: #{cnn_forward.3} parent=27 // pred_check_branch
            %139 = sbr.rel (0) target = $region32
          $region31: #{cnn_forward.3} parent=27 // pred_region
            // Predicated region
            $region33: #{cnn_forward.3} parent=31 // pred_check
              _
            $region34: #{cnn_forward.3} parent=31 // pred_check_branch
              %141 = sbr.rel target = $region36
            $region35: #{cnn_forward.3} parent=31 // pred_region
              // Predicated region
              $region48: #{cnn_forward.3} parent=35 // pred_check
                _
              $region49: #{cnn_forward.3} parent=35 // pred_check_branch
                %362 = sbr.rel (0) target = $region51
              $region50: #{cnn_forward.3} parent=35 // pred_region
                loop: start=0, step=1, limit=1
                $region52: #{cnn_forward.3} parent=50 // loop_pre_header
                  _
                $region53: #{cnn_forward.3} parent=50 // loop_header
                  %s364 = sphi 0, %s368
                  %p365 = scmp.ge.s32.totalorder %s364, 1
                  %s369 = sphi %s137, %s137
                  %s370 = sphi %s134, %s134
                $region54: #{cnn_forward.3} parent=50 // loop_header_branch
                  %367 = sbr.rel (%p365) target = $region58
                $region55: #{cnn_forward.3} parent=50 // loop_body
                  _
                $region56: #{cnn_forward.3} parent=50 // loop_footer
                  %s368 = sadd.s32 1, %s364
                $region57: #{cnn_forward.3} parent=50 // loop_footer_branch
                  %363 = sbr.rel target = $region53
                $region58: #{cnn_forward.3} parent=50 // loop_exit
                  _
                loop: start=0, step=1, limit=1
                $region59: #{cnn_forward.3} parent=50 // loop_pre_header
                  _
                $region60: #{cnn_forward.3} parent=50 // loop_header
                  %s373 = sphi 0, %s377
                  %p374 = scmp.ge.s32.totalorder %s373, 1
                  %s378 = sphi %s137, %s137
                  %s379 = sphi %s134, %s134
                $region61: #{cnn_forward.3} parent=50 // loop_header_branch
                  %376 = sbr.rel (%p374) target = $region65
                $region62: #{cnn_forward.3} parent=50 // loop_body
                  %v380 = vld [vmem:[%s378] sm:$0xf]
                  %381 = vst [vmem:[%s379] sm:$0xf] %v380
                  %v382 = vld [vmem:[%s378 + $0x4] sm:$0xf]
                  %383 = vst [vmem:[%s379 + $0x4] sm:$0xf] %v382
                  %v384 = vld [vmem:[%s378 + $0x8] sm:$0xf]
                  %385 = vst [vmem:[%s379 + $0x8] sm:$0xf] %v384
                  %v386 = vld [vmem:[%s378 + $0xc] sm:$0xf]
                  %387 = vst [vmem:[%s379 + $0xc] sm:$0xf] %v386
                  %v388 = vld [vmem:[%s378 + $0x10] sm:$0xf]
                  %389 = vst [vmem:[%s379 + $0x10] sm:$0xf] %v388
                  %v390 = vld [vmem:[%s378 + $0x14] sm:$0xf]
                  %391 = vst [vmem:[%s379 + $0x14] sm:$0xf] %v390
                  %v392 = vld [vmem:[%s378 + $0x18] sm:$0xf]
                  %393 = vst [vmem:[%s379 + $0x18] sm:$0xf] %v392
                  %v394 = vld [vmem:[%s378 + $0x1c] sm:$0xf]
                  %395 = vst [vmem:[%s379 + $0x1c] sm:$0xf] %v394
                  %v396 = vld [vmem:[%s378 + $0x20] sm:$0xf]
                  %397 = vst [vmem:[%s379 + $0x20] sm:$0xf] %v396
                  %v398 = vld [vmem:[%s378 + $0x24] sm:$0xf]
                  %399 = vst [vmem:[%s379 + $0x24] sm:$0xf] %v398
                  %v400 = vld [vmem:[%s378 + $0x28] sm:$0xf]
                  %401 = vst [vmem:[%s379 + $0x28] sm:$0xf] %v400
                  %v402 = vld [vmem:[%s378 + $0x2c] sm:$0xf]
                  %403 = vst [vmem:[%s379 + $0x2c] sm:$0xf] %v402
                  %v404 = vld [vmem:[%s378 + $0x30] sm:$0xf]
                  %405 = vst [vmem:[%s379 + $0x30] sm:$0xf] %v404
                  %v406 = vld [vmem:[%s378 + $0x34] sm:$0xf]
                  %407 = vst [vmem:[%s379 + $0x34] sm:$0xf] %v406
                  %v408 = vld [vmem:[%s378 + $0x38] sm:$0xf]
                  %409 = vst [vmem:[%s379 + $0x38] sm:$0xf] %v408
                  %v410 = vld [vmem:[%s378 + $0x3c] sm:$0xf]
                  %411 = vst [vmem:[%s379 + $0x3c] sm:$0xf] %v410
                  %v412 = vld [vmem:[%s378 + $0x40] sm:$0xf]
                  %413 = vst [vmem:[%s379 + $0x40] sm:$0xf] %v412
                  %v414 = vld [vmem:[%s378 + $0x44] sm:$0xf]
                  %415 = vst [vmem:[%s379 + $0x44] sm:$0xf] %v414
                  %v416 = vld [vmem:[%s378 + $0x48] sm:$0xf]
                  %417 = vst [vmem:[%s379 + $0x48] sm:$0xf] %v416
                  %v418 = vld [vmem:[%s378 + $0x4c] sm:$0xf]
                  %419 = vst [vmem:[%s379 + $0x4c] sm:$0xf] %v418
                  %v420 = vld [vmem:[%s378 + $0x50] sm:$0xf]
                  %421 = vst [vmem:[%s379 + $0x50] sm:$0xf] %v420
                  %v422 = vld [vmem:[%s378 + $0x54] sm:$0xf]
                  %423 = vst [vmem:[%s379 + $0x54] sm:$0xf] %v422
                  %v424 = vld [vmem:[%s378 + $0x58] sm:$0xf]
                  %425 = vst [vmem:[%s379 + $0x58] sm:$0xf] %v424
                  %v426 = vld [vmem:[%s378 + $0x5c] sm:$0xf]
                  %427 = vst [vmem:[%s379 + $0x5c] sm:$0xf] %v426
                  %v428 = vld [vmem:[%s378 + $0x60] sm:$0xf]
                  %429 = vst [vmem:[%s379 + $0x60] sm:$0xf] %v428
                  %v430 = vld [vmem:[%s378 + $0x64] sm:$0xf]
                  %431 = vst [vmem:[%s379 + $0x64] sm:$0xf] %v430
                  %v432 = vld [vmem:[%s378 + $0xd0] sm:$0xf]
                  %433 = vst [vmem:[%s379 + $0x68] sm:$0xf] %v432
                  %v434 = vld [vmem:[%s378 + $0xd4] sm:$0xf]
                  %435 = vst [vmem:[%s379 + $0x6c] sm:$0xf] %v434
                  %v436 = vld [vmem:[%s378 + $0xd8] sm:$0xf]
                  %437 = vst [vmem:[%s379 + $0x70] sm:$0xf] %v436
                  %v438 = vld [vmem:[%s378 + $0xdc] sm:$0xf]
                  %439 = vst [vmem:[%s379 + $0x74] sm:$0xf] %v438
                  %v440 = vld [vmem:[%s378 + $0xe0] sm:$0xf]
                  %441 = vst [vmem:[%s379 + $0x78] sm:$0xf] %v440
                  %v442 = vld [vmem:[%s378 + $0xe4] sm:$0xf]
                  %443 = vst [vmem:[%s379 + $0x7c] sm:$0xf] %v442
                  %v444 = vld [vmem:[%s378 + $0xe8] sm:$0xf]
                  %445 = vst [vmem:[%s379 + $0x80] sm:$0xf] %v444
                  %v446 = vld [vmem:[%s378 + $0xec] sm:$0xf]
                  %447 = vst [vmem:[%s379 + $0x84] sm:$0xf] %v446
                  %v448 = vld [vmem:[%s378 + $0xf0] sm:$0xf]
                  %449 = vst [vmem:[%s379 + $0x88] sm:$0xf] %v448
                  %v450 = vld [vmem:[%s378 + $0xf4] sm:$0xf]
                  %451 = vst [vmem:[%s379 + $0x8c] sm:$0xf] %v450
                  %v452 = vld [vmem:[%s378 + $0xf8] sm:$0xf]
                  %453 = vst [vmem:[%s379 + $0x90] sm:$0xf] %v452
                  %v454 = vld [vmem:[%s378 + $0xfc] sm:$0xf]
                  %455 = vst [vmem:[%s379 + $0x94] sm:$0xf] %v454
                  %v456 = vld [vmem:[%s378 + $0x100] sm:$0xf]
                  %457 = vst [vmem:[%s379 + $0x98] sm:$0xf] %v456
                  %v458 = vld [vmem:[%s378 + $0x104] sm:$0xf]
                  %459 = vst [vmem:[%s379 + $0x9c] sm:$0xf] %v458
                  %v460 = vld [vmem:[%s378 + $0x108] sm:$0xf]
                  %461 = vst [vmem:[%s379 + $0xa0] sm:$0xf] %v460
                  %v462 = vld [vmem:[%s378 + $0x10c] sm:$0xf]
                  %463 = vst [vmem:[%s379 + $0xa4] sm:$0xf] %v462
                  %v464 = vld [vmem:[%s378 + $0x110] sm:$0xf]
                  %465 = vst [vmem:[%s379 + $0xa8] sm:$0xf] %v464
                  %v466 = vld [vmem:[%s378 + $0x114] sm:$0xf]
                  %467 = vst [vmem:[%s379 + $0xac] sm:$0xf] %v466
                  %v468 = vld [vmem:[%s378 + $0x118] sm:$0xf]
                  %469 = vst [vmem:[%s379 + $0xb0] sm:$0xf] %v468
                  %v470 = vld [vmem:[%s378 + $0x11c] sm:$0xf]
                  %471 = vst [vmem:[%s379 + $0xb4] sm:$0xf] %v470
                  %v472 = vld [vmem:[%s378 + $0x120] sm:$0xf]
                  %473 = vst [vmem:[%s379 + $0xb8] sm:$0xf] %v472
                  %v474 = vld [vmem:[%s378 + $0x124] sm:$0xf]
                  %475 = vst [vmem:[%s379 + $0xbc] sm:$0xf] %v474
                  %v476 = vld [vmem:[%s378 + $0x128] sm:$0xf]
                  %477 = vst [vmem:[%s379 + $0xc0] sm:$0xf] %v476
                  %v478 = vld [vmem:[%s378 + $0x12c] sm:$0xf]
                  %479 = vst [vmem:[%s379 + $0xc4] sm:$0xf] %v478
                  %v480 = vld [vmem:[%s378 + $0x130] sm:$0xf]
                  %481 = vst [vmem:[%s379 + $0xc8] sm:$0xf] %v480
                  %v482 = vld [vmem:[%s378 + $0x134] sm:$0xf]
                  %483 = vst [vmem:[%s379 + $0xcc] sm:$0xf] %v482
                  %v484 = vld [vmem:[%s378 + $0x1a0] sm:$0xf]
                  %485 = vst [vmem:[%s379 + $0xd0] sm:$0xf] %v484
                  %v486 = vld [vmem:[%s378 + $0x1a4] sm:$0xf]
                  %487 = vst [vmem:[%s379 + $0xd4] sm:$0xf] %v486
                  %v488 = vld [vmem:[%s378 + $0x1a8] sm:$0xf]
                  %489 = vst [vmem:[%s379 + $0xd8] sm:$0xf] %v488
                  %v490 = vld [vmem:[%s378 + $0x1ac] sm:$0xf]
                  %491 = vst [vmem:[%s379 + $0xdc] sm:$0xf] %v490
                  %v492 = vld [vmem:[%s378 + $0x1b0] sm:$0xf]
                  %493 = vst [vmem:[%s379 + $0xe0] sm:$0xf] %v492
                  %v494 = vld [vmem:[%s378 + $0x1b4] sm:$0xf]
                  %495 = vst [vmem:[%s379 + $0xe4] sm:$0xf] %v494
                  %v496 = vld [vmem:[%s378 + $0x1b8] sm:$0xf]
                  %497 = vst [vmem:[%s379 + $0xe8] sm:$0xf] %v496
                  %v498 = vld [vmem:[%s378 + $0x1bc] sm:$0xf]
                  %499 = vst [vmem:[%s379 + $0xec] sm:$0xf] %v498
                  %v500 = vld [vmem:[%s378 + $0x1c0] sm:$0xf]
                  %501 = vst [vmem:[%s379 + $0xf0] sm:$0xf] %v500
                  %v502 = vld [vmem:[%s378 + $0x1c4] sm:$0xf]
                  %503 = vst [vmem:[%s379 + $0xf4] sm:$0xf] %v502
                  %v504 = vld [vmem:[%s378 + $0x1c8] sm:$0xf]
                  %505 = vst [vmem:[%s379 + $0xf8] sm:$0xf] %v504
                  %v506 = vld [vmem:[%s378 + $0x1cc] sm:$0xf]
                  %507 = vst [vmem:[%s379 + $0xfc] sm:$0xf] %v506
                  %v508 = vld [vmem:[%s378 + $0x1d0] sm:$0xf]
                  %509 = vst [vmem:[%s379 + $0x100] sm:$0xf] %v508
                  %v510 = vld [vmem:[%s378 + $0x1d4] sm:$0xf]
                  %511 = vst [vmem:[%s379 + $0x104] sm:$0xf] %v510
                  %v512 = vld [vmem:[%s378 + $0x1d8] sm:$0xf]
                  %513 = vst [vmem:[%s379 + $0x108] sm:$0xf] %v512
                  %v514 = vld [vmem:[%s378 + $0x1dc] sm:$0xf]
                  %515 = vst [vmem:[%s379 + $0x10c] sm:$0xf] %v514
                  %v516 = vld [vmem:[%s378 + $0x1e0] sm:$0xf]
                  %517 = vst [vmem:[%s379 + $0x110] sm:$0xf] %v516
                  %v518 = vld [vmem:[%s378 + $0x1e4] sm:$0xf]
                  %519 = vst [vmem:[%s379 + $0x114] sm:$0xf] %v518
                  %v520 = vld [vmem:[%s378 + $0x1e8] sm:$0xf]
                  %521 = vst [vmem:[%s379 + $0x118] sm:$0xf] %v520
                  %v522 = vld [vmem:[%s378 + $0x1ec] sm:$0xf]
                  %523 = vst [vmem:[%s379 + $0x11c] sm:$0xf] %v522
                  %v524 = vld [vmem:[%s378 + $0x1f0] sm:$0xf]
                  %525 = vst [vmem:[%s379 + $0x120] sm:$0xf] %v524
                  %v526 = vld [vmem:[%s378 + $0x1f4] sm:$0xf]
                  %527 = vst [vmem:[%s379 + $0x124] sm:$0xf] %v526
                  %v528 = vld [vmem:[%s378 + $0x1f8] sm:$0xf]
                  %529 = vst [vmem:[%s379 + $0x128] sm:$0xf] %v528
                  %v530 = vld [vmem:[%s378 + $0x1fc] sm:$0xf]
                  %531 = vst [vmem:[%s379 + $0x12c] sm:$0xf] %v530
                  %v532 = vld [vmem:[%s378 + $0x200] sm:$0xf]
                  %533 = vst [vmem:[%s379 + $0x130] sm:$0xf] %v532
                  %v534 = vld [vmem:[%s378 + $0x204] sm:$0xf]
                  %535 = vst [vmem:[%s379 + $0x134] sm:$0xf] %v534
                  %v536 = vld [vmem:[%s378 + $0x270] sm:$0xf]
                  %537 = vst [vmem:[%s379 + $0x138] sm:$0xf] %v536
                  %v538 = vld [vmem:[%s378 + $0x274] sm:$0xf]
                  %539 = vst [vmem:[%s379 + $0x13c] sm:$0xf] %v538
                  %v540 = vld [vmem:[%s378 + $0x278] sm:$0xf]
                  %541 = vst [vmem:[%s379 + $0x140] sm:$0xf] %v540
                  %v542 = vld [vmem:[%s378 + $0x27c] sm:$0xf]
                  %543 = vst [vmem:[%s379 + $0x144] sm:$0xf] %v542
                  %v544 = vld [vmem:[%s378 + $0x280] sm:$0xf]
                  %545 = vst [vmem:[%s379 + $0x148] sm:$0xf] %v544
                  %v546 = vld [vmem:[%s378 + $0x284] sm:$0xf]
                  %547 = vst [vmem:[%s379 + $0x14c] sm:$0xf] %v546
                  %v548 = vld [vmem:[%s378 + $0x288] sm:$0xf]
                  %549 = vst [vmem:[%s379 + $0x150] sm:$0xf] %v548
                  %v550 = vld [vmem:[%s378 + $0x28c] sm:$0xf]
                  %551 = vst [vmem:[%s379 + $0x154] sm:$0xf] %v550
                  %v552 = vld [vmem:[%s378 + $0x290] sm:$0xf]
                  %553 = vst [vmem:[%s379 + $0x158] sm:$0xf] %v552
                  %v554 = vld [vmem:[%s378 + $0x294] sm:$0xf]
                  %555 = vst [vmem:[%s379 + $0x15c] sm:$0xf] %v554
                  %v556 = vld [vmem:[%s378 + $0x298] sm:$0xf]
                  %557 = vst [vmem:[%s379 + $0x160] sm:$0xf] %v556
                  %v558 = vld [vmem:[%s378 + $0x29c] sm:$0xf]
                  %559 = vst [vmem:[%s379 + $0x164] sm:$0xf] %v558
                  %v560 = vld [vmem:[%s378 + $0x2a0] sm:$0xf]
                  %561 = vst [vmem:[%s379 + $0x168] sm:$0xf] %v560
                  %v562 = vld [vmem:[%s378 + $0x2a4] sm:$0xf]
                  %563 = vst [vmem:[%s379 + $0x16c] sm:$0xf] %v562
                  %v564 = vld [vmem:[%s378 + $0x2a8] sm:$0xf]
                  %565 = vst [vmem:[%s379 + $0x170] sm:$0xf] %v564
                  %v566 = vld [vmem:[%s378 + $0x2ac] sm:$0xf]
                  %567 = vst [vmem:[%s379 + $0x174] sm:$0xf] %v566
                  %v568 = vld [vmem:[%s378 + $0x2b0] sm:$0xf]
                  %569 = vst [vmem:[%s379 + $0x178] sm:$0xf] %v568
                  %v570 = vld [vmem:[%s378 + $0x2b4] sm:$0xf]
                  %571 = vst [vmem:[%s379 + $0x17c] sm:$0xf] %v570
                  %v572 = vld [vmem:[%s378 + $0x2b8] sm:$0xf]
                  %573 = vst [vmem:[%s379 + $0x180] sm:$0xf] %v572
                  %v574 = vld [vmem:[%s378 + $0x2bc] sm:$0xf]
                  %575 = vst [vmem:[%s379 + $0x184] sm:$0xf] %v574
                  %v576 = vld [vmem:[%s378 + $0x2c0] sm:$0xf]
                  %577 = vst [vmem:[%s379 + $0x188] sm:$0xf] %v576
                  %v578 = vld [vmem:[%s378 + $0x2c4] sm:$0xf]
                  %579 = vst [vmem:[%s379 + $0x18c] sm:$0xf] %v578
                  %v580 = vld [vmem:[%s378 + $0x2c8] sm:$0xf]
                  %581 = vst [vmem:[%s379 + $0x190] sm:$0xf] %v580
                  %v582 = vld [vmem:[%s378 + $0x2cc] sm:$0xf]
                  %583 = vst [vmem:[%s379 + $0x194] sm:$0xf] %v582
                  %v584 = vld [vmem:[%s378 + $0x2d0] sm:$0xf]
                  %585 = vst [vmem:[%s379 + $0x198] sm:$0xf] %v584
                  %v586 = vld [vmem:[%s378 + $0x2d4] sm:$0xf]
                  %587 = vst [vmem:[%s379 + $0x19c] sm:$0xf] %v586
                $region63: #{cnn_forward.3} parent=50 // loop_footer
                  %s377 = sadd.s32 1, %s373
                $region64: #{cnn_forward.3} parent=50 // loop_footer_branch
                  %372 = sbr.rel target = $region60
                $region65: #{cnn_forward.3} parent=50 // loop_exit
                  _
              $region51: #{cnn_forward.3} parent=35 // pred_fallthru
                _
            $region36: #{cnn_forward.3} parent=31 // pred_fallthru
              _
            // Predicated region
            $region37: #{cnn_forward.3} parent=31 // pred_check
              _
            $region38: #{cnn_forward.3} parent=31 // pred_check_branch
              %143 = sbr.rel (0) target = $region40
            $region39: #{cnn_forward.3} parent=31 // pred_region
              loop: start=0, step=1, limit=1
              $region41: #{cnn_forward.3} parent=39 // loop_pre_header
                _
              $region42: #{cnn_forward.3} parent=39 // loop_header
                %s146 = sphi 0, %s150
                %p147 = scmp.ge.s32.totalorder %s146, 1
                %s151 = sphi %s137, %s137
                %s152 = sphi %s134, %s134
              $region43: #{cnn_forward.3} parent=39 // loop_header_branch
                %149 = sbr.rel (%p147) target = $region47
              $region44: #{cnn_forward.3} parent=39 // loop_body
                %v153 = vld [vmem:[%s151] sm:$0xf]
                %154 = vst [vmem:[%s152] sm:$0xf] %v153
                %v155 = vld [vmem:[%s151 + $0x4] sm:$0xf]
                %156 = vst [vmem:[%s152 + $0x4] sm:$0xf] %v155
                %v157 = vld [vmem:[%s151 + $0x8] sm:$0xf]
                %158 = vst [vmem:[%s152 + $0x8] sm:$0xf] %v157
                %v159 = vld [vmem:[%s151 + $0xc] sm:$0xf]
                %160 = vst [vmem:[%s152 + $0xc] sm:$0xf] %v159
                %v161 = vld [vmem:[%s151 + $0x10] sm:$0xf]
                %162 = vst [vmem:[%s152 + $0x10] sm:$0xf] %v161
                %v163 = vld [vmem:[%s151 + $0x14] sm:$0xf]
                %164 = vst [vmem:[%s152 + $0x14] sm:$0xf] %v163
                %v165 = vld [vmem:[%s151 + $0x18] sm:$0xf]
                %166 = vst [vmem:[%s152 + $0x18] sm:$0xf] %v165
                %v167 = vld [vmem:[%s151 + $0x1c] sm:$0xf]
                %168 = vst [vmem:[%s152 + $0x1c] sm:$0xf] %v167
                %v169 = vld [vmem:[%s151 + $0x20] sm:$0xf]
                %170 = vst [vmem:[%s152 + $0x20] sm:$0xf] %v169
                %v171 = vld [vmem:[%s151 + $0x24] sm:$0xf]
                %172 = vst [vmem:[%s152 + $0x24] sm:$0xf] %v171
                %v173 = vld [vmem:[%s151 + $0x28] sm:$0xf]
                %174 = vst [vmem:[%s152 + $0x28] sm:$0xf] %v173
                %v175 = vld [vmem:[%s151 + $0x2c] sm:$0xf]
                %176 = vst [vmem:[%s152 + $0x2c] sm:$0xf] %v175
                %v177 = vld [vmem:[%s151 + $0x30] sm:$0xf]
                %178 = vst [vmem:[%s152 + $0x30] sm:$0xf] %v177
                %v179 = vld [vmem:[%s151 + $0x34] sm:$0xf]
                %180 = vst [vmem:[%s152 + $0x34] sm:$0xf] %v179
                %v181 = vld [vmem:[%s151 + $0x38] sm:$0xf]
                %182 = vst [vmem:[%s152 + $0x38] sm:$0xf] %v181
                %v183 = vld [vmem:[%s151 + $0x3c] sm:$0xf]
                %184 = vst [vmem:[%s152 + $0x3c] sm:$0xf] %v183
                %v185 = vld [vmem:[%s151 + $0x40] sm:$0xf]
                %186 = vst [vmem:[%s152 + $0x40] sm:$0xf] %v185
                %v187 = vld [vmem:[%s151 + $0x44] sm:$0xf]
                %188 = vst [vmem:[%s152 + $0x44] sm:$0xf] %v187
                %v189 = vld [vmem:[%s151 + $0x48] sm:$0xf]
                %190 = vst [vmem:[%s152 + $0x48] sm:$0xf] %v189
                %v191 = vld [vmem:[%s151 + $0x4c] sm:$0xf]
                %192 = vst [vmem:[%s152 + $0x4c] sm:$0xf] %v191
                %v193 = vld [vmem:[%s151 + $0x50] sm:$0xf]
                %194 = vst [vmem:[%s152 + $0x50] sm:$0xf] %v193
                %v195 = vld [vmem:[%s151 + $0x54] sm:$0xf]
                %196 = vst [vmem:[%s152 + $0x54] sm:$0xf] %v195
                %v197 = vld [vmem:[%s151 + $0x58] sm:$0xf]
                %198 = vst [vmem:[%s152 + $0x58] sm:$0xf] %v197
                %v199 = vld [vmem:[%s151 + $0x5c] sm:$0xf]
                %200 = vst [vmem:[%s152 + $0x5c] sm:$0xf] %v199
                %v201 = vld [vmem:[%s151 + $0x60] sm:$0xf]
                %202 = vst [vmem:[%s152 + $0x60] sm:$0xf] %v201
                %v203 = vld [vmem:[%s151 + $0x64] sm:$0xf]
                %204 = vst [vmem:[%s152 + $0x64] sm:$0xf] %v203
                %v205 = vld [vmem:[%s151 + $0xd0] sm:$0xf]
                %206 = vst [vmem:[%s152 + $0x68] sm:$0xf] %v205
                %v207 = vld [vmem:[%s151 + $0xd4] sm:$0xf]
                %208 = vst [vmem:[%s152 + $0x6c] sm:$0xf] %v207
                %v209 = vld [vmem:[%s151 + $0xd8] sm:$0xf]
                %210 = vst [vmem:[%s152 + $0x70] sm:$0xf] %v209
                %v211 = vld [vmem:[%s151 + $0xdc] sm:$0xf]
                %212 = vst [vmem:[%s152 + $0x74] sm:$0xf] %v211
                %v213 = vld [vmem:[%s151 + $0xe0] sm:$0xf]
                %214 = vst [vmem:[%s152 + $0x78] sm:$0xf] %v213
                %v215 = vld [vmem:[%s151 + $0xe4] sm:$0xf]
                %216 = vst [vmem:[%s152 + $0x7c] sm:$0xf] %v215
                %v217 = vld [vmem:[%s151 + $0xe8] sm:$0xf]
                %218 = vst [vmem:[%s152 + $0x80] sm:$0xf] %v217
                %v219 = vld [vmem:[%s151 + $0xec] sm:$0xf]
                %220 = vst [vmem:[%s152 + $0x84] sm:$0xf] %v219
                %v221 = vld [vmem:[%s151 + $0xf0] sm:$0xf]
                %222 = vst [vmem:[%s152 + $0x88] sm:$0xf] %v221
                %v223 = vld [vmem:[%s151 + $0xf4] sm:$0xf]
                %224 = vst [vmem:[%s152 + $0x8c] sm:$0xf] %v223
                %v225 = vld [vmem:[%s151 + $0xf8] sm:$0xf]
                %226 = vst [vmem:[%s152 + $0x90] sm:$0xf] %v225
                %v227 = vld [vmem:[%s151 + $0xfc] sm:$0xf]
                %228 = vst [vmem:[%s152 + $0x94] sm:$0xf] %v227
                %v229 = vld [vmem:[%s151 + $0x100] sm:$0xf]
                %230 = vst [vmem:[%s152 + $0x98] sm:$0xf] %v229
                %v231 = vld [vmem:[%s151 + $0x104] sm:$0xf]
                %232 = vst [vmem:[%s152 + $0x9c] sm:$0xf] %v231
                %v233 = vld [vmem:[%s151 + $0x108] sm:$0xf]
                %234 = vst [vmem:[%s152 + $0xa0] sm:$0xf] %v233
                %v235 = vld [vmem:[%s151 + $0x10c] sm:$0xf]
                %236 = vst [vmem:[%s152 + $0xa4] sm:$0xf] %v235
                %v237 = vld [vmem:[%s151 + $0x110] sm:$0xf]
                %238 = vst [vmem:[%s152 + $0xa8] sm:$0xf] %v237
                %v239 = vld [vmem:[%s151 + $0x114] sm:$0xf]
                %240 = vst [vmem:[%s152 + $0xac] sm:$0xf] %v239
                %v241 = vld [vmem:[%s151 + $0x118] sm:$0xf]
                %242 = vst [vmem:[%s152 + $0xb0] sm:$0xf] %v241
                %v243 = vld [vmem:[%s151 + $0x11c] sm:$0xf]
                %244 = vst [vmem:[%s152 + $0xb4] sm:$0xf] %v243
                %v245 = vld [vmem:[%s151 + $0x120] sm:$0xf]
                %246 = vst [vmem:[%s152 + $0xb8] sm:$0xf] %v245
                %v247 = vld [vmem:[%s151 + $0x124] sm:$0xf]
                %248 = vst [vmem:[%s152 + $0xbc] sm:$0xf] %v247
                %v249 = vld [vmem:[%s151 + $0x128] sm:$0xf]
                %250 = vst [vmem:[%s152 + $0xc0] sm:$0xf] %v249
                %v251 = vld [vmem:[%s151 + $0x12c] sm:$0xf]
                %252 = vst [vmem:[%s152 + $0xc4] sm:$0xf] %v251
                %v253 = vld [vmem:[%s151 + $0x130] sm:$0xf]
                %254 = vst [vmem:[%s152 + $0xc8] sm:$0xf] %v253
                %v255 = vld [vmem:[%s151 + $0x134] sm:$0xf]
                %256 = vst [vmem:[%s152 + $0xcc] sm:$0xf] %v255
                %v257 = vld [vmem:[%s151 + $0x1a0] sm:$0xf]
                %258 = vst [vmem:[%s152 + $0xd0] sm:$0xf] %v257
                %v259 = vld [vmem:[%s151 + $0x1a4] sm:$0xf]
                %260 = vst [vmem:[%s152 + $0xd4] sm:$0xf] %v259
                %v261 = vld [vmem:[%s151 + $0x1a8] sm:$0xf]
                %262 = vst [vmem:[%s152 + $0xd8] sm:$0xf] %v261
                %v263 = vld [vmem:[%s151 + $0x1ac] sm:$0xf]
                %264 = vst [vmem:[%s152 + $0xdc] sm:$0xf] %v263
                %v265 = vld [vmem:[%s151 + $0x1b0] sm:$0xf]
                %266 = vst [vmem:[%s152 + $0xe0] sm:$0xf] %v265
                %v267 = vld [vmem:[%s151 + $0x1b4] sm:$0xf]
                %268 = vst [vmem:[%s152 + $0xe4] sm:$0xf] %v267
                %v269 = vld [vmem:[%s151 + $0x1b8] sm:$0xf]
                %270 = vst [vmem:[%s152 + $0xe8] sm:$0xf] %v269
                %v271 = vld [vmem:[%s151 + $0x1bc] sm:$0xf]
                %272 = vst [vmem:[%s152 + $0xec] sm:$0xf] %v271
                %v273 = vld [vmem:[%s151 + $0x1c0] sm:$0xf]
                %274 = vst [vmem:[%s152 + $0xf0] sm:$0xf] %v273
                %v275 = vld [vmem:[%s151 + $0x1c4] sm:$0xf]
                %276 = vst [vmem:[%s152 + $0xf4] sm:$0xf] %v275
                %v277 = vld [vmem:[%s151 + $0x1c8] sm:$0xf]
                %278 = vst [vmem:[%s152 + $0xf8] sm:$0xf] %v277
                %v279 = vld [vmem:[%s151 + $0x1cc] sm:$0xf]
                %280 = vst [vmem:[%s152 + $0xfc] sm:$0xf] %v279
                %v281 = vld [vmem:[%s151 + $0x1d0] sm:$0xf]
                %282 = vst [vmem:[%s152 + $0x100] sm:$0xf] %v281
                %v283 = vld [vmem:[%s151 + $0x1d4] sm:$0xf]
                %284 = vst [vmem:[%s152 + $0x104] sm:$0xf] %v283
                %v285 = vld [vmem:[%s151 + $0x1d8] sm:$0xf]
                %286 = vst [vmem:[%s152 + $0x108] sm:$0xf] %v285
                %v287 = vld [vmem:[%s151 + $0x1dc] sm:$0xf]
                %288 = vst [vmem:[%s152 + $0x10c] sm:$0xf] %v287
                %v289 = vld [vmem:[%s151 + $0x1e0] sm:$0xf]
                %290 = vst [vmem:[%s152 + $0x110] sm:$0xf] %v289
                %v291 = vld [vmem:[%s151 + $0x1e4] sm:$0xf]
                %292 = vst [vmem:[%s152 + $0x114] sm:$0xf] %v291
                %v293 = vld [vmem:[%s151 + $0x1e8] sm:$0xf]
                %294 = vst [vmem:[%s152 + $0x118] sm:$0xf] %v293
                %v295 = vld [vmem:[%s151 + $0x1ec] sm:$0xf]
                %296 = vst [vmem:[%s152 + $0x11c] sm:$0xf] %v295
                %v297 = vld [vmem:[%s151 + $0x1f0] sm:$0xf]
                %298 = vst [vmem:[%s152 + $0x120] sm:$0xf] %v297
                %v299 = vld [vmem:[%s151 + $0x1f4] sm:$0xf]
                %300 = vst [vmem:[%s152 + $0x124] sm:$0xf] %v299
                %v301 = vld [vmem:[%s151 + $0x1f8] sm:$0xf]
                %302 = vst [vmem:[%s152 + $0x128] sm:$0xf] %v301
                %v303 = vld [vmem:[%s151 + $0x1fc] sm:$0xf]
                %304 = vst [vmem:[%s152 + $0x12c] sm:$0xf] %v303
                %v305 = vld [vmem:[%s151 + $0x200] sm:$0xf]
                %306 = vst [vmem:[%s152 + $0x130] sm:$0xf] %v305
                %v307 = vld [vmem:[%s151 + $0x204] sm:$0xf]
                %308 = vst [vmem:[%s152 + $0x134] sm:$0xf] %v307
                %v309 = vld [vmem:[%s151 + $0x270] sm:$0xf]
                %310 = vst [vmem:[%s152 + $0x138] sm:$0xf] %v309
                %v311 = vld [vmem:[%s151 + $0x274] sm:$0xf]
                %312 = vst [vmem:[%s152 + $0x13c] sm:$0xf] %v311
                %v313 = vld [vmem:[%s151 + $0x278] sm:$0xf]
                %314 = vst [vmem:[%s152 + $0x140] sm:$0xf] %v313
                %v315 = vld [vmem:[%s151 + $0x27c] sm:$0xf]
                %316 = vst [vmem:[%s152 + $0x144] sm:$0xf] %v315
                %v317 = vld [vmem:[%s151 + $0x280] sm:$0xf]
                %318 = vst [vmem:[%s152 + $0x148] sm:$0xf] %v317
                %v319 = vld [vmem:[%s151 + $0x284] sm:$0xf]
                %320 = vst [vmem:[%s152 + $0x14c] sm:$0xf] %v319
                %v321 = vld [vmem:[%s151 + $0x288] sm:$0xf]
                %322 = vst [vmem:[%s152 + $0x150] sm:$0xf] %v321
                %v323 = vld [vmem:[%s151 + $0x28c] sm:$0xf]
                %324 = vst [vmem:[%s152 + $0x154] sm:$0xf] %v323
                %v325 = vld [vmem:[%s151 + $0x290] sm:$0xf]
                %326 = vst [vmem:[%s152 + $0x158] sm:$0xf] %v325
                %v327 = vld [vmem:[%s151 + $0x294] sm:$0xf]
                %328 = vst [vmem:[%s152 + $0x15c] sm:$0xf] %v327
                %v329 = vld [vmem:[%s151 + $0x298] sm:$0xf]
                %330 = vst [vmem:[%s152 + $0x160] sm:$0xf] %v329
                %v331 = vld [vmem:[%s151 + $0x29c] sm:$0xf]
                %332 = vst [vmem:[%s152 + $0x164] sm:$0xf] %v331
                %v333 = vld [vmem:[%s151 + $0x2a0] sm:$0xf]
                %334 = vst [vmem:[%s152 + $0x168] sm:$0xf] %v333
                %v335 = vld [vmem:[%s151 + $0x2a4] sm:$0xf]
                %336 = vst [vmem:[%s152 + $0x16c] sm:$0xf] %v335
                %v337 = vld [vmem:[%s151 + $0x2a8] sm:$0xf]
                %338 = vst [vmem:[%s152 + $0x170] sm:$0xf] %v337
                %v339 = vld [vmem:[%s151 + $0x2ac] sm:$0xf]
                %340 = vst [vmem:[%s152 + $0x174] sm:$0xf] %v339
                %v341 = vld [vmem:[%s151 + $0x2b0] sm:$0xf]
                %342 = vst [vmem:[%s152 + $0x178] sm:$0xf] %v341
                %v343 = vld [vmem:[%s151 + $0x2b4] sm:$0xf]
                %344 = vst [vmem:[%s152 + $0x17c] sm:$0xf] %v343
                %v345 = vld [vmem:[%s151 + $0x2b8] sm:$0xf]
                %346 = vst [vmem:[%s152 + $0x180] sm:$0xf] %v345
                %v347 = vld [vmem:[%s151 + $0x2bc] sm:$0xf]
                %348 = vst [vmem:[%s152 + $0x184] sm:$0xf] %v347
                %v349 = vld [vmem:[%s151 + $0x2c0] sm:$0xf]
                %350 = vst [vmem:[%s152 + $0x188] sm:$0xf] %v349
                %v351 = vld [vmem:[%s151 + $0x2c4] sm:$0xf]
                %352 = vst [vmem:[%s152 + $0x18c] sm:$0xf] %v351
                %v353 = vld [vmem:[%s151 + $0x2c8] sm:$0xf]
                %354 = vst [vmem:[%s152 + $0x190] sm:$0xf] %v353
                %v355 = vld [vmem:[%s151 + $0x2cc] sm:$0xf]
                %356 = vst [vmem:[%s152 + $0x194] sm:$0xf] %v355
                %v357 = vld [vmem:[%s151 + $0x2d0] sm:$0xf]
                %358 = vst [vmem:[%s152 + $0x198] sm:$0xf] %v357
                %v359 = vld [vmem:[%s151 + $0x2d4] sm:$0xf]
                %360 = vst [vmem:[%s152 + $0x19c] sm:$0xf] %v359
              $region45: #{cnn_forward.3} parent=39 // loop_footer
                %s150 = sadd.s32 1, %s146
              $region46: #{cnn_forward.3} parent=39 // loop_footer_branch
                %145 = sbr.rel target = $region42
              $region47: #{cnn_forward.3} parent=39 // loop_exit
                _
            $region40: #{cnn_forward.3} parent=31 // pred_fallthru
              _
          $region32: #{cnn_forward.3} parent=27 // pred_fallthru
            _
          %588 = vnop
        $region28: #{cnn_forward.3} parent=23 // pred_fallthru
          _
      $region24: #{cnn_forward.3} parent=5 // pred_fallthru
        _
      %p589 = scmp.le.s32.totalorder 1, %s9
      %p590 = scmp.lt.s32.totalorder %s9, 3
      %p591 = pnand %p589, %p590
      %p592 = pneg %p591
      // Predicated region
      $region66: #{cnn_forward.3} parent=5 // pred_check
        _
      $region67: #{cnn_forward.3} parent=5 // pred_check_branch
        %594 = sbr.rel (%p591) target = $region69
      $region68: #{cnn_forward.3} parent=5 // pred_region
        %s595 = ssub.s32 %s9, 1
        %s596 = sand.u32 %s22, 1
        %s597 = sand.u32 %s22, 1
        %s598 = smul.addr %s597, 416
        %s599 = scalar_lea.vmem [#allocation2], %s598
        // Predicated region
        $region70: #{cnn_forward.3} parent=68 // pred_check
          %p600 = pneg %p35
        $region71: #{cnn_forward.3} parent=68 // pred_check_branch
          %602 = sbr.rel (%p600) target = $region73
        $region72: #{cnn_forward.3} parent=68 // pred_region
          _
        $region73: #{cnn_forward.3} parent=68 // pred_fallthru
          _
        %s603 = sand.u32 %s22, 1
        %s604 = sand.u32 %s22, 1
        %s605 = smul.addr %s604, 416
        %s606 = scalar_lea.vmem [#allocation2], %s605
        %p607 = pneg %p35
        %p608 = pneg %p32
        %p609 = pneg %p56
        %p610 = pneg %p53
        %p611 = pneg %p77
        %p612 = pneg %p74
        %p613 = pneg %p103
        %p614 = pneg %p100
        %s615 = smul.u32 26, %s14
        %p616 = scmp.lt.s32.totalorder %s615, 51
        %s617 = scalar_select %p616, %s615, 51
        %s618 = smul.addr %s617, 4
        %s619 = scalar_lea.vmem %s3, %s618
        %s620 = smul.u32 26, %s14
        %s621 = smul.u32 26, %s14
        %p622 = scmp.lt.s32.totalorder %s621, 51
        %s623 = scalar_select %p622, %s621, 51
        %s624 = smul.addr %s623, 4
        %s625 = scalar_lea.vmem %s3, %s624
        %s626 = smul.u32 26, %s14
        %v628 = vld [vmem:[%s1] sm:$0xf]
        %v629 = vld [vmem:[%s1 + $0x4] sm:$0xf]
        %v630 = vld [vmem:[%s1 + $0x8] sm:$0xf]
        %v631 = vld [vmem:[%s1 + $0xc] sm:$0xf]
        %v632 = vld [vmem:[%s599] sm:$0xf]
        %v633 = vld [vmem:[%s599 + $0x4] sm:$0xf]
        %v634 = vld [vmem:[%s599 + $0x8] sm:$0xf]
        %v635 = vld [vmem:[%s599 + $0xc] sm:$0xf]
        %v636 = vld [vmem:[%s599 + $0x10] sm:$0xf]
        %v637 = vld [vmem:[%s599 + $0x14] sm:$0xf]
        %v638 = vld [vmem:[%s599 + $0x18] sm:$0xf]
        %v639 = vld [vmem:[%s599 + $0x1c] sm:$0xf]
        %v640 = vld [vmem:[%s599 + $0x20] sm:$0xf]
        %v641 = vld [vmem:[%s599 + $0x24] sm:$0xf]
        %v642 = vld [vmem:[%s599 + $0x28] sm:$0xf]
        %v643 = vld [vmem:[%s599 + $0x2c] sm:$0xf]
        %v644 = vld [vmem:[%s599 + $0x30] sm:$0xf]
        %v645 = vld [vmem:[%s599 + $0x34] sm:$0xf]
        %v646 = vld [vmem:[%s599 + $0x38] sm:$0xf]
        %v647 = vld [vmem:[%s599 + $0x3c] sm:$0xf]
        %v648 = vld [vmem:[%s599 + $0x40] sm:$0xf]
        %v649 = vld [vmem:[%s599 + $0x44] sm:$0xf]
        %v650 = vld [vmem:[%s599 + $0x48] sm:$0xf]
        %v651 = vld [vmem:[%s599 + $0x4c] sm:$0xf]
        %v652 = vld [vmem:[%s599 + $0x50] sm:$0xf]
        %v653 = vld [vmem:[%s599 + $0x54] sm:$0xf]
        %v654 = vld [vmem:[%s599 + $0x58] sm:$0xf]
        %v655 = vld [vmem:[%s599 + $0x5c] sm:$0xf]
        %v656 = vld [vmem:[%s599 + $0x60] sm:$0xf]
        %v657 = vld [vmem:[%s599 + $0x64] sm:$0xf]
        %v684 = vunpack.c.l.b16 %v632
        %v685 = vunpack.c.l.b16 %v633
        %v686 = vunpack.c.l.b16 %v634
        %v687 = vunpack.c.l.b16 %v635
        %v688 = vunpack.c.l.b16 %v636
        %v689 = vunpack.c.l.b16 %v637
        %v690 = vunpack.c.l.b16 %v638
        %v691 = vunpack.c.l.b16 %v639
        %v692 = vunpack.c.l.b16 %v640
        %v693 = vunpack.c.l.b16 %v641
        %v694 = vunpack.c.l.b16 %v642
        %v695 = vunpack.c.l.b16 %v643
        %v696 = vunpack.c.l.b16 %v644
        %v697 = vunpack.c.l.b16 %v645
        %v698 = vunpack.c.l.b16 %v646
        %v699 = vunpack.c.l.b16 %v647
        %v700 = vunpack.c.l.b16 %v648
        %v701 = vunpack.c.l.b16 %v649
        %v702 = vunpack.c.l.b16 %v650
        %v703 = vunpack.c.l.b16 %v651
        %v704 = vunpack.c.l.b16 %v652
        %v705 = vunpack.c.l.b16 %v653
        %v706 = vunpack.c.l.b16 %v654
        %v707 = vunpack.c.l.b16 %v655
        %v708 = vunpack.c.l.b16 %v656
        %v709 = vunpack.c.l.b16 %v657
        %v710 = vpack.c.b16 %v685, %v684
        %v711 = vpack.c.b16 %v687, %v686
        %v712 = vpack.c.b16 %v689, %v688
        %v713 = vpack.c.b16 %v691, %v690
        %v714 = vpack.c.b16 %v693, %v692
        %v715 = vpack.c.b16 %v695, %v694
        %v716 = vpack.c.b16 %v697, %v696
        %v717 = vpack.c.b16 %v699, %v698
        %v718 = vpack.c.b16 %v701, %v700
        %v719 = vpack.c.b16 %v703, %v702
        %v720 = vpack.c.b16 %v705, %v704
        %v721 = vpack.c.b16 %v707, %v706
        %v722 = vpack.c.b16 %v709, %v708
        %v727 = vunpack.c.l.b16 %v628
        %v728 = vunpack.c.l.b16 %v629
        %v729 = vunpack.c.l.b16 %v630
        %v730 = vunpack.c.l.b16 %v631
        %v731 = vpack.c.b16 %v728, %v727
        %v732 = vpack.c.b16 %v730, %v729
        %vm735 = vcmask 261120
        %v737 = vsel %vm735, %v710, 0
        %v740 = vsel %vm735, %v711, 0
        %v743 = vsel %vm735, %v712, 0
        %v746 = vsel %vm735, %v713, 0
        %v749 = vsel %vm735, %v714, 0
        %v752 = vsel %vm735, %v715, 0
        %v755 = vsel %vm735, %v716, 0
        %v758 = vsel %vm735, %v717, 0
        %v761 = vsel %vm735, %v718, 0
        %v764 = vsel %vm735, %v719, 0
        %v767 = vsel %vm735, %v720, 0
        %v770 = vsel %vm735, %v721, 0
        %v773 = vsel %vm735, %v722, 0
        %775 = vmatprep.subr.bf16.mxu0 0
        %776 = vmatpush1.bf16.msra.mxu0 %v731
        %777 = vmatprep.subr.bf16.mxu0 0
        %778 = vmatpush1.bf16.msra.mxu0 %v732
        %779 = vmatprep.subr.bf16.mxu0 0
        %780 = vmatpush1.bf16.msra.mxu0 0
        %781 = vmatprep.subr.bf16.mxu0 0
        %782 = vmatpush1.bf16.msra.mxu0 0
        %783 = vmatprep.subr.bf16.mxu0 0
        %784 = vmatpush1.bf16.msra.mxu0 0
        %785 = vmatprep.subr.bf16.mxu0 0
        %786 = vmatpush1.bf16.msra.mxu0 0
        %787 = vmatprep.subr.bf16.mxu0 0
        %788 = vmatpush1.bf16.msra.mxu0 0
        %789 = vmatprep.subr.bf16.mxu0 0
        %790 = vmatpush1.bf16.msra.mxu0 0
        %791 = vmatprep.subr.bf16.mxu0 0
        %792 = vmatpush1.bf16.msra.mxu0 0
        %793 = vmatprep.subr.bf16.mxu0 0
        %794 = vmatpush1.bf16.msra.mxu0 0
        %795 = vmatprep.subr.bf16.mxu0 0
        %796 = vmatpush1.bf16.msra.mxu0 0
        %797 = vmatprep.subr.bf16.mxu0 0
        %798 = vmatpush1.bf16.msra.mxu0 0
        %799 = vmatprep.subr.bf16.mxu0 0
        %800 = vmatpush1.bf16.msra.mxu0 0
        %801 = vmatprep.subr.bf16.mxu0 0
        %802 = vmatpush1.bf16.msra.mxu0 0
        %803 = vmatprep.subr.bf16.mxu0 0
        %804 = vmatpush1.bf16.msra.mxu0 0
        %805 = vmatprep.subr.bf16.mxu0 0
        %806 = vmatpush1.bf16.msra.mxu0 0
        %807 = vmatprep.mubr.bf16.mxu0 0
        %808 = vmatmul.mubr.bf16.gmra.mrb[0].mxu0 %v737
        %v809 = vpop.f32.mrb[0].mxu0
        %v810 = vadd.f32 0.0, %v809
        %v811 = vpop.f32.mrb[0].mxu0
        %v812 = vpop.f32.mrb[0].mxu0
        %v813 = vadd.f32 0.0, %v812
        %v814 = vpop.f32.mrb[0].mxu0
        %815 = vmatprep.mubr.bf16.mxu0 0
        %816 = vmatmul.mubr.bf16.gmra.mrb[0].mxu0 %v740
        %v817 = vpop.f32.mrb[0].mxu0
        %v818 = vadd.f32 0.0, %v817
        %v819 = vpop.f32.mrb[0].mxu0
        %v820 = vpop.f32.mrb[0].mxu0
        %v821 = vadd.f32 0.0, %v820
        %v822 = vpop.f32.mrb[0].mxu0
        %823 = vmatprep.mubr.bf16.mxu0 0
        %824 = vmatmul.mubr.bf16.gmra.mrb[0].mxu0 %v743
        %v825 = vpop.f32.mrb[0].mxu0
        %v826 = vadd.f32 0.0, %v825
        %v827 = vpop.f32.mrb[0].mxu0
        %v828 = vpop.f32.mrb[0].mxu0
        %v829 = vadd.f32 0.0, %v828
        %v830 = vpop.f32.mrb[0].mxu0
        %831 = vmatprep.mubr.bf16.mxu0 0
        %832 = vmatmul.mubr.bf16.gmra.mrb[0].mxu0 %v746
        %v833 = vpop.f32.mrb[0].mxu0
        %v834 = vadd.f32 0.0, %v833
        %v835 = vpop.f32.mrb[0].mxu0
        %v836 = vpop.f32.mrb[0].mxu0
        %v837 = vadd.f32 0.0, %v836
        %v838 = vpop.f32.mrb[0].mxu0
        %839 = vmatprep.mubr.bf16.mxu0 0
        %840 = vmatmul.mubr.bf16.gmra.mrb[0].mxu0 %v749
        %v841 = vpop.f32.mrb[0].mxu0
        %v842 = vadd.f32 0.0, %v841
        %v843 = vpop.f32.mrb[0].mxu0
        %v844 = vpop.f32.mrb[0].mxu0
        %v845 = vadd.f32 0.0, %v844
        %v846 = vpop.f32.mrb[0].mxu0
        %847 = vmatprep.mubr.bf16.mxu0 0
        %848 = vmatmul.mubr.bf16.gmra.mrb[0].mxu0 %v752
        %v849 = vpop.f32.mrb[0].mxu0
        %v850 = vadd.f32 0.0, %v849
        %v851 = vpop.f32.mrb[0].mxu0
        %v852 = vpop.f32.mrb[0].mxu0
        %v853 = vadd.f32 0.0, %v852
        %v854 = vpop.f32.mrb[0].mxu0
        %855 = vmatprep.mubr.bf16.mxu0 0
        %856 = vmatmul.mubr.bf16.gmra.mrb[0].mxu0 %v755
        %v857 = vpop.f32.mrb[0].mxu0
        %v858 = vadd.f32 0.0, %v857
        %v859 = vpop.f32.mrb[0].mxu0
        %v860 = vpop.f32.mrb[0].mxu0
        %v861 = vadd.f32 0.0, %v860
        %v862 = vpop.f32.mrb[0].mxu0
        %863 = vmatprep.mubr.bf16.mxu0 0
        %864 = vmatmul.mubr.bf16.gmra.mrb[0].mxu0 %v758
        %v865 = vpop.f32.mrb[0].mxu0
        %v866 = vadd.f32 0.0, %v865
        %v867 = vpop.f32.mrb[0].mxu0
        %v868 = vpop.f32.mrb[0].mxu0
        %v869 = vadd.f32 0.0, %v868
        %v870 = vpop.f32.mrb[0].mxu0
        %871 = vmatprep.mubr.bf16.mxu0 0
        %872 = vmatmul.mubr.bf16.gmra.mrb[0].mxu0 %v761
        %v873 = vpop.f32.mrb[0].mxu0
        %v874 = vadd.f32 0.0, %v873
        %v875 = vpop.f32.mrb[0].mxu0
        %v876 = vpop.f32.mrb[0].mxu0
        %v877 = vadd.f32 0.0, %v876
        %v878 = vpop.f32.mrb[0].mxu0
        %879 = vmatprep.mubr.bf16.mxu0 0
        %880 = vmatmul.mubr.bf16.gmra.mrb[0].mxu0 %v764
        %v881 = vpop.f32.mrb[0].mxu0
        %v882 = vadd.f32 0.0, %v881
        %v883 = vpop.f32.mrb[0].mxu0
        %v884 = vpop.f32.mrb[0].mxu0
        %v885 = vadd.f32 0.0, %v884
        %v886 = vpop.f32.mrb[0].mxu0
        %887 = vmatprep.mubr.bf16.mxu0 0
        %888 = vmatmul.mubr.bf16.gmra.mrb[0].mxu0 %v767
        %v889 = vpop.f32.mrb[0].mxu0
        %v890 = vadd.f32 0.0, %v889
        %v891 = vpop.f32.mrb[0].mxu0
        %v892 = vpop.f32.mrb[0].mxu0
        %v893 = vadd.f32 0.0, %v892
        %v894 = vpop.f32.mrb[0].mxu0
        %895 = vmatprep.mubr.bf16.mxu0 0
        %896 = vmatmul.mubr.bf16.gmra.mrb[0].mxu0 %v770
        %v897 = vpop.f32.mrb[0].mxu0
        %v898 = vadd.f32 0.0, %v897
        %v899 = vpop.f32.mrb[0].mxu0
        %v900 = vpop.f32.mrb[0].mxu0
        %v901 = vadd.f32 0.0, %v900
        %v902 = vpop.f32.mrb[0].mxu0
        %903 = vmatprep.mubr.bf16.mxu0 0
        %904 = vmatmul.mubr.bf16.gmra.mrb[0].mxu0 %v773
        %v905 = vpop.f32.mrb[0].mxu0
        %v906 = vadd.f32 0.0, %v905
        %v907 = vpop.f32.mrb[0].mxu0
        %v908 = vpop.f32.mrb[0].mxu0
        %v909 = vadd.f32 0.0, %v908
        %v910 = vpop.f32.mrb[0].mxu0
        %911 = vdwg.mxu0
        %s912 = scalar_lea.vmem %s599, 104 [#allocation2]
        %v913 = vld [vmem:[%s912] sm:$0xf]
        %v914 = vld [vmem:[%s912 + $0x4] sm:$0xf]
        %v915 = vld [vmem:[%s912 + $0x8] sm:$0xf]
        %v916 = vld [vmem:[%s912 + $0xc] sm:$0xf]
        %v917 = vld [vmem:[%s912 + $0x10] sm:$0xf]
        %v918 = vld [vmem:[%s912 + $0x14] sm:$0xf]
        %v919 = vld [vmem:[%s912 + $0x18] sm:$0xf]
        %v920 = vld [vmem:[%s912 + $0x1c] sm:$0xf]
        %v921 = vld [vmem:[%s912 + $0x20] sm:$0xf]
        %v922 = vld [vmem:[%s912 + $0x24] sm:$0xf]
        %v923 = vld [vmem:[%s912 + $0x28] sm:$0xf]
        %v924 = vld [vmem:[%s912 + $0x2c] sm:$0xf]
        %v925 = vld [vmem:[%s912 + $0x30] sm:$0xf]
        %v926 = vld [vmem:[%s912 + $0x34] sm:$0xf]
        %v927 = vld [vmem:[%s912 + $0x38] sm:$0xf]
        %v928 = vld [vmem:[%s912 + $0x3c] sm:$0xf]
        %v929 = vld [vmem:[%s912 + $0x40] sm:$0xf]
        %v930 = vld [vmem:[%s912 + $0x44] sm:$0xf]
        %v931 = vld [vmem:[%s912 + $0x48] sm:$0xf]
        %v932 = vld [vmem:[%s912 + $0x4c] sm:$0xf]
        %v933 = vld [vmem:[%s912 + $0x50] sm:$0xf]
        %v934 = vld [vmem:[%s912 + $0x54] sm:$0xf]
        %v935 = vld [vmem:[%s912 + $0x58] sm:$0xf]
        %v936 = vld [vmem:[%s912 + $0x5c] sm:$0xf]
        %v937 = vld [vmem:[%s912 + $0x60] sm:$0xf]
        %v938 = vld [vmem:[%s912 + $0x64] sm:$0xf]
        %v965 = vunpack.c.l.b16 %v913
        %v966 = vunpack.c.l.b16 %v914
        %v967 = vunpack.c.l.b16 %v915
        %v968 = vunpack.c.l.b16 %v916
        %v969 = vunpack.c.l.b16 %v917
        %v970 = vunpack.c.l.b16 %v918
        %v971 = vunpack.c.l.b16 %v919
        %v972 = vunpack.c.l.b16 %v920
        %v973 = vunpack.c.l.b16 %v921
        %v974 = vunpack.c.l.b16 %v922
        %v975 = vunpack.c.l.b16 %v923
        %v976 = vunpack.c.l.b16 %v924
        %v977 = vunpack.c.l.b16 %v925
        %v978 = vunpack.c.l.b16 %v926
        %v979 = vunpack.c.l.b16 %v927
        %v980 = vunpack.c.l.b16 %v928
        %v981 = vunpack.c.l.b16 %v929
        %v982 = vunpack.c.l.b16 %v930
        %v983 = vunpack.c.l.b16 %v931
        %v984 = vunpack.c.l.b16 %v932
        %v985 = vunpack.c.l.b16 %v933
        %v986 = vunpack.c.l.b16 %v934
        %v987 = vunpack.c.l.b16 %v935
        %v988 = vunpack.c.l.b16 %v936
        %v989 = vunpack.c.l.b16 %v937
        %v990 = vunpack.c.l.b16 %v938
        %v991 = vpack.c.b16 %v966, %v965
        %v992 = vpack.c.b16 %v968, %v967
        %v993 = vpack.c.b16 %v970, %v969
        %v994 = vpack.c.b16 %v972, %v971
        %v995 = vpack.c.b16 %v974, %v973
        %v996 = vpack.c.b16 %v976, %v975
        %v997 = vpack.c.b16 %v978, %v977
        %v998 = vpack.c.b16 %v980, %v979
        %v999 = vpack.c.b16 %v982, %v981
        %v1000 = vpack.c.b16 %v984, %v983
        %v1001 = vpack.c.b16 %v986, %v985
        %v1002 = vpack.c.b16 %v988, %v987
        %v1003 = vpack.c.b16 %v990, %v989
        %v1005 = vsel %vm735, %v991, 0
        %v1008 = vsel %vm735, %v992, 0
        %v1011 = vsel %vm735, %v993, 0
        %v1014 = vsel %vm735, %v994, 0
        %v1017 = vsel %vm735, %v995, 0
        %v1020 = vsel %vm735, %v996, 0
        %v1023 = vsel %vm735, %v997, 0
        %v1026 = vsel %vm735, %v998, 0
        %v1029 = vsel %vm735, %v999, 0
        %v1032 = vsel %vm735, %v1000, 0
        %v1035 = vsel %vm735, %v1001, 0
        %v1038 = vsel %vm735, %v1002, 0
        %v1041 = vsel %vm735, %v1003, 0
        %1043 = vmatprep.subr.bf16.mxu0 0
        %1044 = vmatpush1.bf16.msra.mxu0 %v731
        %1045 = vmatprep.subr.bf16.mxu0 0
        %1046 = vmatpush1.bf16.msra.mxu0 %v732
        %1047 = vmatprep.subr.bf16.mxu0 0
        %1048 = vmatpush1.bf16.msra.mxu0 0
        %1049 = vmatprep.subr.bf16.mxu0 0
        %1050 = vmatpush1.bf16.msra.mxu0 0
        %1051 = vmatprep.subr.bf16.mxu0 0
        %1052 = vmatpush1.bf16.msra.mxu0 0
        %1053 = vmatprep.subr.bf16.mxu0 0
        %1054 = vmatpush1.bf16.msra.mxu0 0
        %1055 = vmatprep.subr.bf16.mxu0 0
        %1056 = vmatpush1.bf16.msra.mxu0 0
        %1057 = vmatprep.subr.bf16.mxu0 0
        %1058 = vmatpush1.bf16.msra.mxu0 0
        %1059 = vmatprep.subr.bf16.mxu0 0
        %1060 = vmatpush1.bf16.msra.mxu0 0
        %1061 = vmatprep.subr.bf16.mxu0 0
        %1062 = vmatpush1.bf16.msra.mxu0 0
        %1063 = vmatprep.subr.bf16.mxu0 0
        %1064 = vmatpush1.bf16.msra.mxu0 0
        %1065 = vmatprep.subr.bf16.mxu0 0
        %1066 = vmatpush1.bf16.msra.mxu0 0
        %1067 = vmatprep.subr.bf16.mxu0 0
        %1068 = vmatpush1.bf16.msra.mxu0 0
        %1069 = vmatprep.subr.bf16.mxu0 0
        %1070 = vmatpush1.bf16.msra.mxu0 0
        %1071 = vmatprep.subr.bf16.mxu0 0
        %1072 = vmatpush1.bf16.msra.mxu0 0
        %1073 = vmatprep.subr.bf16.mxu0 0
        %1074 = vmatpush1.bf16.msra.mxu0 0
        %1075 = vmatprep.mubr.bf16.mxu0 0
        %1076 = vmatmul.mubr.bf16.gmra.mrb[0].mxu0 %v1005
        %v1077 = vpop.f32.mrb[0].mxu0
        %v1078 = vadd.f32 0.0, %v1077
        %v1079 = vpop.f32.mrb[0].mxu0
        %v1080 = vpop.f32.mrb[0].mxu0
        %v1081 = vadd.f32 0.0, %v1080
        %v1082 = vpop.f32.mrb[0].mxu0
        %1083 = vmatprep.mubr.bf16.mxu0 0
        %1084 = vmatmul.mubr.bf16.gmra.mrb[0].mxu0 %v1008
        %v1085 = vpop.f32.mrb[0].mxu0
        %v1086 = vadd.f32 0.0, %v1085
        %v1087 = vpop.f32.mrb[0].mxu0
        %v1088 = vpop.f32.mrb[0].mxu0
        %v1089 = vadd.f32 0.0, %v1088
        %v1090 = vpop.f32.mrb[0].mxu0
        %1091 = vmatprep.mubr.bf16.mxu0 0
        %1092 = vmatmul.mubr.bf16.gmra.mrb[0].mxu0 %v1011
        %v1093 = vpop.f32.mrb[0].mxu0
        %v1094 = vadd.f32 0.0, %v1093
        %v1095 = vpop.f32.mrb[0].mxu0
        %v1096 = vpop.f32.mrb[0].mxu0
        %v1097 = vadd.f32 0.0, %v1096
        %v1098 = vpop.f32.mrb[0].mxu0
        %1099 = vmatprep.mubr.bf16.mxu0 0
        %1100 = vmatmul.mubr.bf16.gmra.mrb[0].mxu0 %v1014
        %v1101 = vpop.f32.mrb[0].mxu0
        %v1102 = vadd.f32 0.0, %v1101
        %v1103 = vpop.f32.mrb[0].mxu0
        %v1104 = vpop.f32.mrb[0].mxu0
        %v1105 = vadd.f32 0.0, %v1104
        %v1106 = vpop.f32.mrb[0].mxu0
        %1107 = vmatprep.mubr.bf16.mxu0 0
        %1108 = vmatmul.mubr.bf16.gmra.mrb[0].mxu0 %v1017
        %v1109 = vpop.f32.mrb[0].mxu0
        %v1110 = vadd.f32 0.0, %v1109
        %v1111 = vpop.f32.mrb[0].mxu0
        %v1112 = vpop.f32.mrb[0].mxu0
        %v1113 = vadd.f32 0.0, %v1112
        %v1114 = vpop.f32.mrb[0].mxu0
        %1115 = vmatprep.mubr.bf16.mxu0 0
        %1116 = vmatmul.mubr.bf16.gmra.mrb[0].mxu0 %v1020
        %v1117 = vpop.f32.mrb[0].mxu0
        %v1118 = vadd.f32 0.0, %v1117
        %v1119 = vpop.f32.mrb[0].mxu0
        %v1120 = vpop.f32.mrb[0].mxu0
        %v1121 = vadd.f32 0.0, %v1120
        %v1122 = vpop.f32.mrb[0].mxu0
        %1123 = vmatprep.mubr.bf16.mxu0 0
        %1124 = vmatmul.mubr.bf16.gmra.mrb[0].mxu0 %v1023
        %v1125 = vpop.f32.mrb[0].mxu0
        %v1126 = vadd.f32 0.0, %v1125
        %v1127 = vpop.f32.mrb[0].mxu0
        %v1128 = vpop.f32.mrb[0].mxu0
        %v1129 = vadd.f32 0.0, %v1128
        %v1130 = vpop.f32.mrb[0].mxu0
        %1131 = vmatprep.mubr.bf16.mxu0 0
        %1132 = vmatmul.mubr.bf16.gmra.mrb[0].mxu0 %v1026
        %v1133 = vpop.f32.mrb[0].mxu0
        %v1134 = vadd.f32 0.0, %v1133
        %v1135 = vpop.f32.mrb[0].mxu0
        %v1136 = vpop.f32.mrb[0].mxu0
        %v1137 = vadd.f32 0.0, %v1136
        %v1138 = vpop.f32.mrb[0].mxu0
        %1139 = vmatprep.mubr.bf16.mxu0 0
        %1140 = vmatmul.mubr.bf16.gmra.mrb[0].mxu0 %v1029
        %v1141 = vpop.f32.mrb[0].mxu0
        %v1142 = vadd.f32 0.0, %v1141
        %v1143 = vpop.f32.mrb[0].mxu0
        %v1144 = vpop.f32.mrb[0].mxu0
        %v1145 = vadd.f32 0.0, %v1144
        %v1146 = vpop.f32.mrb[0].mxu0
        %1147 = vmatprep.mubr.bf16.mxu0 0
        %1148 = vmatmul.mubr.bf16.gmra.mrb[0].mxu0 %v1032
        %v1149 = vpop.f32.mrb[0].mxu0
        %v1150 = vadd.f32 0.0, %v1149
        %v1151 = vpop.f32.mrb[0].mxu0
        %v1152 = vpop.f32.mrb[0].mxu0
        %v1153 = vadd.f32 0.0, %v1152
        %v1154 = vpop.f32.mrb[0].mxu0
        %1155 = vmatprep.mubr.bf16.mxu0 0
        %1156 = vmatmul.mubr.bf16.gmra.mrb[0].mxu0 %v1035
        %v1157 = vpop.f32.mrb[0].mxu0
        %v1158 = vadd.f32 0.0, %v1157
        %v1159 = vpop.f32.mrb[0].mxu0
        %v1160 = vpop.f32.mrb[0].mxu0
        %v1161 = vadd.f32 0.0, %v1160
        %v1162 = vpop.f32.mrb[0].mxu0
        %1163 = vmatprep.mubr.bf16.mxu0 0
        %1164 = vmatmul.mubr.bf16.gmra.mrb[0].mxu0 %v1038
        %v1165 = vpop.f32.mrb[0].mxu0
        %v1166 = vadd.f32 0.0, %v1165
        %v1167 = vpop.f32.mrb[0].mxu0
        %v1168 = vpop.f32.mrb[0].mxu0
        %v1169 = vadd.f32 0.0, %v1168
        %v1170 = vpop.f32.mrb[0].mxu0
        %1171 = vmatprep.mubr.bf16.mxu0 0
        %1172 = vmatmul.mubr.bf16.gmra.mrb[0].mxu0 %v1041
        %v1173 = vpop.f32.mrb[0].mxu0
        %v1174 = vadd.f32 0.0, %v1173
        %v1175 = vpop.f32.mrb[0].mxu0
        %v1176 = vpop.f32.mrb[0].mxu0
        %v1177 = vadd.f32 0.0, %v1176
        %v1178 = vpop.f32.mrb[0].mxu0
        %1179 = vdwg.mxu0
        %v1180 = vmax.f32 %v810, %v1078
        %v1181 = vmax.f32 %v813, %v1081
        %v1182 = vmax.f32 %v818, %v1086
        %v1183 = vmax.f32 %v821, %v1089
        %v1184 = vmax.f32 %v826, %v1094
        %v1185 = vmax.f32 %v829, %v1097
        %v1186 = vmax.f32 %v834, %v1102
        %v1187 = vmax.f32 %v837, %v1105
        %v1188 = vmax.f32 %v842, %v1110
        %v1189 = vmax.f32 %v845, %v1113
        %v1190 = vmax.f32 %v850, %v1118
        %v1191 = vmax.f32 %v853, %v1121
        %v1192 = vmax.f32 %v858, %v1126
        %v1193 = vmax.f32 %v861, %v1129
        %v1194 = vmax.f32 %v866, %v1134
        %v1195 = vmax.f32 %v869, %v1137
        %v1196 = vmax.f32 %v874, %v1142
        %v1197 = vmax.f32 %v877, %v1145
        %v1198 = vmax.f32 %v882, %v1150
        %v1199 = vmax.f32 %v885, %v1153
        %v1200 = vmax.f32 %v890, %v1158
        %v1201 = vmax.f32 %v893, %v1161
        %v1202 = vmax.f32 %v898, %v1166
        %v1203 = vmax.f32 %v901, %v1169
        %v1204 = vmax.f32 %v906, %v1174
        %v1205 = vmax.f32 %v909, %v1177
        %s1206 = scalar_lea.vmem %s599, 208 [#allocation2]
        %v1207 = vld [vmem:[%s1206] sm:$0xf]
        %v1208 = vld [vmem:[%s1206 + $0x4] sm:$0xf]
        %v1209 = vld [vmem:[%s1206 + $0x8] sm:$0xf]
        %v1210 = vld [vmem:[%s1206 + $0xc] sm:$0xf]
        %v1211 = vld [vmem:[%s1206 + $0x10] sm:$0xf]
        %v1212 = vld [vmem:[%s1206 + $0x14] sm:$0xf]
        %v1213 = vld [vmem:[%s1206 + $0x18] sm:$0xf]
        %v1214 = vld [vmem:[%s1206 + $0x1c] sm:$0xf]
        %v1215 = vld [vmem:[%s1206 + $0x20] sm:$0xf]
        %v1216 = vld [vmem:[%s1206 + $0x24] sm:$0xf]
        %v1217 = vld [vmem:[%s1206 + $0x28] sm:$0xf]
        %v1218 = vld [vmem:[%s1206 + $0x2c] sm:$0xf]
        %v1219 = vld [vmem:[%s1206 + $0x30] sm:$0xf]
        %v1220 = vld [vmem:[%s1206 + $0x34] sm:$0xf]
        %v1221 = vld [vmem:[%s1206 + $0x38] sm:$0xf]
        %v1222 = vld [vmem:[%s1206 + $0x3c] sm:$0xf]
        %v1223 = vld [vmem:[%s1206 + $0x40] sm:$0xf]
        %v1224 = vld [vmem:[%s1206 + $0x44] sm:$0xf]
        %v1225 = vld [vmem:[%s1206 + $0x48] sm:$0xf]
        %v1226 = vld [vmem:[%s1206 + $0x4c] sm:$0xf]
        %v1227 = vld [vmem:[%s1206 + $0x50] sm:$0xf]
        %v1228 = vld [vmem:[%s1206 + $0x54] sm:$0xf]
        %v1229 = vld [vmem:[%s1206 + $0x58] sm:$0xf]
        %v1230 = vld [vmem:[%s1206 + $0x5c] sm:$0xf]
        %v1231 = vld [vmem:[%s1206 + $0x60] sm:$0xf]
        %v1232 = vld [vmem:[%s1206 + $0x64] sm:$0xf]
        %v1259 = vunpack.c.l.b16 %v1207
        %v1260 = vunpack.c.l.b16 %v1208
        %v1261 = vunpack.c.l.b16 %v1209
        %v1262 = vunpack.c.l.b16 %v1210
        %v1263 = vunpack.c.l.b16 %v1211
        %v1264 = vunpack.c.l.b16 %v1212
        %v1265 = vunpack.c.l.b16 %v1213
        %v1266 = vunpack.c.l.b16 %v1214
        %v1267 = vunpack.c.l.b16 %v1215
        %v1268 = vunpack.c.l.b16 %v1216
        %v1269 = vunpack.c.l.b16 %v1217
        %v1270 = vunpack.c.l.b16 %v1218
        %v1271 = vunpack.c.l.b16 %v1219
        %v1272 = vunpack.c.l.b16 %v1220
        %v1273 = vunpack.c.l.b16 %v1221
        %v1274 = vunpack.c.l.b16 %v1222
        %v1275 = vunpack.c.l.b16 %v1223
        %v1276 = vunpack.c.l.b16 %v1224
        %v1277 = vunpack.c.l.b16 %v1225
        %v1278 = vunpack.c.l.b16 %v1226
        %v1279 = vunpack.c.l.b16 %v1227
        %v1280 = vunpack.c.l.b16 %v1228
        %v1281 = vunpack.c.l.b16 %v1229
        %v1282 = vunpack.c.l.b16 %v1230
        %v1283 = vunpack.c.l.b16 %v1231
        %v1284 = vunpack.c.l.b16 %v1232
        %v1285 = vpack.c.b16 %v1260, %v1259
        %v1286 = vpack.c.b16 %v1262, %v1261
        %v1287 = vpack.c.b16 %v1264, %v1263
        %v1288 = vpack.c.b16 %v1266, %v1265
        %v1289 = vpack.c.b16 %v1268, %v1267
        %v1290 = vpack.c.b16 %v1270, %v1269
        %v1291 = vpack.c.b16 %v1272, %v1271
        %v1292 = vpack.c.b16 %v1274, %v1273
        %v1293 = vpack.c.b16 %v1276, %v1275
        %v1294 = vpack.c.b16 %v1278, %v1277
        %v1295 = vpack.c.b16 %v1280, %v1279
        %v1296 = vpack.c.b16 %v1282, %v1281
        %v1297 = vpack.c.b16 %v1284, %v1283
        %v1299 = vsel %vm735, %v1285, 0
        %v1302 = vsel %vm735, %v1286, 0
        %v1305 = vsel %vm735, %v1287, 0
        %v1308 = vsel %vm735, %v1288, 0
        %v1311 = vsel %vm735, %v1289, 0
        %v1314 = vsel %vm735, %v1290, 0
        %v1317 = vsel %vm735, %v1291, 0
        %v1320 = vsel %vm735, %v1292, 0
        %v1323 = vsel %vm735, %v1293, 0
        %v1326 = vsel %vm735, %v1294, 0
        %v1329 = vsel %vm735, %v1295, 0
        %v1332 = vsel %vm735, %v1296, 0
        %v1335 = vsel %vm735, %v1297, 0
        %1337 = vmatprep.subr.bf16.mxu0 0
        %1338 = vmatpush1.bf16.msra.mxu0 %v731
        %1339 = vmatprep.subr.bf16.mxu0 0
        %1340 = vmatpush1.bf16.msra.mxu0 %v732
        %1341 = vmatprep.subr.bf16.mxu0 0
        %1342 = vmatpush1.bf16.msra.mxu0 0
        %1343 = vmatprep.subr.bf16.mxu0 0
        %1344 = vmatpush1.bf16.msra.mxu0 0
        %1345 = vmatprep.subr.bf16.mxu0 0
        %1346 = vmatpush1.bf16.msra.mxu0 0
        %1347 = vmatprep.subr.bf16.mxu0 0
        %1348 = vmatpush1.bf16.msra.mxu0 0
        %1349 = vmatprep.subr.bf16.mxu0 0
        %1350 = vmatpush1.bf16.msra.mxu0 0
        %1351 = vmatprep.subr.bf16.mxu0 0
        %1352 = vmatpush1.bf16.msra.mxu0 0
        %1353 = vmatprep.subr.bf16.mxu0 0
        %1354 = vmatpush1.bf16.msra.mxu0 0
        %1355 = vmatprep.subr.bf16.mxu0 0
        %1356 = vmatpush1.bf16.msra.mxu0 0
        %1357 = vmatprep.subr.bf16.mxu0 0
        %1358 = vmatpush1.bf16.msra.mxu0 0
        %1359 = vmatprep.subr.bf16.mxu0 0
        %1360 = vmatpush1.bf16.msra.mxu0 0
        %1361 = vmatprep.subr.bf16.mxu0 0
        %1362 = vmatpush1.bf16.msra.mxu0 0
        %1363 = vmatprep.subr.bf16.mxu0 0
        %1364 = vmatpush1.bf16.msra.mxu0 0
        %1365 = vmatprep.subr.bf16.mxu0 0
        %1366 = vmatpush1.bf16.msra.mxu0 0
        %1367 = vmatprep.subr.bf16.mxu0 0
        %1368 = vmatpush1.bf16.msra.mxu0 0
        %1369 = vmatprep.mubr.bf16.mxu0 0
        %1370 = vmatmul.mubr.bf16.gmra.mrb[0].mxu0 %v1299
        %v1371 = vpop.f32.mrb[0].mxu0
        %v1372 = vadd.f32 0.0, %v1371
        %v1373 = vpop.f32.mrb[0].mxu0
        %v1374 = vpop.f32.mrb[0].mxu0
        %v1375 = vadd.f32 0.0, %v1374
        %v1376 = vpop.f32.mrb[0].mxu0
        %1377 = vmatprep.mubr.bf16.mxu0 0
        %1378 = vmatmul.mubr.bf16.gmra.mrb[0].mxu0 %v1302
        %v1379 = vpop.f32.mrb[0].mxu0
        %v1380 = vadd.f32 0.0, %v1379
        %v1381 = vpop.f32.mrb[0].mxu0
        %v1382 = vpop.f32.mrb[0].mxu0
        %v1383 = vadd.f32 0.0, %v1382
        %v1384 = vpop.f32.mrb[0].mxu0
        %1385 = vmatprep.mubr.bf16.mxu0 0
        %1386 = vmatmul.mubr.bf16.gmra.mrb[0].mxu0 %v1305
        %v1387 = vpop.f32.mrb[0].mxu0
        %v1388 = vadd.f32 0.0, %v1387
        %v1389 = vpop.f32.mrb[0].mxu0
        %v1390 = vpop.f32.mrb[0].mxu0
        %v1391 = vadd.f32 0.0, %v1390
        %v1392 = vpop.f32.mrb[0].mxu0
        %1393 = vmatprep.mubr.bf16.mxu0 0
        %1394 = vmatmul.mubr.bf16.gmra.mrb[0].mxu0 %v1308
        %v1395 = vpop.f32.mrb[0].mxu0
        %v1396 = vadd.f32 0.0, %v1395
        %v1397 = vpop.f32.mrb[0].mxu0
        %v1398 = vpop.f32.mrb[0].mxu0
        %v1399 = vadd.f32 0.0, %v1398
        %v1400 = vpop.f32.mrb[0].mxu0
        %1401 = vmatprep.mubr.bf16.mxu0 0
        %1402 = vmatmul.mubr.bf16.gmra.mrb[0].mxu0 %v1311
        %v1403 = vpop.f32.mrb[0].mxu0
        %v1404 = vadd.f32 0.0, %v1403
        %v1405 = vpop.f32.mrb[0].mxu0
        %v1406 = vpop.f32.mrb[0].mxu0
        %v1407 = vadd.f32 0.0, %v1406
        %v1408 = vpop.f32.mrb[0].mxu0
        %1409 = vmatprep.mubr.bf16.mxu0 0
        %1410 = vmatmul.mubr.bf16.gmra.mrb[0].mxu0 %v1314
        %v1411 = vpop.f32.mrb[0].mxu0
        %v1412 = vadd.f32 0.0, %v1411
        %v1413 = vpop.f32.mrb[0].mxu0
        %v1414 = vpop.f32.mrb[0].mxu0
        %v1415 = vadd.f32 0.0, %v1414
        %v1416 = vpop.f32.mrb[0].mxu0
        %1417 = vmatprep.mubr.bf16.mxu0 0
        %1418 = vmatmul.mubr.bf16.gmra.mrb[0].mxu0 %v1317
        %v1419 = vpop.f32.mrb[0].mxu0
        %v1420 = vadd.f32 0.0, %v1419
        %v1421 = vpop.f32.mrb[0].mxu0
        %v1422 = vpop.f32.mrb[0].mxu0
        %v1423 = vadd.f32 0.0, %v1422
        %v1424 = vpop.f32.mrb[0].mxu0
        %1425 = vmatprep.mubr.bf16.mxu0 0
        %1426 = vmatmul.mubr.bf16.gmra.mrb[0].mxu0 %v1320
        %v1427 = vpop.f32.mrb[0].mxu0
        %v1428 = vadd.f32 0.0, %v1427
        %v1429 = vpop.f32.mrb[0].mxu0
        %v1430 = vpop.f32.mrb[0].mxu0
        %v1431 = vadd.f32 0.0, %v1430
        %v1432 = vpop.f32.mrb[0].mxu0
        %1433 = vmatprep.mubr.bf16.mxu0 0
        %1434 = vmatmul.mubr.bf16.gmra.mrb[0].mxu0 %v1323
        %v1435 = vpop.f32.mrb[0].mxu0
        %v1436 = vadd.f32 0.0, %v1435
        %v1437 = vpop.f32.mrb[0].mxu0
        %v1438 = vpop.f32.mrb[0].mxu0
        %v1439 = vadd.f32 0.0, %v1438
        %v1440 = vpop.f32.mrb[0].mxu0
        %1441 = vmatprep.mubr.bf16.mxu0 0
        %1442 = vmatmul.mubr.bf16.gmra.mrb[0].mxu0 %v1326
        %v1443 = vpop.f32.mrb[0].mxu0
        %v1444 = vadd.f32 0.0, %v1443
        %v1445 = vpop.f32.mrb[0].mxu0
        %v1446 = vpop.f32.mrb[0].mxu0
        %v1447 = vadd.f32 0.0, %v1446
        %v1448 = vpop.f32.mrb[0].mxu0
        %1449 = vmatprep.mubr.bf16.mxu0 0
        %1450 = vmatmul.mubr.bf16.gmra.mrb[0].mxu0 %v1329
        %v1451 = vpop.f32.mrb[0].mxu0
        %v1452 = vadd.f32 0.0, %v1451
        %v1453 = vpop.f32.mrb[0].mxu0
        %v1454 = vpop.f32.mrb[0].mxu0
        %v1455 = vadd.f32 0.0, %v1454
        %v1456 = vpop.f32.mrb[0].mxu0
        %1457 = vmatprep.mubr.bf16.mxu0 0
        %1458 = vmatmul.mubr.bf16.gmra.mrb[0].mxu0 %v1332
        %v1459 = vpop.f32.mrb[0].mxu0
        %v1460 = vadd.f32 0.0, %v1459
        %v1461 = vpop.f32.mrb[0].mxu0
        %v1462 = vpop.f32.mrb[0].mxu0
        %v1463 = vadd.f32 0.0, %v1462
        %v1464 = vpop.f32.mrb[0].mxu0
        %1465 = vmatprep.mubr.bf16.mxu0 0
        %1466 = vmatmul.mubr.bf16.gmra.mrb[0].mxu0 %v1335
        %v1467 = vpop.f32.mrb[0].mxu0
        %v1468 = vadd.f32 0.0, %v1467
        %v1469 = vpop.f32.mrb[0].mxu0
        %v1470 = vpop.f32.mrb[0].mxu0
        %v1471 = vadd.f32 0.0, %v1470
        %v1472 = vpop.f32.mrb[0].mxu0
        %1473 = vdwg.mxu0
        %v1474 = vmax.f32 %v1180, %v1372
        %v1475 = vmax.f32 %v1181, %v1375
        %v1476 = vmax.f32 %v1182, %v1380
        %v1477 = vmax.f32 %v1183, %v1383
        %v1478 = vmax.f32 %v1184, %v1388
        %v1479 = vmax.f32 %v1185, %v1391
        %v1480 = vmax.f32 %v1186, %v1396
        %v1481 = vmax.f32 %v1187, %v1399
        %v1482 = vmax.f32 %v1188, %v1404
        %v1483 = vmax.f32 %v1189, %v1407
        %v1484 = vmax.f32 %v1190, %v1412
        %v1485 = vmax.f32 %v1191, %v1415
        %v1486 = vmax.f32 %v1192, %v1420
        %v1487 = vmax.f32 %v1193, %v1423
        %v1488 = vmax.f32 %v1194, %v1428
        %v1489 = vmax.f32 %v1195, %v1431
        %v1490 = vmax.f32 %v1196, %v1436
        %v1491 = vmax.f32 %v1197, %v1439
        %v1492 = vmax.f32 %v1198, %v1444
        %v1493 = vmax.f32 %v1199, %v1447
        %v1494 = vmax.f32 %v1200, %v1452
        %v1495 = vmax.f32 %v1201, %v1455
        %v1496 = vmax.f32 %v1202, %v1460
        %v1497 = vmax.f32 %v1203, %v1463
        %v1498 = vmax.f32 %v1204, %v1468
        %v1499 = vmax.f32 %v1205, %v1471
        %s1500 = scalar_lea.vmem %s599, 312 [#allocation2]
        %v1501 = vld [vmem:[%s1500] sm:$0xf]
        %v1502 = vld [vmem:[%s1500 + $0x4] sm:$0xf]
        %v1503 = vld [vmem:[%s1500 + $0x8] sm:$0xf]
        %v1504 = vld [vmem:[%s1500 + $0xc] sm:$0xf]
        %v1505 = vld [vmem:[%s1500 + $0x10] sm:$0xf]
        %v1506 = vld [vmem:[%s1500 + $0x14] sm:$0xf]
        %v1507 = vld [vmem:[%s1500 + $0x18] sm:$0xf]
        %v1508 = vld [vmem:[%s1500 + $0x1c] sm:$0xf]
        %v1509 = vld [vmem:[%s1500 + $0x20] sm:$0xf]
        %v1510 = vld [vmem:[%s1500 + $0x24] sm:$0xf]
        %v1511 = vld [vmem:[%s1500 + $0x28] sm:$0xf]
        %v1512 = vld [vmem:[%s1500 + $0x2c] sm:$0xf]
        %v1513 = vld [vmem:[%s1500 + $0x30] sm:$0xf]
        %v1514 = vld [vmem:[%s1500 + $0x34] sm:$0xf]
        %v1515 = vld [vmem:[%s1500 + $0x38] sm:$0xf]
        %v1516 = vld [vmem:[%s1500 + $0x3c] sm:$0xf]
        %v1517 = vld [vmem:[%s1500 + $0x40] sm:$0xf]
        %v1518 = vld [vmem:[%s1500 + $0x44] sm:$0xf]
        %v1519 = vld [vmem:[%s1500 + $0x48] sm:$0xf]
        %v1520 = vld [vmem:[%s1500 + $0x4c] sm:$0xf]
        %v1521 = vld [vmem:[%s1500 + $0x50] sm:$0xf]
        %v1522 = vld [vmem:[%s1500 + $0x54] sm:$0xf]
        %v1523 = vld [vmem:[%s1500 + $0x58] sm:$0xf]
        %v1524 = vld [vmem:[%s1500 + $0x5c] sm:$0xf]
        %v1525 = vld [vmem:[%s1500 + $0x60] sm:$0xf]
        %v1526 = vld [vmem:[%s1500 + $0x64] sm:$0xf]
        %v1553 = vunpack.c.l.b16 %v1501
        %v1554 = vunpack.c.l.b16 %v1502
        %v1555 = vunpack.c.l.b16 %v1503
        %v1556 = vunpack.c.l.b16 %v1504
        %v1557 = vunpack.c.l.b16 %v1505
        %v1558 = vunpack.c.l.b16 %v1506
        %v1559 = vunpack.c.l.b16 %v1507
        %v1560 = vunpack.c.l.b16 %v1508
        %v1561 = vunpack.c.l.b16 %v1509
        %v1562 = vunpack.c.l.b16 %v1510
        %v1563 = vunpack.c.l.b16 %v1511
        %v1564 = vunpack.c.l.b16 %v1512
        %v1565 = vunpack.c.l.b16 %v1513
        %v1566 = vunpack.c.l.b16 %v1514
        %v1567 = vunpack.c.l.b16 %v1515
        %v1568 = vunpack.c.l.b16 %v1516
        %v1569 = vunpack.c.l.b16 %v1517
        %v1570 = vunpack.c.l.b16 %v1518
        %v1571 = vunpack.c.l.b16 %v1519
        %v1572 = vunpack.c.l.b16 %v1520
        %v1573 = vunpack.c.l.b16 %v1521
        %v1574 = vunpack.c.l.b16 %v1522
        %v1575 = vunpack.c.l.b16 %v1523
        %v1576 = vunpack.c.l.b16 %v1524
        %v1577 = vunpack.c.l.b16 %v1525
        %v1578 = vunpack.c.l.b16 %v1526
        %v1579 = vpack.c.b16 %v1554, %v1553
        %v1580 = vpack.c.b16 %v1556, %v1555
        %v1581 = vpack.c.b16 %v1558, %v1557
        %v1582 = vpack.c.b16 %v1560, %v1559
        %v1583 = vpack.c.b16 %v1562, %v1561
        %v1584 = vpack.c.b16 %v1564, %v1563
        %v1585 = vpack.c.b16 %v1566, %v1565
        %v1586 = vpack.c.b16 %v1568, %v1567
        %v1587 = vpack.c.b16 %v1570, %v1569
        %v1588 = vpack.c.b16 %v1572, %v1571
        %v1589 = vpack.c.b16 %v1574, %v1573
        %v1590 = vpack.c.b16 %v1576, %v1575
        %v1591 = vpack.c.b16 %v1578, %v1577
        %v1593 = vsel %vm735, %v1579, 0
        %v1596 = vsel %vm735, %v1580, 0
        %v1599 = vsel %vm735, %v1581, 0
        %v1602 = vsel %vm735, %v1582, 0
        %v1605 = vsel %vm735, %v1583, 0
        %v1608 = vsel %vm735, %v1584, 0
        %v1611 = vsel %vm735, %v1585, 0
        %v1614 = vsel %vm735, %v1586, 0
        %v1617 = vsel %vm735, %v1587, 0
        %v1620 = vsel %vm735, %v1588, 0
        %v1623 = vsel %vm735, %v1589, 0
        %v1626 = vsel %vm735, %v1590, 0
        %v1629 = vsel %vm735, %v1591, 0
        %1631 = vmatprep.subr.bf16.mxu0 0
        %1632 = vmatpush1.bf16.msra.mxu0 %v731
        %1633 = vmatprep.subr.bf16.mxu0 0
        %1634 = vmatpush1.bf16.msra.mxu0 %v732
        %1635 = vmatprep.subr.bf16.mxu0 0
        %1636 = vmatpush1.bf16.msra.mxu0 0
        %1637 = vmatprep.subr.bf16.mxu0 0
        %1638 = vmatpush1.bf16.msra.mxu0 0
        %1639 = vmatprep.subr.bf16.mxu0 0
        %1640 = vmatpush1.bf16.msra.mxu0 0
        %1641 = vmatprep.subr.bf16.mxu0 0
        %1642 = vmatpush1.bf16.msra.mxu0 0
        %1643 = vmatprep.subr.bf16.mxu0 0
        %1644 = vmatpush1.bf16.msra.mxu0 0
        %1645 = vmatprep.subr.bf16.mxu0 0
        %1646 = vmatpush1.bf16.msra.mxu0 0
        %1647 = vmatprep.subr.bf16.mxu0 0
        %1648 = vmatpush1.bf16.msra.mxu0 0
        %1649 = vmatprep.subr.bf16.mxu0 0
        %1650 = vmatpush1.bf16.msra.mxu0 0
        %1651 = vmatprep.subr.bf16.mxu0 0
        %1652 = vmatpush1.bf16.msra.mxu0 0
        %1653 = vmatprep.subr.bf16.mxu0 0
        %1654 = vmatpush1.bf16.msra.mxu0 0
        %1655 = vmatprep.subr.bf16.mxu0 0
        %1656 = vmatpush1.bf16.msra.mxu0 0
        %1657 = vmatprep.subr.bf16.mxu0 0
        %1658 = vmatpush1.bf16.msra.mxu0 0
        %1659 = vmatprep.subr.bf16.mxu0 0
        %1660 = vmatpush1.bf16.msra.mxu0 0
        %1661 = vmatprep.subr.bf16.mxu0 0
        %1662 = vmatpush1.bf16.msra.mxu0 0
        %1663 = vmatprep.mubr.bf16.mxu0 0
        %1664 = vmatmul.mubr.bf16.gmra.mrb[0].mxu0 %v1593
        %v1665 = vpop.f32.mrb[0].mxu0
        %v1666 = vadd.f32 0.0, %v1665
        %v1667 = vpop.f32.mrb[0].mxu0
        %v1668 = vpop.f32.mrb[0].mxu0
        %v1669 = vadd.f32 0.0, %v1668
        %v1670 = vpop.f32.mrb[0].mxu0
        %1671 = vmatprep.mubr.bf16.mxu0 0
        %1672 = vmatmul.mubr.bf16.gmra.mrb[0].mxu0 %v1596
        %v1673 = vpop.f32.mrb[0].mxu0
        %v1674 = vadd.f32 0.0, %v1673
        %v1675 = vpop.f32.mrb[0].mxu0
        %v1676 = vpop.f32.mrb[0].mxu0
        %v1677 = vadd.f32 0.0, %v1676
        %v1678 = vpop.f32.mrb[0].mxu0
        %1679 = vmatprep.mubr.bf16.mxu0 0
        %1680 = vmatmul.mubr.bf16.gmra.mrb[0].mxu0 %v1599
        %v1681 = vpop.f32.mrb[0].mxu0
        %v1682 = vadd.f32 0.0, %v1681
        %v1683 = vpop.f32.mrb[0].mxu0
        %v1684 = vpop.f32.mrb[0].mxu0
        %v1685 = vadd.f32 0.0, %v1684
        %v1686 = vpop.f32.mrb[0].mxu0
        %1687 = vmatprep.mubr.bf16.mxu0 0
        %1688 = vmatmul.mubr.bf16.gmra.mrb[0].mxu0 %v1602
        %v1689 = vpop.f32.mrb[0].mxu0
        %v1690 = vadd.f32 0.0, %v1689
        %v1691 = vpop.f32.mrb[0].mxu0
        %v1692 = vpop.f32.mrb[0].mxu0
        %v1693 = vadd.f32 0.0, %v1692
        %v1694 = vpop.f32.mrb[0].mxu0
        %1695 = vmatprep.mubr.bf16.mxu0 0
        %1696 = vmatmul.mubr.bf16.gmra.mrb[0].mxu0 %v1605
        %v1697 = vpop.f32.mrb[0].mxu0
        %v1698 = vadd.f32 0.0, %v1697
        %v1699 = vpop.f32.mrb[0].mxu0
        %v1700 = vpop.f32.mrb[0].mxu0
        %v1701 = vadd.f32 0.0, %v1700
        %v1702 = vpop.f32.mrb[0].mxu0
        %1703 = vmatprep.mubr.bf16.mxu0 0
        %1704 = vmatmul.mubr.bf16.gmra.mrb[0].mxu0 %v1608
        %v1705 = vpop.f32.mrb[0].mxu0
        %v1706 = vadd.f32 0.0, %v1705
        %v1707 = vpop.f32.mrb[0].mxu0
        %v1708 = vpop.f32.mrb[0].mxu0
        %v1709 = vadd.f32 0.0, %v1708
        %v1710 = vpop.f32.mrb[0].mxu0
        %1711 = vmatprep.mubr.bf16.mxu0 0
        %1712 = vmatmul.mubr.bf16.gmra.mrb[0].mxu0 %v1611
        %v1713 = vpop.f32.mrb[0].mxu0
        %v1714 = vadd.f32 0.0, %v1713
        %v1715 = vpop.f32.mrb[0].mxu0
        %v1716 = vpop.f32.mrb[0].mxu0
        %v1717 = vadd.f32 0.0, %v1716
        %v1718 = vpop.f32.mrb[0].mxu0
        %1719 = vmatprep.mubr.bf16.mxu0 0
        %1720 = vmatmul.mubr.bf16.gmra.mrb[0].mxu0 %v1614
        %v1721 = vpop.f32.mrb[0].mxu0
        %v1722 = vadd.f32 0.0, %v1721
        %v1723 = vpop.f32.mrb[0].mxu0
        %v1724 = vpop.f32.mrb[0].mxu0
        %v1725 = vadd.f32 0.0, %v1724
        %v1726 = vpop.f32.mrb[0].mxu0
        %1727 = vmatprep.mubr.bf16.mxu0 0
        %1728 = vmatmul.mubr.bf16.gmra.mrb[0].mxu0 %v1617
        %v1729 = vpop.f32.mrb[0].mxu0
        %v1730 = vadd.f32 0.0, %v1729
        %v1731 = vpop.f32.mrb[0].mxu0
        %v1732 = vpop.f32.mrb[0].mxu0
        %v1733 = vadd.f32 0.0, %v1732
        %v1734 = vpop.f32.mrb[0].mxu0
        %1735 = vmatprep.mubr.bf16.mxu0 0
        %1736 = vmatmul.mubr.bf16.gmra.mrb[0].mxu0 %v1620
        %v1737 = vpop.f32.mrb[0].mxu0
        %v1738 = vadd.f32 0.0, %v1737
        %v1739 = vpop.f32.mrb[0].mxu0
        %v1740 = vpop.f32.mrb[0].mxu0
        %v1741 = vadd.f32 0.0, %v1740
        %v1742 = vpop.f32.mrb[0].mxu0
        %1743 = vmatprep.mubr.bf16.mxu0 0
        %1744 = vmatmul.mubr.bf16.gmra.mrb[0].mxu0 %v1623
        %v1745 = vpop.f32.mrb[0].mxu0
        %v1746 = vadd.f32 0.0, %v1745
        %v1747 = vpop.f32.mrb[0].mxu0
        %v1748 = vpop.f32.mrb[0].mxu0
        %v1749 = vadd.f32 0.0, %v1748
        %v1750 = vpop.f32.mrb[0].mxu0
        %1751 = vmatprep.mubr.bf16.mxu0 0
        %1752 = vmatmul.mubr.bf16.gmra.mrb[0].mxu0 %v1626
        %v1753 = vpop.f32.mrb[0].mxu0
        %v1754 = vadd.f32 0.0, %v1753
        %v1755 = vpop.f32.mrb[0].mxu0
        %v1756 = vpop.f32.mrb[0].mxu0
        %v1757 = vadd.f32 0.0, %v1756
        %v1758 = vpop.f32.mrb[0].mxu0
        %1759 = vmatprep.mubr.bf16.mxu0 0
        %1760 = vmatmul.mubr.bf16.gmra.mrb[0].mxu0 %v1629
        %v1761 = vpop.f32.mrb[0].mxu0
        %v1762 = vadd.f32 0.0, %v1761
        %v1763 = vpop.f32.mrb[0].mxu0
        %v1764 = vpop.f32.mrb[0].mxu0
        %v1765 = vadd.f32 0.0, %v1764
        %v1766 = vpop.f32.mrb[0].mxu0
        %1767 = vdwg.mxu0
        %v1768 = vmax.f32 %v1474, %v1666
        %v1769 = vmax.f32 %v1475, %v1669
        %v1770 = vmax.f32 %v1476, %v1674
        %v1771 = vmax.f32 %v1477, %v1677
        %v1772 = vmax.f32 %v1478, %v1682
        %v1773 = vmax.f32 %v1479, %v1685
        %v1774 = vmax.f32 %v1480, %v1690
        %v1775 = vmax.f32 %v1481, %v1693
        %v1776 = vmax.f32 %v1482, %v1698
        %v1777 = vmax.f32 %v1483, %v1701
        %v1778 = vmax.f32 %v1484, %v1706
        %v1779 = vmax.f32 %v1485, %v1709
        %v1780 = vmax.f32 %v1486, %v1714
        %v1781 = vmax.f32 %v1487, %v1717
        %v1782 = vmax.f32 %v1488, %v1722
        %v1783 = vmax.f32 %v1489, %v1725
        %v1784 = vmax.f32 %v1490, %v1730
        %v1785 = vmax.f32 %v1491, %v1733
        %v1786 = vmax.f32 %v1492, %v1738
        %v1787 = vmax.f32 %v1493, %v1741
        %v1788 = vmax.f32 %v1494, %v1746
        %v1789 = vmax.f32 %v1495, %v1749
        %v1790 = vmax.f32 %v1496, %v1754
        %v1791 = vmax.f32 %v1497, %v1757
        %v1792 = vmax.f32 %v1498, %v1762
        %v1793 = vmax.f32 %v1499, %v1765
        %v1794 = vld [vmem:[%s2] sm:$0x1]
        %v1796 = vlaneseq
        %v1797 = vshrl.u32 %v1796, 7
        %v1798 = vsub.s32 0, %v1797
        %v1799 = vrot.slane %v1794, %v1798
        %v1801 = vadd.f32 %v1768, %v1799
        %v1802 = vadd.f32 %v1769, %v1799
        %v1803 = vadd.f32 %v1770, %v1799
        %v1804 = vadd.f32 %v1771, %v1799
        %v1805 = vadd.f32 %v1772, %v1799
        %v1806 = vadd.f32 %v1773, %v1799
        %v1807 = vadd.f32 %v1774, %v1799
        %v1808 = vadd.f32 %v1775, %v1799
        %v1809 = vadd.f32 %v1776, %v1799
        %v1810 = vadd.f32 %v1777, %v1799
        %v1811 = vadd.f32 %v1778, %v1799
        %v1812 = vadd.f32 %v1779, %v1799
        %v1813 = vadd.f32 %v1780, %v1799
        %v1814 = vadd.f32 %v1781, %v1799
        %v1815 = vadd.f32 %v1782, %v1799
        %v1816 = vadd.f32 %v1783, %v1799
        %v1817 = vadd.f32 %v1784, %v1799
        %v1818 = vadd.f32 %v1785, %v1799
        %v1819 = vadd.f32 %v1786, %v1799
        %v1820 = vadd.f32 %v1787, %v1799
        %v1821 = vadd.f32 %v1788, %v1799
        %v1822 = vadd.f32 %v1789, %v1799
        %v1823 = vadd.f32 %v1790, %v1799
        %v1824 = vadd.f32 %v1791, %v1799
        %v1825 = vadd.f32 %v1792, %v1799
        %v1826 = vadd.f32 %v1793, %v1799
        %v1827 = vmax.f32 %v1801, 0.0
        %v1828 = vmax.f32 %v1802, 0.0
        %v1829 = vmax.f32 %v1803, 0.0
        %v1830 = vmax.f32 %v1804, 0.0
        %v1831 = vmax.f32 %v1805, 0.0
        %v1832 = vmax.f32 %v1806, 0.0
        %v1833 = vmax.f32 %v1807, 0.0
        %v1834 = vmax.f32 %v1808, 0.0
        %v1835 = vmax.f32 %v1809, 0.0
        %v1836 = vmax.f32 %v1810, 0.0
        %v1837 = vmax.f32 %v1811, 0.0
        %v1838 = vmax.f32 %v1812, 0.0
        %v1839 = vmax.f32 %v1813, 0.0
        %v1840 = vmax.f32 %v1814, 0.0
        %v1841 = vmax.f32 %v1815, 0.0
        %v1842 = vmax.f32 %v1816, 0.0
        %v1843 = vmax.f32 %v1817, 0.0
        %v1844 = vmax.f32 %v1818, 0.0
        %v1845 = vmax.f32 %v1819, 0.0
        %v1846 = vmax.f32 %v1820, 0.0
        %v1847 = vmax.f32 %v1821, 0.0
        %v1848 = vmax.f32 %v1822, 0.0
        %v1849 = vmax.f32 %v1823, 0.0
        %v1850 = vmax.f32 %v1824, 0.0
        %v1851 = vmax.f32 %v1825, 0.0
        %v1852 = vmax.f32 %v1826, 0.0
        %v1853 = vpack.c.bf16 %v1828, %v1827
        %v1854 = vpack.c.bf16 %v1830, %v1829
        %v1855 = vpack.c.bf16 %v1832, %v1831
        %v1856 = vpack.c.bf16 %v1834, %v1833
        %v1857 = vpack.c.bf16 %v1836, %v1835
        %v1858 = vpack.c.bf16 %v1838, %v1837
        %v1859 = vpack.c.bf16 %v1840, %v1839
        %v1860 = vpack.c.bf16 %v1842, %v1841
        %v1861 = vpack.c.bf16 %v1844, %v1843
        %v1862 = vpack.c.bf16 %v1846, %v1845
        %v1863 = vpack.c.bf16 %v1848, %v1847
        %v1864 = vpack.c.bf16 %v1850, %v1849
        %v1865 = vpack.c.bf16 %v1852, %v1851
        %v1879 = vunpack.c.l.b16 %v1853
        %v1880 = vunpack.c.h.b16 %v1853
        %v1881 = vunpack.c.l.b16 %v1854
        %v1882 = vunpack.c.h.b16 %v1854
        %v1883 = vunpack.c.l.b16 %v1855
        %v1884 = vunpack.c.h.b16 %v1855
        %v1885 = vunpack.c.l.b16 %v1856
        %v1886 = vunpack.c.h.b16 %v1856
        %v1887 = vunpack.c.l.b16 %v1857
        %v1888 = vunpack.c.h.b16 %v1857
        %v1889 = vunpack.c.l.b16 %v1858
        %v1890 = vunpack.c.h.b16 %v1858
        %v1891 = vunpack.c.l.b16 %v1859
        %v1892 = vunpack.c.h.b16 %v1859
        %v1893 = vunpack.c.l.b16 %v1860
        %v1894 = vunpack.c.h.b16 %v1860
        %v1895 = vunpack.c.l.b16 %v1861
        %v1896 = vunpack.c.h.b16 %v1861
        %v1897 = vunpack.c.l.b16 %v1862
        %v1898 = vunpack.c.h.b16 %v1862
        %v1899 = vunpack.c.l.b16 %v1863
        %v1900 = vunpack.c.h.b16 %v1863
        %v1901 = vunpack.c.l.b16 %v1864
        %v1902 = vunpack.c.h.b16 %v1864
        %v1903 = vunpack.c.l.b16 %v1865
        %v1904 = vunpack.c.h.b16 %v1865
        %v1905 = vpack.c.b16 %v1879, %v1879
        %v1906 = vpack.c.b16 %v1880, %v1880
        %v1907 = vpack.c.b16 %v1881, %v1881
        %v1908 = vpack.c.b16 %v1882, %v1882
        %v1909 = vpack.c.b16 %v1883, %v1883
        %v1910 = vpack.c.b16 %v1884, %v1884
        %v1911 = vpack.c.b16 %v1885, %v1885
        %v1912 = vpack.c.b16 %v1886, %v1886
        %v1913 = vpack.c.b16 %v1887, %v1887
        %v1914 = vpack.c.b16 %v1888, %v1888
        %v1915 = vpack.c.b16 %v1889, %v1889
        %v1916 = vpack.c.b16 %v1890, %v1890
        %v1917 = vpack.c.b16 %v1891, %v1891
        %v1918 = vpack.c.b16 %v1892, %v1892
        %v1919 = vpack.c.b16 %v1893, %v1893
        %v1920 = vpack.c.b16 %v1894, %v1894
        %v1921 = vpack.c.b16 %v1895, %v1895
        %v1922 = vpack.c.b16 %v1896, %v1896
        %v1923 = vpack.c.b16 %v1897, %v1897
        %v1924 = vpack.c.b16 %v1898, %v1898
        %v1925 = vpack.c.b16 %v1899, %v1899
        %v1926 = vpack.c.b16 %v1900, %v1900
        %v1927 = vpack.c.b16 %v1901, %v1901
        %v1928 = vpack.c.b16 %v1902, %v1902
        %v1929 = vpack.c.b16 %v1903, %v1903
        %v1930 = vpack.c.b16 %v1904, %v1904
        %1957 = vst [vmem:[%s625] sm:$0xf] %v1905
        %1958 = vst [vmem:[%s625 + $0x4] sm:$0xf] %v1906
        %1959 = vst [vmem:[%s625 + $0x8] sm:$0xf] %v1907
        %1960 = vst [vmem:[%s625 + $0xc] sm:$0xf] %v1908
        %1961 = vst [vmem:[%s625 + $0x10] sm:$0xf] %v1909
        %1962 = vst [vmem:[%s625 + $0x14] sm:$0xf] %v1910
        %1963 = vst [vmem:[%s625 + $0x18] sm:$0xf] %v1911
        %1964 = vst [vmem:[%s625 + $0x1c] sm:$0xf] %v1912
        %1965 = vst [vmem:[%s625 + $0x20] sm:$0xf] %v1913
        %1966 = vst [vmem:[%s625 + $0x24] sm:$0xf] %v1914
        %1967 = vst [vmem:[%s625 + $0x28] sm:$0xf] %v1915
        %1968 = vst [vmem:[%s625 + $0x2c] sm:$0xf] %v1916
        %1969 = vst [vmem:[%s625 + $0x30] sm:$0xf] %v1917
        %1970 = vst [vmem:[%s625 + $0x34] sm:$0xf] %v1918
        %1971 = vst [vmem:[%s625 + $0x38] sm:$0xf] %v1919
        %1972 = vst [vmem:[%s625 + $0x3c] sm:$0xf] %v1920
        %1973 = vst [vmem:[%s625 + $0x40] sm:$0xf] %v1921
        %1974 = vst [vmem:[%s625 + $0x44] sm:$0xf] %v1922
        %1975 = vst [vmem:[%s625 + $0x48] sm:$0xf] %v1923
        %1976 = vst [vmem:[%s625 + $0x4c] sm:$0xf] %v1924
        %1977 = vst [vmem:[%s625 + $0x50] sm:$0xf] %v1925
        %1978 = vst [vmem:[%s625 + $0x54] sm:$0xf] %v1926
        %1979 = vst [vmem:[%s625 + $0x58] sm:$0xf] %v1927
        %1980 = vst [vmem:[%s625 + $0x5c] sm:$0xf] %v1928
        %1981 = vst [vmem:[%s625 + $0x60] sm:$0xf] %v1929
        %1982 = vst [vmem:[%s625 + $0x64] sm:$0xf] %v1930
        %s1983 = smul.u32 26, %s14
        %p1984 = scmp.lt.s32.totalorder %s1983, 51
        %s1985 = scalar_select %p1984, %s1983, 51
        %s1986 = smul.addr %s1985, 4
        %s1987 = scalar_lea.vmem %s3, %s1986
        // Predicated region
        $region74: #{cnn_forward.3} parent=68 // pred_check
          %p1988 = pneg %p100
        $region75: #{cnn_forward.3} parent=68 // pred_check_branch
          %1990 = sbr.rel (%p1988) target = $region77
        $region76: #{cnn_forward.3} parent=68 // pred_region
          %s1991 = smul.u32 26, %s14
        $region77: #{cnn_forward.3} parent=68 // pred_fallthru
          _
      $region69: #{cnn_forward.3} parent=5 // pred_fallthru
        _
      %p1992 = scmp.le.s32.totalorder 2, %s9
      // Predicated region
      $region78: #{cnn_forward.3} parent=5 // pred_check
        %p1993 = pneg %p1992
      $region79: #{cnn_forward.3} parent=5 // pred_check_branch
        %1995 = sbr.rel (%p1993) target = $region81
      $region80: #{cnn_forward.3} parent=5 // pred_region
        %s1996 = ssub.s32 %s9, 2
        // Predicated region
        $region82: #{cnn_forward.3} parent=80 // pred_check
          %p1997 = pneg %p106
        $region83: #{cnn_forward.3} parent=80 // pred_check_branch
          %1999 = sbr.rel (%p1997) target = $region85
        $region84: #{cnn_forward.3} parent=80 // pred_region
          %s2000 = smul.u32 26, %s15
          %p2001 = scmp.lt.s32.totalorder %s2000, 51
          %s2002 = scalar_select %p2001, %s2000, 51
          %s2003 = smul.addr %s2002, 4
          %s2004 = scalar_lea.vmem %s3, %s2003
        $region85: #{cnn_forward.3} parent=80 // pred_fallthru
          _
      $region81: #{cnn_forward.3} parent=5 // pred_fallthru
        _
    $region6: #{cnn_forward.3} parent=1 // loop_footer
      %s13 = sadd.s32 1, %s9
    $region7: #{cnn_forward.3} parent=1 // loop_footer_branch
      %8 = sbr.rel target = $region3
    $region8: #{cnn_forward.3} parent=1 // loop_exit
      _

// kernel: cnn_forward.4
$region0: #{cnn_forward.4}
  #allocation0 [shape = 'u32[]', space=smem, size = 0x4, offset = 0x4, fixed_abs, tag = 'smem constant byte address 0x4 - core index']
  #allocation1 [shape = 'u32[144,128]{1,0:T(1,128)}', space=vmem, size = 0x12000, scoped, tag = 'internal scratch']
  %s0 = inlined_call_operand.vmem [shape: bf16[4,128,400], index: 0, kind: input, shape index: {}]
  %s1 = inlined_call_operand.vmem [shape: bf16[400,128], index: 1, kind: input, shape index: {}]
  %s2 = inlined_call_operand.vmem [shape: f32[1,128], index: 2, kind: input, shape index: {}]
  %s3 = inlined_call_operand.vmem [shape: bf16[128,128], index: 3, kind: output, shape index: {}]
  %s4 = sld [smem:[#allocation0]]
  $region68: #{cnn_forward.4} parent=0
    _
  %s6 = ssub.s32 1, %s4
  %s7 = scalar_select 0, %s6, %s4
  $region1: #{cnn_forward.4} parent=0
    #allocation2 [shape = 'u8[524288]{0}', space=vmem, size = 0x80000, scoped, tag = 'input window, operand 0']
    loop: start=0, step=1, limit=4
    $region2: #{cnn_forward.4} parent=1 // loop_pre_header
      _
    $region3: #{cnn_forward.4} parent=1 // loop_header
      %s9 = sphi 0, %s13
      %p10 = scmp.ge.s32.totalorder %s9, 4
      %s19 = sphi 0, %s21
      %s22 = sphi 0, %s19
      %s23 = sphi 0, %s22
      %s39 = sphi 0, %s23
      %s43 = sphi 0, %s43
      %s45 = sphi 0, %s43
      %s46 = sphi 0, %s45
      %s60 = sphi 0, %s46
      %s64 = sphi 0, %s64
      %s66 = sphi 0, %s64
      %s67 = sphi 0, %s66
      %s81 = sphi 0, %s67
      %s87 = sphi 0, %s89
      %s90 = sphi 0, %s87
      %s91 = sphi 0, %s90
      %s107 = sphi 0, %s91
    $region4: #{cnn_forward.4} parent=1 // loop_header_branch
      %12 = sbr.rel (%p10) target = $region8
    $region5: #{cnn_forward.4} parent=1 // loop_body
      %s14 = ssub.s32 %s9, 1
      %s15 = ssub.s32 %s9, 2
      %s16 = sadd.s32 %s9, 1
      %s17 = ssub.s32 %s9, %s16
      %p18 = scmp.eq.s32.totalorder %s17, 0
      %s20 = sadd.s32 %s19, 1
      %s21 = scalar_select %p18, %s19, %s20
      %p24 = pneg %p18
      %p25 = scmp.eq.s32.totalorder %s9, 1
      %p26 = por %p24, %p25
      %p27 = scmp.ne.s32.totalorder %s19, %s22
      %p28 = scmp.eq.s32.totalorder %s9, 0
      %p29 = por %p27, %p28
      %p30 = scmp.ne.s32.totalorder %s19, %s22
      %p31 = scmp.eq.s32.totalorder %s14, 1
      %p32 = por %p30, %p31
      %p33 = scmp.ne.s32.totalorder %s22, %s23
      %p34 = scmp.eq.s32.totalorder %s14, 0
      %p35 = por %p33, %p34
      %p36 = scmp.ne.s32.totalorder %s22, %s23
      %p37 = scmp.eq.s32.totalorder %s15, 1
      %p38 = por %p36, %p37
      %p40 = scmp.ne.s32.totalorder %s23, %s39
      %p41 = scmp.eq.s32.totalorder %s15, 0
      %p42 = por %p40, %p41
      %s44 = sadd.s32 %s43, 1
      %p47 = scmp.eq.s32.totalorder %s9, 1
      %p48 = scmp.ne.s32.totalorder %s43, %s45
      %p49 = scmp.eq.s32.totalorder %s9, 0
      %p50 = por %p48, %p49
      %p51 = scmp.ne.s32.totalorder %s43, %s45
      %p52 = scmp.eq.s32.totalorder %s14, 1
      %p53 = por %p51, %p52
      %p54 = scmp.ne.s32.totalorder %s45, %s46
      %p55 = scmp.eq.s32.totalorder %s14, 0
      %p56 = por %p54, %p55
      %p57 = scmp.ne.s32.totalorder %s45, %s46
      %p58 = scmp.eq.s32.totalorder %s15, 1
      %p59 = por %p57, %p58
      %p61 = scmp.ne.s32.totalorder %s46, %s60
      %p62 = scmp.eq.s32.totalorder %s15, 0
      %p63 = por %p61, %p62
      %s65 = sadd.s32 %s64, 1
      %p68 = scmp.eq.s32.totalorder %s9, 1
      %p69 = scmp.ne.s32.totalorder %s64, %s66
      %p70 = scmp.eq.s32.totalorder %s9, 0
      %p71 = por %p69, %p70
      %p72 = scmp.ne.s32.totalorder %s64, %s66
      %p73 = scmp.eq.s32.totalorder %s14, 1
      %p74 = por %p72, %p73
      %p75 = scmp.ne.s32.totalorder %s66, %s67
      %p76 = scmp.eq.s32.totalorder %s14, 0
      %p77 = por %p75, %p76
      %p78 = scmp.ne.s32.totalorder %s66, %s67
      %p79 = scmp.eq.s32.totalorder %s15, 1
      %p80 = por %p78, %p79
      %p82 = scmp.ne.s32.totalorder %s67, %s81
      %p83 = scmp.eq.s32.totalorder %s15, 0
      %p84 = por %p82, %p83
      %s85 = ssub.s32 %s9, %s16
      %p86 = scmp.eq.s32.totalorder %s85, 0
      %s88 = sadd.s32 %s87, 1
      %s89 = scalar_select %p86, %s87, %s88
      %p92 = pneg %p86
      %p93 = scmp.eq.s32.totalorder %s9, 1
      %p94 = por %p92, %p93
      %p95 = scmp.ne.s32.totalorder %s87, %s90
      %p96 = scmp.eq.s32.totalorder %s9, 0
      %p97 = por %p95, %p96
      %p98 = scmp.ne.s32.totalorder %s87, %s90
      %p99 = scmp.eq.s32.totalorder %s14, 1
      %p100 = por %p98, %p99
      %p101 = scmp.ne.s32.totalorder %s90, %s91
      %p102 = scmp.eq.s32.totalorder %s14, 0
      %p103 = por %p101, %p102
      %p104 = scmp.ne.s32.totalorder %s90, %s91
      %p105 = scmp.eq.s32.totalorder %s15, 1
      %p106 = por %p104, %p105
      %p108 = scmp.ne.s32.totalorder %s91, %s107
      %p109 = scmp.eq.s32.totalorder %s15, 0
      %p110 = por %p108, %p109
      %p111 = scmp.le.s32.totalorder 1, %s9
      %p112 = scmp.lt.s32.totalorder %s9, 3
      %p113 = pnand %p111, %p112
      %p114 = pneg %p113
      // Predicated region
      $region9: #{cnn_forward.4} parent=5 // pred_check
        _
      $region10: #{cnn_forward.4} parent=5 // pred_check_branch
        %116 = sbr.rel (%p113) target = $region12
      $region11: #{cnn_forward.4} parent=5 // pred_region
        %s117 = ssub.s32 %s9, 1
        // Predicated region
        $region13: #{cnn_forward.4} parent=11 // pred_check
          %p118 = pneg %p56
        $region14: #{cnn_forward.4} parent=11 // pred_check_branch
          %120 = sbr.rel (%p118) target = $region16
        $region15: #{cnn_forward.4} parent=11 // pred_region
          _
        $region16: #{cnn_forward.4} parent=11 // pred_fallthru
          _
        // Predicated region
        $region17: #{cnn_forward.4} parent=11 // pred_check
          %p121 = pneg %p77
        $region18: #{cnn_forward.4} parent=11 // pred_check_branch
          %123 = sbr.rel (%p121) target = $region20
        $region19: #{cnn_forward.4} parent=11 // pred_region
          _
        $region20: #{cnn_forward.4} parent=11 // pred_fallthru
          _
      $region12: #{cnn_forward.4} parent=5 // pred_fallthru
        _
      %p124 = scmp.lt.s32.totalorder %s9, 2
      // Predicated region
      $region21: #{cnn_forward.4} parent=5 // pred_check
        %p125 = pneg %p124
      $region22: #{cnn_forward.4} parent=5 // pred_check_branch
        %127 = sbr.rel (%p125) target = $region24
      $region23: #{cnn_forward.4} parent=5 // pred_region
        // Predicated region
        $region25: #{cnn_forward.4} parent=23 // pred_check
          %p128 = pneg %p29
        $region26: #{cnn_forward.4} parent=23 // pred_check_branch
          %130 = sbr.rel (%p128) target = $region28
        $region27: #{cnn_forward.4} parent=23 // pred_region
          %s131 = sand.u32 %s19, 1
          %s132 = sand.u32 %s19, 1
          %s133 = smul.addr %s132, 512
          %s134 = scalar_lea.vmem [#allocation2], %s133
          %s135 = smul.u32 8, %s9
          %s136 = smul.addr %s135, 4
          %s137 = smul.addr %s136, 4
          %s138 = scalar_lea.vmem %s0, %s137
          // Predicated region
          $region29: #{cnn_forward.4} parent=27 // pred_check
            _
          $region30: #{cnn_forward.4} parent=27 // pred_check_branch
            %140 = sbr.rel (0) target = $region32
          $region31: #{cnn_forward.4} parent=27 // pred_region
            // Predicated region
            $region33: #{cnn_forward.4} parent=31 // pred_check
              _
            $region34: #{cnn_forward.4} parent=31 // pred_check_branch
              %142 = sbr.rel (0) target = $region36
            $region35: #{cnn_forward.4} parent=31 // pred_region
              loop: start=0, step=1, limit=1
              $region37: #{cnn_forward.4} parent=35 // loop_pre_header
                _
              $region38: #{cnn_forward.4} parent=35 // loop_header
                %s144 = sphi 0, %s148
                %p145 = scmp.ge.s32.totalorder %s144, 1
                %s149 = sphi %s138, %s138
                %s150 = sphi %s134, %s134
              $region39: #{cnn_forward.4} parent=35 // loop_header_branch
                %147 = sbr.rel (%p145) target = $region43
              $region40: #{cnn_forward.4} parent=35 // loop_body
                %v151 = vld [vmem:[%s149] sm:$0xff]
                %152 = vst [vmem:[%s150] sm:$0xff] %v151
                %v153 = vld [vmem:[%s149 + $0x8] sm:$0xff]
                %154 = vst [vmem:[%s150 + $0x8] sm:$0xff] %v153
                %v155 = vld [vmem:[%s149 + $0x10] sm:$0xff]
                %156 = vst [vmem:[%s150 + $0x10] sm:$0xff] %v155
                %v157 = vld [vmem:[%s149 + $0x18] sm:$0xff]
                %158 = vst [vmem:[%s150 + $0x18] sm:$0xff] %v157
                %v159 = vld [vmem:[%s149 + $0x20] sm:$0xff]
                %160 = vst [vmem:[%s150 + $0x20] sm:$0xff] %v159
                %v161 = vld [vmem:[%s149 + $0x28] sm:$0xff]
                %162 = vst [vmem:[%s150 + $0x28] sm:$0xff] %v161
                %v163 = vld [vmem:[%s149 + $0x30] sm:$0xff]
                %164 = vst [vmem:[%s150 + $0x30] sm:$0xff] %v163
                %v165 = vld [vmem:[%s149 + $0x38] sm:$0xff]
                %166 = vst [vmem:[%s150 + $0x38] sm:$0xff] %v165
                %v167 = vld [vmem:[%s149 + $0x40] sm:$0xff]
                %168 = vst [vmem:[%s150 + $0x40] sm:$0xff] %v167
                %v169 = vld [vmem:[%s149 + $0x48] sm:$0xff]
                %170 = vst [vmem:[%s150 + $0x48] sm:$0xff] %v169
                %v171 = vld [vmem:[%s149 + $0x50] sm:$0xff]
                %172 = vst [vmem:[%s150 + $0x50] sm:$0xff] %v171
                %v173 = vld [vmem:[%s149 + $0x58] sm:$0xff]
                %174 = vst [vmem:[%s150 + $0x58] sm:$0xff] %v173
                %v175 = vld [vmem:[%s149 + $0x60] sm:$0xff]
                %176 = vst [vmem:[%s150 + $0x60] sm:$0xff] %v175
                %v177 = vld [vmem:[%s149 + $0x68] sm:$0xff]
                %178 = vst [vmem:[%s150 + $0x68] sm:$0xff] %v177
                %v179 = vld [vmem:[%s149 + $0x70] sm:$0xff]
                %180 = vst [vmem:[%s150 + $0x70] sm:$0xff] %v179
                %v181 = vld [vmem:[%s149 + $0x78] sm:$0xff]
                %182 = vst [vmem:[%s150 + $0x78] sm:$0xff] %v181
                %v183 = vld [vmem:[%s149 + $0x100] sm:$0xff]
                %184 = vst [vmem:[%s150 + $0x80] sm:$0xff] %v183
                %v185 = vld [vmem:[%s149 + $0x108] sm:$0xff]
                %186 = vst [vmem:[%s150 + $0x88] sm:$0xff] %v185
                %v187 = vld [vmem:[%s149 + $0x110] sm:$0xff]
                %188 = vst [vmem:[%s150 + $0x90] sm:$0xff] %v187
                %v189 = vld [vmem:[%s149 + $0x118] sm:$0xff]
                %190 = vst [vmem:[%s150 + $0x98] sm:$0xff] %v189
                %v191 = vld [vmem:[%s149 + $0x120] sm:$0xff]
                %192 = vst [vmem:[%s150 + $0xa0] sm:$0xff] %v191
                %v193 = vld [vmem:[%s149 + $0x128] sm:$0xff]
                %194 = vst [vmem:[%s150 + $0xa8] sm:$0xff] %v193
                %v195 = vld [vmem:[%s149 + $0x130] sm:$0xff]
                %196 = vst [vmem:[%s150 + $0xb0] sm:$0xff] %v195
                %v197 = vld [vmem:[%s149 + $0x138] sm:$0xff]
                %198 = vst [vmem:[%s150 + $0xb8] sm:$0xff] %v197
                %v199 = vld [vmem:[%s149 + $0x140] sm:$0xff]
                %200 = vst [vmem:[%s150 + $0xc0] sm:$0xff] %v199
                %v201 = vld [vmem:[%s149 + $0x148] sm:$0xff]
                %202 = vst [vmem:[%s150 + $0xc8] sm:$0xff] %v201
                %v203 = vld [vmem:[%s149 + $0x150] sm:$0xff]
                %204 = vst [vmem:[%s150 + $0xd0] sm:$0xff] %v203
                %v205 = vld [vmem:[%s149 + $0x158] sm:$0xff]
                %206 = vst [vmem:[%s150 + $0xd8] sm:$0xff] %v205
                %v207 = vld [vmem:[%s149 + $0x160] sm:$0xff]
                %208 = vst [vmem:[%s150 + $0xe0] sm:$0xff] %v207
                %v209 = vld [vmem:[%s149 + $0x168] sm:$0xff]
                %210 = vst [vmem:[%s150 + $0xe8] sm:$0xff] %v209
                %v211 = vld [vmem:[%s149 + $0x170] sm:$0xff]
                %212 = vst [vmem:[%s150 + $0xf0] sm:$0xff] %v211
                %v213 = vld [vmem:[%s149 + $0x178] sm:$0xff]
                %214 = vst [vmem:[%s150 + $0xf8] sm:$0xff] %v213
                %v215 = vld [vmem:[%s149 + $0x200] sm:$0xff]
                %216 = vst [vmem:[%s150 + $0x100] sm:$0xff] %v215
                %v217 = vld [vmem:[%s149 + $0x208] sm:$0xff]
                %218 = vst [vmem:[%s150 + $0x108] sm:$0xff] %v217
                %v219 = vld [vmem:[%s149 + $0x210] sm:$0xff]
                %220 = vst [vmem:[%s150 + $0x110] sm:$0xff] %v219
                %v221 = vld [vmem:[%s149 + $0x218] sm:$0xff]
                %222 = vst [vmem:[%s150 + $0x118] sm:$0xff] %v221
                %v223 = vld [vmem:[%s149 + $0x220] sm:$0xff]
                %224 = vst [vmem:[%s150 + $0x120] sm:$0xff] %v223
                %v225 = vld [vmem:[%s149 + $0x228] sm:$0xff]
                %226 = vst [vmem:[%s150 + $0x128] sm:$0xff] %v225
                %v227 = vld [vmem:[%s149 + $0x230] sm:$0xff]
                %228 = vst [vmem:[%s150 + $0x130] sm:$0xff] %v227
                %v229 = vld [vmem:[%s149 + $0x238] sm:$0xff]
                %230 = vst [vmem:[%s150 + $0x138] sm:$0xff] %v229
                %v231 = vld [vmem:[%s149 + $0x240] sm:$0xff]
                %232 = vst [vmem:[%s150 + $0x140] sm:$0xff] %v231
                %v233 = vld [vmem:[%s149 + $0x248] sm:$0xff]
                %234 = vst [vmem:[%s150 + $0x148] sm:$0xff] %v233
                %v235 = vld [vmem:[%s149 + $0x250] sm:$0xff]
                %236 = vst [vmem:[%s150 + $0x150] sm:$0xff] %v235
                %v237 = vld [vmem:[%s149 + $0x258] sm:$0xff]
                %238 = vst [vmem:[%s150 + $0x158] sm:$0xff] %v237
                %v239 = vld [vmem:[%s149 + $0x260] sm:$0xff]
                %240 = vst [vmem:[%s150 + $0x160] sm:$0xff] %v239
                %v241 = vld [vmem:[%s149 + $0x268] sm:$0xff]
                %242 = vst [vmem:[%s150 + $0x168] sm:$0xff] %v241
                %v243 = vld [vmem:[%s149 + $0x270] sm:$0xff]
                %244 = vst [vmem:[%s150 + $0x170] sm:$0xff] %v243
                %v245 = vld [vmem:[%s149 + $0x278] sm:$0xff]
                %246 = vst [vmem:[%s150 + $0x178] sm:$0xff] %v245
                %v247 = vld [vmem:[%s149 + $0x300] sm:$0xff]
                %248 = vst [vmem:[%s150 + $0x180] sm:$0xff] %v247
                %v249 = vld [vmem:[%s149 + $0x308] sm:$0xff]
                %250 = vst [vmem:[%s150 + $0x188] sm:$0xff] %v249
                %v251 = vld [vmem:[%s149 + $0x310] sm:$0xff]
                %252 = vst [vmem:[%s150 + $0x190] sm:$0xff] %v251
                %v253 = vld [vmem:[%s149 + $0x318] sm:$0xff]
                %254 = vst [vmem:[%s150 + $0x198] sm:$0xff] %v253
                %v255 = vld [vmem:[%s149 + $0x320] sm:$0xff]
                %256 = vst [vmem:[%s150 + $0x1a0] sm:$0xff] %v255
                %v257 = vld [vmem:[%s149 + $0x328] sm:$0xff]
                %258 = vst [vmem:[%s150 + $0x1a8] sm:$0xff] %v257
                %v259 = vld [vmem:[%s149 + $0x330] sm:$0xff]
                %260 = vst [vmem:[%s150 + $0x1b0] sm:$0xff] %v259
                %v261 = vld [vmem:[%s149 + $0x338] sm:$0xff]
                %262 = vst [vmem:[%s150 + $0x1b8] sm:$0xff] %v261
                %v263 = vld [vmem:[%s149 + $0x340] sm:$0xff]
                %264 = vst [vmem:[%s150 + $0x1c0] sm:$0xff] %v263
                %v265 = vld [vmem:[%s149 + $0x348] sm:$0xff]
                %266 = vst [vmem:[%s150 + $0x1c8] sm:$0xff] %v265
                %v267 = vld [vmem:[%s149 + $0x350] sm:$0xff]
                %268 = vst [vmem:[%s150 + $0x1d0] sm:$0xff] %v267
                %v269 = vld [vmem:[%s149 + $0x358] sm:$0xff]
                %270 = vst [vmem:[%s150 + $0x1d8] sm:$0xff] %v269
                %v271 = vld [vmem:[%s149 + $0x360] sm:$0xff]
                %272 = vst [vmem:[%s150 + $0x1e0] sm:$0xff] %v271
                %v273 = vld [vmem:[%s149 + $0x368] sm:$0xff]
                %274 = vst [vmem:[%s150 + $0x1e8] sm:$0xff] %v273
                %v275 = vld [vmem:[%s149 + $0x370] sm:$0xff]
                %276 = vst [vmem:[%s150 + $0x1f0] sm:$0xff] %v275
                %v277 = vld [vmem:[%s149 + $0x378] sm:$0xff]
                %278 = vst [vmem:[%s150 + $0x1f8] sm:$0xff] %v277
              $region41: #{cnn_forward.4} parent=35 // loop_footer
                %s148 = sadd.s32 1, %s144
              $region42: #{cnn_forward.4} parent=35 // loop_footer_branch
                %143 = sbr.rel target = $region38
              $region43: #{cnn_forward.4} parent=35 // loop_exit
                _
            $region36: #{cnn_forward.4} parent=31 // pred_fallthru
              _
            // Predicated region
            $region44: #{cnn_forward.4} parent=31 // pred_check
              _
            $region45: #{cnn_forward.4} parent=31 // pred_check_branch
              %280 = sbr.rel target = $region47
            $region46: #{cnn_forward.4} parent=31 // pred_region
              _
            $region47: #{cnn_forward.4} parent=31 // pred_fallthru
              _
          $region32: #{cnn_forward.4} parent=27 // pred_fallthru
            _
          %281 = vnop
        $region28: #{cnn_forward.4} parent=23 // pred_fallthru
          _
      $region24: #{cnn_forward.4} parent=5 // pred_fallthru
        _
      %p282 = scmp.le.s32.totalorder 1, %s9
      %p283 = scmp.lt.s32.totalorder %s9, 3
      %p284 = pnand %p282, %p283
      %p285 = pneg %p284
      // Predicated region
      $region48: #{cnn_forward.4} parent=5 // pred_check
        _
      $region49: #{cnn_forward.4} parent=5 // pred_check_branch
        %287 = sbr.rel (%p284) target = $region51
      $region50: #{cnn_forward.4} parent=5 // pred_region
        %s288 = ssub.s32 %s9, 1
        %s289 = sand.u32 %s22, 1
        %s290 = sand.u32 %s22, 1
        %s291 = smul.addr %s290, 512
        %s292 = scalar_lea.vmem [#allocation2], %s291
        // Predicated region
        $region52: #{cnn_forward.4} parent=50 // pred_check
          %p293 = pneg %p35
        $region53: #{cnn_forward.4} parent=50 // pred_check_branch
          %295 = sbr.rel (%p293) target = $region55
        $region54: #{cnn_forward.4} parent=50 // pred_region
          _
        $region55: #{cnn_forward.4} parent=50 // pred_fallthru
          _
        %s296 = sand.u32 %s22, 1
        %s297 = sand.u32 %s22, 1
        %s298 = smul.addr %s297, 512
        %s299 = scalar_lea.vmem [#allocation2], %s298
        %p300 = pneg %p35
        %p301 = pneg %p32
        %p302 = pneg %p56
        %p303 = pneg %p53
        %p304 = pneg %p77
        %p305 = pneg %p74
        %p306 = pneg %p103
        %p307 = pneg %p100
        %s308 = smul.u32 8, %s14
        %p309 = scmp.lt.s32.totalorder %s308, 15
        %s310 = scalar_select %p309, %s308, 15
        %s311 = smul.addr %s310, 4
        %s312 = scalar_lea.vmem %s3, %s311
        %s313 = smul.u32 8, %s14
        %s314 = smul.u32 8, %s14
        %p315 = scmp.lt.s32.totalorder %s314, 15
        %s316 = scalar_select %p315, %s314, 15
        %s317 = smul.addr %s316, 4
        %s318 = scalar_lea.vmem %s3, %s317
        %s319 = smul.u32 8, %s14
        %v321 = vld [vmem:[%s1] sm:$0xf]
        %v322 = vld [vmem:[%s1 + $0x4] sm:$0xf]
        %v323 = vld [vmem:[%s1 + $0x8] sm:$0xf]
        %v324 = vld [vmem:[%s1 + $0xc] sm:$0xf]
        %v325 = vld [vmem:[%s1 + $0x10] sm:$0xf]
        %v326 = vld [vmem:[%s1 + $0x14] sm:$0xf]
        %v327 = vld [vmem:[%s1 + $0x18] sm:$0xf]
        %v328 = vld [vmem:[%s1 + $0x1c] sm:$0xf]
        %v329 = vld [vmem:[%s1 + $0x20] sm:$0xf]
        %v330 = vld [vmem:[%s1 + $0x24] sm:$0xf]
        %v331 = vld [vmem:[%s1 + $0x28] sm:$0xf]
        %v332 = vld [vmem:[%s1 + $0x2c] sm:$0xf]
        %v333 = vld [vmem:[%s1 + $0x30] sm:$0xf]
        %v334 = vld [vmem:[%s1 + $0x34] sm:$0xf]
        %v335 = vld [vmem:[%s1 + $0x38] sm:$0xf]
        %v336 = vld [vmem:[%s1 + $0x3c] sm:$0xf]
        %v337 = vld [vmem:[%s1 + $0x40] sm:$0xf]
        %v338 = vld [vmem:[%s1 + $0x44] sm:$0xf]
        %v339 = vld [vmem:[%s1 + $0x48] sm:$0xf]
        %v340 = vld [vmem:[%s1 + $0x4c] sm:$0xf]
        %v341 = vld [vmem:[%s1 + $0x50] sm:$0xf]
        %v342 = vld [vmem:[%s1 + $0x54] sm:$0xf]
        %v343 = vld [vmem:[%s1 + $0x58] sm:$0xf]
        %v344 = vld [vmem:[%s1 + $0x5c] sm:$0xf]
        %v345 = vld [vmem:[%s1 + $0x60] sm:$0xf]
        %v346 = vld [vmem:[%s1 + $0x64] sm:$0xf]
        %v347 = vld [vmem:[%s1 + $0x68] sm:$0xf]
        %v348 = vld [vmem:[%s1 + $0x6c] sm:$0xf]
        %v349 = vld [vmem:[%s1 + $0x70] sm:$0xf]
        %v350 = vld [vmem:[%s1 + $0x74] sm:$0xf]
        %v351 = vld [vmem:[%s1 + $0x78] sm:$0xf]
        %v352 = vld [vmem:[%s1 + $0x7c] sm:$0xf]
        %v353 = vld [vmem:[%s1 + $0x80] sm:$0xf]
        %v354 = vld [vmem:[%s1 + $0x84] sm:$0xf]
        %v355 = vld [vmem:[%s1 + $0x88] sm:$0xf]
        %v356 = vld [vmem:[%s1 + $0x8c] sm:$0xf]
        %v357 = vld [vmem:[%s1 + $0x90] sm:$0xf]
        %v358 = vld [vmem:[%s1 + $0x94] sm:$0xf]
        %v359 = vld [vmem:[%s1 + $0x98] sm:$0xf]
        %v360 = vld [vmem:[%s1 + $0x9c] sm:$0xf]
        %v361 = vld [vmem:[%s1 + $0xa0] sm:$0xf]
        %v362 = vld [vmem:[%s1 + $0xa4] sm:$0xf]
        %v363 = vld [vmem:[%s1 + $0xa8] sm:$0xf]
        %v364 = vld [vmem:[%s1 + $0xac] sm:$0xf]
        %v365 = vld [vmem:[%s1 + $0xb0] sm:$0xf]
        %v366 = vld [vmem:[%s1 + $0xb4] sm:$0xf]
        %v367 = vld [vmem:[%s1 + $0xb8] sm:$0xf]
        %v368 = vld [vmem:[%s1 + $0xbc] sm:$0xf]
        %v369 = vld [vmem:[%s1 + $0xc0] sm:$0xf]
        %v370 = vld [vmem:[%s1 + $0xc4] sm:$0xf]
        %v371 = vld [vmem:[%s292] sm:$0xff]
        %v372 = vld [vmem:[%s292 + $0x8] sm:$0xff]
        %v373 = vld [vmem:[%s292 + $0x10] sm:$0xff]
        %v374 = vld [vmem:[%s292 + $0x18] sm:$0xff]
        %v375 = vld [vmem:[%s292 + $0x20] sm:$0xff]
        %v376 = vld [vmem:[%s292 + $0x28] sm:$0xff]
        %v377 = vld [vmem:[%s292 + $0x30] sm:$0xff]
        %v378 = vld [vmem:[%s292 + $0x38] sm:$0xff]
        %v379 = vld [vmem:[%s292 + $0x40] sm:$0xff]
        %v380 = vld [vmem:[%s292 + $0x48] sm:$0xff]
        %v381 = vld [vmem:[%s292 + $0x50] sm:$0xff]
        %v382 = vld [vmem:[%s292 + $0x58] sm:$0xff]
        %v383 = vld [vmem:[%s292 + $0x60] sm:$0xff]
        %v384 = vld [vmem:[%s292 + $0x68] sm:$0xff]
        %v385 = vld [vmem:[%s292 + $0x70] sm:$0xff]
        %v386 = vld [vmem:[%s292 + $0x78] sm:$0xff]
        %v403 = vunpack.c.l.b16 %v371
        %v404 = vunpack.c.h.b16 %v371
        %v405 = vunpack.c.l.b16 %v372
        %v406 = vunpack.c.h.b16 %v372
        %v407 = vunpack.c.l.b16 %v373
        %v408 = vunpack.c.h.b16 %v373
        %v409 = vunpack.c.l.b16 %v374
        %v410 = vunpack.c.h.b16 %v374
        %v411 = vunpack.c.l.b16 %v375
        %v412 = vunpack.c.h.b16 %v375
        %v413 = vunpack.c.l.b16 %v376
        %v414 = vunpack.c.h.b16 %v376
        %v415 = vunpack.c.l.b16 %v377
        %v416 = vunpack.c.h.b16 %v377
        %v417 = vunpack.c.l.b16 %v378
        %v418 = vunpack.c.h.b16 %v378
        %v419 = vunpack.c.l.b16 %v379
        %v420 = vunpack.c.h.b16 %v379
        %v421 = vunpack.c.l.b16 %v380
        %v422 = vunpack.c.h.b16 %v380
        %v423 = vunpack.c.l.b16 %v381
        %v424 = vunpack.c.h.b16 %v381
        %v425 = vunpack.c.l.b16 %v382
        %v426 = vunpack.c.h.b16 %v382
        %v427 = vunpack.c.l.b16 %v383
        %v428 = vunpack.c.h.b16 %v383
        %v429 = vunpack.c.l.b16 %v384
        %v430 = vunpack.c.h.b16 %v384
        %v431 = vunpack.c.l.b16 %v385
        %v432 = vunpack.c.h.b16 %v385
        %v433 = vunpack.c.l.b16 %v386
        %v434 = vunpack.c.h.b16 %v386
        %v435 = vpack.c.b16 %v407, %v403
        %v436 = vpack.c.b16 %v408, %v404
        %v437 = vpack.c.b16 %v409, %v405
        %v438 = vpack.c.b16 %v410, %v406
        %v439 = vpack.c.b16 %v415, %v411
        %v440 = vpack.c.b16 %v416, %v412
        %v441 = vpack.c.b16 %v417, %v413
        %v442 = vpack.c.b16 %v418, %v414
        %v443 = vpack.c.b16 %v423, %v419
        %v444 = vpack.c.b16 %v424, %v420
        %v445 = vpack.c.b16 %v425, %v421
        %v446 = vpack.c.b16 %v426, %v422
        %v447 = vpack.c.b16 %v431, %v427
        %v448 = vpack.c.b16 %v432, %v428
        %v449 = vpack.c.b16 %v433, %v429
        %v450 = vpack.c.b16 %v434, %v430
        %v513 = vunpack.c.l.b16 %v321
        %v514 = vunpack.c.l.b16 %v322
        %v515 = vunpack.c.l.b16 %v323
        %v516 = vunpack.c.l.b16 %v324
        %v517 = vunpack.c.l.b16 %v325
        %v518 = vunpack.c.l.b16 %v326
        %v519 = vunpack.c.l.b16 %v327
        %v520 = vunpack.c.l.b16 %v328
        %v521 = vunpack.c.l.b16 %v329
        %v522 = vunpack.c.l.b16 %v330
        %v523 = vunpack.c.l.b16 %v331
        %v524 = vunpack.c.l.b16 %v332
        %v525 = vunpack.c.l.b16 %v333
        %v526 = vunpack.c.l.b16 %v334
        %v527 = vunpack.c.l.b16 %v335
        %v528 = vunpack.c.l.b16 %v336
        %v529 = vunpack.c.l.b16 %v337
        %v530 = vunpack.c.l.b16 %v338
        %v531 = vunpack.c.l.b16 %v339
        %v532 = vunpack.c.l.b16 %v340
        %v533 = vunpack.c.l.b16 %v341
        %v534 = vunpack.c.l.b16 %v342
        %v535 = vunpack.c.l.b16 %v343
        %v536 = vunpack.c.l.b16 %v344
        %v537 = vunpack.c.l.b16 %v345
        %v538 = vunpack.c.l.b16 %v346
        %v539 = vunpack.c.l.b16 %v347
        %v540 = vunpack.c.l.b16 %v348
        %v541 = vunpack.c.l.b16 %v349
        %v542 = vunpack.c.l.b16 %v350
        %v543 = vunpack.c.l.b16 %v351
        %v544 = vunpack.c.l.b16 %v352
        %v545 = vunpack.c.l.b16 %v353
        %v546 = vunpack.c.l.b16 %v354
        %v547 = vunpack.c.l.b16 %v355
        %v548 = vunpack.c.l.b16 %v356
        %v549 = vunpack.c.l.b16 %v357
        %v550 = vunpack.c.l.b16 %v358
        %v551 = vunpack.c.l.b16 %v359
        %v552 = vunpack.c.l.b16 %v360
        %v553 = vunpack.c.l.b16 %v361
        %v554 = vunpack.c.l.b16 %v362
        %v555 = vunpack.c.l.b16 %v363
        %v556 = vunpack.c.l.b16 %v364
        %v557 = vunpack.c.l.b16 %v365
        %v558 = vunpack.c.l.b16 %v366
        %v559 = vunpack.c.l.b16 %v367
        %v560 = vunpack.c.l.b16 %v368
        %v561 = vunpack.c.l.b16 %v369
        %v562 = vunpack.c.l.b16 %v370
        %v563 = vpack.c.b16 %v514, %v513
        %v564 = vpack.c.b16 %v516, %v515
        %v565 = vpack.c.b16 %v518, %v517
        %v566 = vpack.c.b16 %v520, %v519
        %v567 = vpack.c.b16 %v522, %v521
        %v568 = vpack.c.b16 %v524, %v523
        %v569 = vpack.c.b16 %v526, %v525
        %v570 = vpack.c.b16 %v528, %v527
        %v571 = vpack.c.b16 %v530, %v529
        %v572 = vpack.c.b16 %v532, %v531
        %v573 = vpack.c.b16 %v534, %v533
        %v574 = vpack.c.b16 %v536, %v535
        %v575 = vpack.c.b16 %v538, %v537
        %v576 = vpack.c.b16 %v540, %v539
        %v577 = vpack.c.b16 %v542, %v541
        %v578 = vpack.c.b16 %v544, %v543
        %v579 = vpack.c.b16 %v546, %v545
        %v580 = vpack.c.b16 %v548, %v547
        %v581 = vpack.c.b16 %v550, %v549
        %v582 = vpack.c.b16 %v552, %v551
        %v583 = vpack.c.b16 %v554, %v553
        %v584 = vpack.c.b16 %v556, %v555
        %v585 = vpack.c.b16 %v558, %v557
        %v586 = vpack.c.b16 %v560, %v559
        %v587 = vpack.c.b16 %v562, %v561
        %vm613 = vcmask 130048
        %v615 = vsel %vm613, %v438, 0
        %v618 = vsel %vm613, %v442, 0
        %v621 = vsel %vm613, %v446, 0
        %v624 = vsel %vm613, %v450, 0
        %626 = vmatprep.subr.bf16.mxu0 0
        %627 = vmatpush1.bf16.msra.mxu0 %v563
        %628 = vmatprep.subr.bf16.mxu0 0
        %629 = vmatpush1.bf16.msra.mxu0 %v564
        %630 = vmatprep.subr.bf16.mxu0 0
        %631 = vmatpush1.bf16.msra.mxu0 %v565
        %632 = vmatprep.subr.bf16.mxu0 0
        %633 = vmatpush1.bf16.msra.mxu0 %v566
        %634 = vmatprep.subr.bf16.mxu0 0
        %635 = vmatpush1.bf16.msra.mxu0 %v567
        %636 = vmatprep.subr.bf16.mxu0 0
        %637 = vmatpush1.bf16.msra.mxu0 %v568
        %638 = vmatprep.subr.bf16.mxu0 0
        %639 = vmatpush1.bf16.msra.mxu0 %v569
        %640 = vmatprep.subr.bf16.mxu0 0
        %641 = vmatpush1.bf16.msra.mxu0 %v570
        %642 = vmatprep.subr.bf16.mxu0 0
        %643 = vmatpush1.bf16.msra.mxu0 %v571
        %644 = vmatprep.subr.bf16.mxu0 0
        %645 = vmatpush1.bf16.msra.mxu0 %v572
        %646 = vmatprep.subr.bf16.mxu0 0
        %647 = vmatpush1.bf16.msra.mxu0 %v573
        %648 = vmatprep.subr.bf16.mxu0 0
        %649 = vmatpush1.bf16.msra.mxu0 %v574
        %650 = vmatprep.subr.bf16.mxu0 0
        %651 = vmatpush1.bf16.msra.mxu0 %v575
        %652 = vmatprep.subr.bf16.mxu0 0
        %653 = vmatpush1.bf16.msra.mxu0 %v576
        %654 = vmatprep.subr.bf16.mxu0 0
        %655 = vmatpush1.bf16.msra.mxu0 %v577
        %656 = vmatprep.subr.bf16.mxu0 0
        %657 = vmatpush1.bf16.msra.mxu0 %v578
        %658 = vmatprep.mubr.bf16.mxu0 %v436
        %659 = vmatmul.mubr.bf16.gmra.mrb[0].mxu0 %v435
        %v660 = vpop.f32.mrb[0].mxu0
        %v661 = vadd.f32 0.0, %v660
        %v662 = vpop.f32.mrb[0].mxu0
        %v663 = vpop.f32.mrb[0].mxu0
        %v664 = vadd.f32 0.0, %v663
        %v665 = vpop.f32.mrb[0].mxu0
        %666 = vmatprep.mubr.bf16.mxu0 %v440
        %667 = vmatmul.mubr.bf16.gmra.mrb[0].mxu0 %v439
        %v668 = vpop.f32.mrb[0].mxu0
        %v669 = vadd.f32 0.0, %v668
        %v670 = vpop.f32.mrb[0].mxu0
        %v671 = vpop.f32.mrb[0].mxu0
        %v672 = vadd.f32 0.0, %v671
        %v673 = vpop.f32.mrb[0].mxu0
        %674 = vmatprep.mubr.bf16.mxu0 %v444
        %675 = vmatmul.mubr.bf16.gmra.mrb[0].mxu0 %v443
        %v676 = vpop.f32.mrb[0].mxu0
        %v677 = vadd.f32 0.0, %v676
        %v678 = vpop.f32.mrb[0].mxu0
        %v679 = vpop.f32.mrb[0].mxu0
        %v680 = vadd.f32 0.0, %v679
        %v681 = vpop.f32.mrb[0].mxu0
        %682 = vmatprep.mubr.bf16.mxu0 %v448
        %683 = vmatmul.mubr.bf16.gmra.mrb[0].mxu0 %v447
        %v684 = vpop.f32.mrb[0].mxu0
        %v685 = vadd.f32 0.0, %v684
        %v686 = vpop.f32.mrb[0].mxu0
        %v687 = vpop.f32.mrb[0].mxu0
        %v688 = vadd.f32 0.0, %v687
        %v689 = vpop.f32.mrb[0].mxu0
        %690 = vdwg.mxu0
        %691 = vmatprep.subr.bf16.mxu0 0
        %692 = vmatpush1.bf16.msra.mxu0 %v579
        %693 = vmatprep.subr.bf16.mxu0 0
        %694 = vmatpush1.bf16.msra.mxu0 %v580
        %695 = vmatprep.subr.bf16.mxu0 0
        %696 = vmatpush1.bf16.msra.mxu0 %v581
        %697 = vmatprep.subr.bf16.mxu0 0
        %698 = vmatpush1.bf16.msra.mxu0 %v582
        %699 = vmatprep.subr.bf16.mxu0 0
        %700 = vmatpush1.bf16.msra.mxu0 %v583
        %701 = vmatprep.subr.bf16.mxu0 0
        %702 = vmatpush1.bf16.msra.mxu0 %v584
        %703 = vmatprep.subr.bf16.mxu0 0
        %704 = vmatpush1.bf16.msra.mxu0 %v585
        %705 = vmatprep.subr.bf16.mxu0 0
        %706 = vmatpush1.bf16.msra.mxu0 %v586
        %707 = vmatprep.subr.bf16.mxu0 0
        %708 = vmatpush1.bf16.msra.mxu0 %v587
        %709 = vmatprep.subr.bf16.mxu0 0
        %710 = vmatpush1.bf16.msra.mxu0 0
        %711 = vmatprep.subr.bf16.mxu0 0
        %712 = vmatpush1.bf16.msra.mxu0 0
        %713 = vmatprep.subr.bf16.mxu0 0
        %714 = vmatpush1.bf16.msra.mxu0 0
        %715 = vmatprep.subr.bf16.mxu0 0
        %716 = vmatpush1.bf16.msra.mxu0 0
        %717 = vmatprep.subr.bf16.mxu0 0
        %718 = vmatpush1.bf16.msra.mxu0 0
        %719 = vmatprep.subr.bf16.mxu0 0
        %720 = vmatpush1.bf16.msra.mxu0 0
        %721 = vmatprep.subr.bf16.mxu0 0
        %722 = vmatpush1.bf16.msra.mxu0 0
        %723 = vmatprep.mubr.bf16.mxu0 %v615
        %724 = vmatmul.mubr.bf16.gmra.mrb[0].mxu0 %v437
        %v725 = vpop.f32.mrb[0].mxu0
        %v726 = vadd.f32 %v661, %v725
        %v727 = vpop.f32.mrb[0].mxu0
        %v728 = vpop.f32.mrb[0].mxu0
        %v729 = vadd.f32 %v664, %v728
        %v730 = vpop.f32.mrb[0].mxu0
        %731 = vmatprep.mubr.bf16.mxu0 %v618
        %732 = vmatmul.mubr.bf16.gmra.mrb[0].mxu0 %v441
        %v733 = vpop.f32.mrb[0].mxu0
        %v734 = vadd.f32 %v669, %v733
        %v735 = vpop.f32.mrb[0].mxu0
        %v736 = vpop.f32.mrb[0].mxu0
        %v737 = vadd.f32 %v672, %v736
        %v738 = vpop.f32.mrb[0].mxu0
        %739 = vmatprep.mubr.bf16.mxu0 %v621
        %740 = vmatmul.mubr.bf16.gmra.mrb[0].mxu0 %v445
        %v741 = vpop.f32.mrb[0].mxu0
        %v742 = vadd.f32 %v677, %v741
        %v743 = vpop.f32.mrb[0].mxu0
        %v744 = vpop.f32.mrb[0].mxu0
        %v745 = vadd.f32 %v680, %v744
        %v746 = vpop.f32.mrb[0].mxu0
        %747 = vmatprep.mubr.bf16.mxu0 %v624
        %748 = vmatmul.mubr.bf16.gmra.mrb[0].mxu0 %v449
        %v749 = vpop.f32.mrb[0].mxu0
        %v750 = vadd.f32 %v685, %v749
        %v751 = vpop.f32.mrb[0].mxu0
        %v752 = vpop.f32.mrb[0].mxu0
        %v753 = vadd.f32 %v688, %v752
        %v754 = vpop.f32.mrb[0].mxu0
        %755 = vdwg.mxu0
        %s756 = scalar_lea.vmem %s292, 128 [#allocation2]
        %v757 = vld [vmem:[%s756] sm:$0xff]
        %v758 = vld [vmem:[%s756 + $0x8] sm:$0xff]
        %v759 = vld [vmem:[%s756 + $0x10] sm:$0xff]
        %v760 = vld [vmem:[%s756 + $0x18] sm:$0xff]
        %v761 = vld [vmem:[%s756 + $0x20] sm:$0xff]
        %v762 = vld [vmem:[%s756 + $0x28] sm:$0xff]
        %v763 = vld [vmem:[%s756 + $0x30] sm:$0xff]
        %v764 = vld [vmem:[%s756 + $0x38] sm:$0xff]
        %v765 = vld [vmem:[%s756 + $0x40] sm:$0xff]
        %v766 = vld [vmem:[%s756 + $0x48] sm:$0xff]
        %v767 = vld [vmem:[%s756 + $0x50] sm:$0xff]
        %v768 = vld [vmem:[%s756 + $0x58] sm:$0xff]
        %v769 = vld [vmem:[%s756 + $0x60] sm:$0xff]
        %v770 = vld [vmem:[%s756 + $0x68] sm:$0xff]
        %v771 = vld [vmem:[%s756 + $0x70] sm:$0xff]
        %v772 = vld [vmem:[%s756 + $0x78] sm:$0xff]
        %v789 = vunpack.c.l.b16 %v757
        %v790 = vunpack.c.h.b16 %v757
        %v791 = vunpack.c.l.b16 %v758
        %v792 = vunpack.c.h.b16 %v758
        %v793 = vunpack.c.l.b16 %v759
        %v794 = vunpack.c.h.b16 %v759
        %v795 = vunpack.c.l.b16 %v760
        %v796 = vunpack.c.h.b16 %v760
        %v797 = vunpack.c.l.b16 %v761
        %v798 = vunpack.c.h.b16 %v761
        %v799 = vunpack.c.l.b16 %v762
        %v800 = vunpack.c.h.b16 %v762
        %v801 = vunpack.c.l.b16 %v763
        %v802 = vunpack.c.h.b16 %v763
        %v803 = vunpack.c.l.b16 %v764
        %v804 = vunpack.c.h.b16 %v764
        %v805 = vunpack.c.l.b16 %v765
        %v806 = vunpack.c.h.b16 %v765
        %v807 = vunpack.c.l.b16 %v766
        %v808 = vunpack.c.h.b16 %v766
        %v809 = vunpack.c.l.b16 %v767
        %v810 = vunpack.c.h.b16 %v767
        %v811 = vunpack.c.l.b16 %v768
        %v812 = vunpack.c.h.b16 %v768
        %v813 = vunpack.c.l.b16 %v769
        %v814 = vunpack.c.h.b16 %v769
        %v815 = vunpack.c.l.b16 %v770
        %v816 = vunpack.c.h.b16 %v770
        %v817 = vunpack.c.l.b16 %v771
        %v818 = vunpack.c.h.b16 %v771
        %v819 = vunpack.c.l.b16 %v772
        %v820 = vunpack.c.h.b16 %v772
        %v821 = vpack.c.b16 %v793, %v789
        %v822 = vpack.c.b16 %v794, %v790
        %v823 = vpack.c.b16 %v795, %v791
        %v824 = vpack.c.b16 %v796, %v792
        %v825 = vpack.c.b16 %v801, %v797
        %v826 = vpack.c.b16 %v802, %v798
        %v827 = vpack.c.b16 %v803, %v799
        %v828 = vpack.c.b16 %v804, %v800
        %v829 = vpack.c.b16 %v809, %v805
        %v830 = vpack.c.b16 %v810, %v806
        %v831 = vpack.c.b16 %v811, %v807
        %v832 = vpack.c.b16 %v812, %v808
        %v833 = vpack.c.b16 %v817, %v813
        %v834 = vpack.c.b16 %v818, %v814
        %v835 = vpack.c.b16 %v819, %v815
        %v836 = vpack.c.b16 %v820, %v816
        %v850 = vsel %vm613, %v824, 0
        %v853 = vsel %vm613, %v828, 0
        %v856 = vsel %vm613, %v832, 0
        %v859 = vsel %vm613, %v836, 0
        %861 = vmatprep.subr.bf16.mxu0 0
        %862 = vmatpush1.bf16.msra.mxu0 %v563
        %863 = vmatprep.subr.bf16.mxu0 0
        %864 = vmatpush1.bf16.msra.mxu0 %v564
        %865 = vmatprep.subr.bf16.mxu0 0
        %866 = vmatpush1.bf16.msra.mxu0 %v565
        %867 = vmatprep.subr.bf16.mxu0 0
        %868 = vmatpush1.bf16.msra.mxu0 %v566
        %869 = vmatprep.subr.bf16.mxu0 0
        %870 = vmatpush1.bf16.msra.mxu0 %v567
        %871 = vmatprep.subr.bf16.mxu0 0
        %872 = vmatpush1.bf16.msra.mxu0 %v568
        %873 = vmatprep.subr.bf16.mxu0 0
        %874 = vmatpush1.bf16.msra.mxu0 %v569
        %875 = vmatprep.subr.bf16.mxu0 0
        %876 = vmatpush1.bf16.msra.mxu0 %v570
        %877 = vmatprep.subr.bf16.mxu0 0
        %878 = vmatpush1.bf16.msra.mxu0 %v571
        %879 = vmatprep.subr.bf16.mxu0 0
        %880 = vmatpush1.bf16.msra.mxu0 %v572
        %881 = vmatprep.subr.bf16.mxu0 0
        %882 = vmatpush1.bf16.msra.mxu0 %v573
        %883 = vmatprep.subr.bf16.mxu0 0
        %884 = vmatpush1.bf16.msra.mxu0 %v574
        %885 = vmatprep.subr.bf16.mxu0 0
        %886 = vmatpush1.bf16.msra.mxu0 %v575
        %887 = vmatprep.subr.bf16.mxu0 0
        %888 = vmatpush1.bf16.msra.mxu0 %v576
        %889 = vmatprep.subr.bf16.mxu0 0
        %890 = vmatpush1.bf16.msra.mxu0 %v577
        %891 = vmatprep.subr.bf16.mxu0 0
        %892 = vmatpush1.bf16.msra.mxu0 %v578
        %893 = vmatprep.mubr.bf16.mxu0 %v822
        %894 = vmatmul.mubr.bf16.gmra.mrb[0].mxu0 %v821
        %v895 = vpop.f32.mrb[0].mxu0
        %v896 = vadd.f32 0.0, %v895
        %v897 = vpop.f32.mrb[0].mxu0
        %v898 = vpop.f32.mrb[0].mxu0
        %v899 = vadd.f32 0.0, %v898
        %v900 = vpop.f32.mrb[0].mxu0
        %901 = vmatprep.mubr.bf16.mxu0 %v826
        %902 = vmatmul.mubr.bf16.gmra.mrb[0].mxu0 %v825
        %v903 = vpop.f32.mrb[0].mxu0
        %v904 = vadd.f32 0.0, %v903
        %v905 = vpop.f32.mrb[0].mxu0
        %v906 = vpop.f32.mrb[0].mxu0
        %v907 = vadd.f32 0.0, %v906
        %v908 = vpop.f32.mrb[0].mxu0
        %909 = vmatprep.mubr.bf16.mxu0 %v830
        %910 = vmatmul.mubr.bf16.gmra.mrb[0].mxu0 %v829
        %v911 = vpop.f32.mrb[0].mxu0
        %v912 = vadd.f32 0.0, %v911
        %v913 = vpop.f32.mrb[0].mxu0
        %v914 = vpop.f32.mrb[0].mxu0
        %v915 = vadd.f32 0.0, %v914
        %v916 = vpop.f32.mrb[0].mxu0
        %917 = vmatprep.mubr.bf16.mxu0 %v834
        %918 = vmatmul.mubr.bf16.gmra.mrb[0].mxu0 %v833
        %v919 = vpop.f32.mrb[0].mxu0
        %v920 = vadd.f32 0.0, %v919
        %v921 = vpop.f32.mrb[0].mxu0
        %v922 = vpop.f32.mrb[0].mxu0
        %v923 = vadd.f32 0.0, %v922
        %v924 = vpop.f32.mrb[0].mxu0
        %925 = vdwg.mxu0
        %926 = vmatprep.subr.bf16.mxu0 0
        %927 = vmatpush1.bf16.msra.mxu0 %v579
        %928 = vmatprep.subr.bf16.mxu0 0
        %929 = vmatpush1.bf16.msra.mxu0 %v580
        %930 = vmatprep.subr.bf16.mxu0 0
        %931 = vmatpush1.bf16.msra.mxu0 %v581
        %932 = vmatprep.subr.bf16.mxu0 0
        %933 = vmatpush1.bf16.msra.mxu0 %v582
        %934 = vmatprep.subr.bf16.mxu0 0
        %935 = vmatpush1.bf16.msra.mxu0 %v583
        %936 = vmatprep.subr.bf16.mxu0 0
        %937 = vmatpush1.bf16.msra.mxu0 %v584
        %938 = vmatprep.subr.bf16.mxu0 0
        %939 = vmatpush1.bf16.msra.mxu0 %v585
        %940 = vmatprep.subr.bf16.mxu0 0
        %941 = vmatpush1.bf16.msra.mxu0 %v586
        %942 = vmatprep.subr.bf16.mxu0 0
        %943 = vmatpush1.bf16.msra.mxu0 %v587
        %944 = vmatprep.subr.bf16.mxu0 0
        %945 = vmatpush1.bf16.msra.mxu0 0
        %946 = vmatprep.subr.bf16.mxu0 0
        %947 = vmatpush1.bf16.msra.mxu0 0
        %948 = vmatprep.subr.bf16.mxu0 0
        %949 = vmatpush1.bf16.msra.mxu0 0
        %950 = vmatprep.subr.bf16.mxu0 0
        %951 = vmatpush1.bf16.msra.mxu0 0
        %952 = vmatprep.subr.bf16.mxu0 0
        %953 = vmatpush1.bf16.msra.mxu0 0
        %954 = vmatprep.subr.bf16.mxu0 0
        %955 = vmatpush1.bf16.msra.mxu0 0
        %956 = vmatprep.subr.bf16.mxu0 0
        %957 = vmatpush1.bf16.msra.mxu0 0
        %958 = vmatprep.mubr.bf16.mxu0 %v850
        %959 = vmatmul.mubr.bf16.gmra.mrb[0].mxu0 %v823
        %v960 = vpop.f32.mrb[0].mxu0
        %v961 = vadd.f32 %v896, %v960
        %v962 = vpop.f32.mrb[0].mxu0
        %v963 = vpop.f32.mrb[0].mxu0
        %v964 = vadd.f32 %v899, %v963
        %v965 = vpop.f32.mrb[0].mxu0
        %966 = vmatprep.mubr.bf16.mxu0 %v853
        %967 = vmatmul.mubr.bf16.gmra.mrb[0].mxu0 %v827
        %v968 = vpop.f32.mrb[0].mxu0
        %v969 = vadd.f32 %v904, %v968
        %v970 = vpop.f32.mrb[0].mxu0
        %v971 = vpop.f32.mrb[0].mxu0
        %v972 = vadd.f32 %v907, %v971
        %v973 = vpop.f32.mrb[0].mxu0
        %974 = vmatprep.mubr.bf16.mxu0 %v856
        %975 = vmatmul.mubr.bf16.gmra.mrb[0].mxu0 %v831
        %v976 = vpop.f32.mrb[0].mxu0
        %v977 = vadd.f32 %v912, %v976
        %v978 = vpop.f32.mrb[0].mxu0
        %v979 = vpop.f32.mrb[0].mxu0
        %v980 = vadd.f32 %v915, %v979
        %v981 = vpop.f32.mrb[0].mxu0
        %982 = vmatprep.mubr.bf16.mxu0 %v859
        %983 = vmatmul.mubr.bf16.gmra.mrb[0].mxu0 %v835
        %v984 = vpop.f32.mrb[0].mxu0
        %v985 = vadd.f32 %v920, %v984
        %v986 = vpop.f32.mrb[0].mxu0
        %v987 = vpop.f32.mrb[0].mxu0
        %v988 = vadd.f32 %v923, %v987
        %v989 = vpop.f32.mrb[0].mxu0
        %990 = vdwg.mxu0
        %v991 = vmax.f32 %v726, %v961
        %v992 = vmax.f32 %v729, %v964
        %v993 = vmax.f32 %v734, %v969
        %v994 = vmax.f32 %v737, %v972
        %v995 = vmax.f32 %v742, %v977
        %v996 = vmax.f32 %v745, %v980
        %v997 = vmax.f32 %v750, %v985
        %v998 = vmax.f32 %v753, %v988
        %s999 = scalar_lea.vmem %s292, 256 [#allocation2]
        %v1000 = vld [vmem:[%s999] sm:$0xff]
        %v1001 = vld [vmem:[%s999 + $0x8] sm:$0xff]
        %v1002 = vld [vmem:[%s999 + $0x10] sm:$0xff]
        %v1003 = vld [vmem:[%s999 + $0x18] sm:$0xff]
        %v1004 = vld [vmem:[%s999 + $0x20] sm:$0xff]
        %v1005 = vld [vmem:[%s999 + $0x28] sm:$0xff]
        %v1006 = vld [vmem:[%s999 + $0x30] sm:$0xff]
        %v1007 = vld [vmem:[%s999 + $0x38] sm:$0xff]
        %v1008 = vld [vmem:[%s999 + $0x40] sm:$0xff]
        %v1009 = vld [vmem:[%s999 + $0x48] sm:$0xff]
        %v1010 = vld [vmem:[%s999 + $0x50] sm:$0xff]
        %v1011 = vld [vmem:[%s999 + $0x58] sm:$0xff]
        %v1012 = vld [vmem:[%s999 + $0x60] sm:$0xff]
        %v1013 = vld [vmem:[%s999 + $0x68] sm:$0xff]
        %v1014 = vld [vmem:[%s999 + $0x70] sm:$0xff]
        %v1015 = vld [vmem:[%s999 + $0x78] sm:$0xff]
        %v1032 = vunpack.c.l.b16 %v1000
        %v1033 = vunpack.c.h.b16 %v1000
        %v1034 = vunpack.c.l.b16 %v1001
        %v1035 = vunpack.c.h.b16 %v1001
        %v1036 = vunpack.c.l.b16 %v1002
        %v1037 = vunpack.c.h.b16 %v1002
        %v1038 = vunpack.c.l.b16 %v1003
        %v1039 = vunpack.c.h.b16 %v1003
        %v1040 = vunpack.c.l.b16 %v1004
        %v1041 = vunpack.c.h.b16 %v1004
        %v1042 = vunpack.c.l.b16 %v1005
        %v1043 = vunpack.c.h.b16 %v1005
        %v1044 = vunpack.c.l.b16 %v1006
        %v1045 = vunpack.c.h.b16 %v1006
        %v1046 = vunpack.c.l.b16 %v1007
        %v1047 = vunpack.c.h.b16 %v1007
        %v1048 = vunpack.c.l.b16 %v1008
        %v1049 = vunpack.c.h.b16 %v1008
        %v1050 = vunpack.c.l.b16 %v1009
        %v1051 = vunpack.c.h.b16 %v1009
        %v1052 = vunpack.c.l.b16 %v1010
        %v1053 = vunpack.c.h.b16 %v1010
        %v1054 = vunpack.c.l.b16 %v1011
        %v1055 = vunpack.c.h.b16 %v1011
        %v1056 = vunpack.c.l.b16 %v1012
        %v1057 = vunpack.c.h.b16 %v1012
        %v1058 = vunpack.c.l.b16 %v1013
        %v1059 = vunpack.c.h.b16 %v1013
        %v1060 = vunpack.c.l.b16 %v1014
        %v1061 = vunpack.c.h.b16 %v1014
        %v1062 = vunpack.c.l.b16 %v1015
        %v1063 = vunpack.c.h.b16 %v1015
        %v1064 = vpack.c.b16 %v1036, %v1032
        %v1065 = vpack.c.b16 %v1037, %v1033
        %v1066 = vpack.c.b16 %v1038, %v1034
        %v1067 = vpack.c.b16 %v1039, %v1035
        %v1068 = vpack.c.b16 %v1044, %v1040
        %v1069 = vpack.c.b16 %v1045, %v1041
        %v1070 = vpack.c.b16 %v1046, %v1042
        %v1071 = vpack.c.b16 %v1047, %v1043
        %v1072 = vpack.c.b16 %v1052, %v1048
        %v1073 = vpack.c.b16 %v1053, %v1049
        %v1074 = vpack.c.b16 %v1054, %v1050
        %v1075 = vpack.c.b16 %v1055, %v1051
        %v1076 = vpack.c.b16 %v1060, %v1056
        %v1077 = vpack.c.b16 %v1061, %v1057
        %v1078 = vpack.c.b16 %v1062, %v1058
        %v1079 = vpack.c.b16 %v1063, %v1059
        %v1093 = vsel %vm613, %v1067, 0
        %v1096 = vsel %vm613, %v1071, 0
        %v1099 = vsel %vm613, %v1075, 0
        %v1102 = vsel %vm613, %v1079, 0
        %1104 = vmatprep.subr.bf16.mxu0 0
        %1105 = vmatpush1.bf16.msra.mxu0 %v563
        %1106 = vmatprep.subr.bf16.mxu0 0
        %1107 = vmatpush1.bf16.msra.mxu0 %v564
        %1108 = vmatprep.subr.bf16.mxu0 0
        %1109 = vmatpush1.bf16.msra.mxu0 %v565
        %1110 = vmatprep.subr.bf16.mxu0 0
        %1111 = vmatpush1.bf16.msra.mxu0 %v566
        %1112 = vmatprep.subr.bf16.mxu0 0
        %1113 = vmatpush1.bf16.msra.mxu0 %v567
        %1114 = vmatprep.subr.bf16.mxu0 0
        %1115 = vmatpush1.bf16.msra.mxu0 %v568
        %1116 = vmatprep.subr.bf16.mxu0 0
        %1117 = vmatpush1.bf16.msra.mxu0 %v569
        %1118 = vmatprep.subr.bf16.mxu0 0
        %1119 = vmatpush1.bf16.msra.mxu0 %v570
        %1120 = vmatprep.subr.bf16.mxu0 0
        %1121 = vmatpush1.bf16.msra.mxu0 %v571
        %1122 = vmatprep.subr.bf16.mxu0 0
        %1123 = vmatpush1.bf16.msra.mxu0 %v572
        %1124 = vmatprep.subr.bf16.mxu0 0
        %1125 = vmatpush1.bf16.msra.mxu0 %v573
        %1126 = vmatprep.subr.bf16.mxu0 0
        %1127 = vmatpush1.bf16.msra.mxu0 %v574
        %1128 = vmatprep.subr.bf16.mxu0 0
        %1129 = vmatpush1.bf16.msra.mxu0 %v575
        %1130 = vmatprep.subr.bf16.mxu0 0
        %1131 = vmatpush1.bf16.msra.mxu0 %v576
        %1132 = vmatprep.subr.bf16.mxu0 0
        %1133 = vmatpush1.bf16.msra.mxu0 %v577
        %1134 = vmatprep.subr.bf16.mxu0 0
        %1135 = vmatpush1.bf16.msra.mxu0 %v578
        %1136 = vmatprep.mubr.bf16.mxu0 %v1065
        %1137 = vmatmul.mubr.bf16.gmra.mrb[0].mxu0 %v1064
        %v1138 = vpop.f32.mrb[0].mxu0
        %v1139 = vadd.f32 0.0, %v1138
        %v1140 = vpop.f32.mrb[0].mxu0
        %v1141 = vpop.f32.mrb[0].mxu0
        %v1142 = vadd.f32 0.0, %v1141
        %v1143 = vpop.f32.mrb[0].mxu0
        %1144 = vmatprep.mubr.bf16.mxu0 %v1069
        %1145 = vmatmul.mubr.bf16.gmra.mrb[0].mxu0 %v1068
        %v1146 = vpop.f32.mrb[0].mxu0
        %v1147 = vadd.f32 0.0, %v1146
        %v1148 = vpop.f32.mrb[0].mxu0
        %v1149 = vpop.f32.mrb[0].mxu0
        %v1150 = vadd.f32 0.0, %v1149
        %v1151 = vpop.f32.mrb[0].mxu0
        %1152 = vmatprep.mubr.bf16.mxu0 %v1073
        %1153 = vmatmul.mubr.bf16.gmra.mrb[0].mxu0 %v1072
        %v1154 = vpop.f32.mrb[0].mxu0
        %v1155 = vadd.f32 0.0, %v1154
        %v1156 = vpop.f32.mrb[0].mxu0
        %v1157 = vpop.f32.mrb[0].mxu0
        %v1158 = vadd.f32 0.0, %v1157
        %v1159 = vpop.f32.mrb[0].mxu0
        %1160 = vmatprep.mubr.bf16.mxu0 %v1077
        %1161 = vmatmul.mubr.bf16.gmra.mrb[0].mxu0 %v1076
        %v1162 = vpop.f32.mrb[0].mxu0
        %v1163 = vadd.f32 0.0, %v1162
        %v1164 = vpop.f32.mrb[0].mxu0
        %v1165 = vpop.f32.mrb[0].mxu0
        %v1166 = vadd.f32 0.0, %v1165
        %v1167 = vpop.f32.mrb[0].mxu0
        %1168 = vdwg.mxu0
        %1169 = vmatprep.subr.bf16.mxu0 0
        %1170 = vmatpush1.bf16.msra.mxu0 %v579
        %1171 = vmatprep.subr.bf16.mxu0 0
        %1172 = vmatpush1.bf16.msra.mxu0 %v580
        %1173 = vmatprep.subr.bf16.mxu0 0
        %1174 = vmatpush1.bf16.msra.mxu0 %v581
        %1175 = vmatprep.subr.bf16.mxu0 0
        %1176 = vmatpush1.bf16.msra.mxu0 %v582
        %1177 = vmatprep.subr.bf16.mxu0 0
        %1178 = vmatpush1.bf16.msra.mxu0 %v583
        %1179 = vmatprep.subr.bf16.mxu0 0
        %1180 = vmatpush1.bf16.msra.mxu0 %v584
        %1181 = vmatprep.subr.bf16.mxu0 0
        %1182 = vmatpush1.bf16.msra.mxu0 %v585
        %1183 = vmatprep.subr.bf16.mxu0 0
        %1184 = vmatpush1.bf16.msra.mxu0 %v586
        %1185 = vmatprep.subr.bf16.mxu0 0
        %1186 = vmatpush1.bf16.msra.mxu0 %v587
        %1187 = vmatprep.subr.bf16.mxu0 0
        %1188 = vmatpush1.bf16.msra.mxu0 0
        %1189 = vmatprep.subr.bf16.mxu0 0
        %1190 = vmatpush1.bf16.msra.mxu0 0
        %1191 = vmatprep.subr.bf16.mxu0 0
        %1192 = vmatpush1.bf16.msra.mxu0 0
        %1193 = vmatprep.subr.bf16.mxu0 0
        %1194 = vmatpush1.bf16.msra.mxu0 0
        %1195 = vmatprep.subr.bf16.mxu0 0
        %1196 = vmatpush1.bf16.msra.mxu0 0
        %1197 = vmatprep.subr.bf16.mxu0 0
        %1198 = vmatpush1.bf16.msra.mxu0 0
        %1199 = vmatprep.subr.bf16.mxu0 0
        %1200 = vmatpush1.bf16.msra.mxu0 0
        %1201 = vmatprep.mubr.bf16.mxu0 %v1093
        %1202 = vmatmul.mubr.bf16.gmra.mrb[0].mxu0 %v1066
        %v1203 = vpop.f32.mrb[0].mxu0
        %v1204 = vadd.f32 %v1139, %v1203
        %v1205 = vpop.f32.mrb[0].mxu0
        %v1206 = vpop.f32.mrb[0].mxu0
        %v1207 = vadd.f32 %v1142, %v1206
        %v1208 = vpop.f32.mrb[0].mxu0
        %1209 = vmatprep.mubr.bf16.mxu0 %v1096
        %1210 = vmatmul.mubr.bf16.gmra.mrb[0].mxu0 %v1070
        %v1211 = vpop.f32.mrb[0].mxu0
        %v1212 = vadd.f32 %v1147, %v1211
        %v1213 = vpop.f32.mrb[0].mxu0
        %v1214 = vpop.f32.mrb[0].mxu0
        %v1215 = vadd.f32 %v1150, %v1214
        %v1216 = vpop.f32.mrb[0].mxu0
        %1217 = vmatprep.mubr.bf16.mxu0 %v1099
        %1218 = vmatmul.mubr.bf16.gmra.mrb[0].mxu0 %v1074
        %v1219 = vpop.f32.mrb[0].mxu0
        %v1220 = vadd.f32 %v1155, %v1219
        %v1221 = vpop.f32.mrb[0].mxu0
        %v1222 = vpop.f32.mrb[0].mxu0
        %v1223 = vadd.f32 %v1158, %v1222
        %v1224 = vpop.f32.mrb[0].mxu0
        %1225 = vmatprep.mubr.bf16.mxu0 %v1102
        %1226 = vmatmul.mubr.bf16.gmra.mrb[0].mxu0 %v1078
        %v1227 = vpop.f32.mrb[0].mxu0
        %v1228 = vadd.f32 %v1163, %v1227
        %v1229 = vpop.f32.mrb[0].mxu0
        %v1230 = vpop.f32.mrb[0].mxu0
        %v1231 = vadd.f32 %v1166, %v1230
        %v1232 = vpop.f32.mrb[0].mxu0
        %1233 = vdwg.mxu0
        %v1234 = vmax.f32 %v991, %v1204
        %v1235 = vmax.f32 %v992, %v1207
        %v1236 = vmax.f32 %v993, %v1212
        %v1237 = vmax.f32 %v994, %v1215
        %v1238 = vmax.f32 %v995, %v1220
        %v1239 = vmax.f32 %v996, %v1223
        %v1240 = vmax.f32 %v997, %v1228
        %v1241 = vmax.f32 %v998, %v1231
        %s1242 = scalar_lea.vmem %s292, 384 [#allocation2]
        %v1243 = vld [vmem:[%s1242] sm:$0xff]
        %v1244 = vld [vmem:[%s1242 + $0x8] sm:$0xff]
        %v1245 = vld [vmem:[%s1242 + $0x10] sm:$0xff]
        %v1246 = vld [vmem:[%s1242 + $0x18] sm:$0xff]
        %v1247 = vld [vmem:[%s1242 + $0x20] sm:$0xff]
        %v1248 = vld [vmem:[%s1242 + $0x28] sm:$0xff]
        %v1249 = vld [vmem:[%s1242 + $0x30] sm:$0xff]
        %v1250 = vld [vmem:[%s1242 + $0x38] sm:$0xff]
        %v1251 = vld [vmem:[%s1242 + $0x40] sm:$0xff]
        %v1252 = vld [vmem:[%s1242 + $0x48] sm:$0xff]
        %v1253 = vld [vmem:[%s1242 + $0x50] sm:$0xff]
        %v1254 = vld [vmem:[%s1242 + $0x58] sm:$0xff]
        %v1255 = vld [vmem:[%s1242 + $0x60] sm:$0xff]
        %v1256 = vld [vmem:[%s1242 + $0x68] sm:$0xff]
        %v1257 = vld [vmem:[%s1242 + $0x70] sm:$0xff]
        %v1258 = vld [vmem:[%s1242 + $0x78] sm:$0xff]
        %v1275 = vunpack.c.l.b16 %v1243
        %v1276 = vunpack.c.h.b16 %v1243
        %v1277 = vunpack.c.l.b16 %v1244
        %v1278 = vunpack.c.h.b16 %v1244
        %v1279 = vunpack.c.l.b16 %v1245
        %v1280 = vunpack.c.h.b16 %v1245
        %v1281 = vunpack.c.l.b16 %v1246
        %v1282 = vunpack.c.h.b16 %v1246
        %v1283 = vunpack.c.l.b16 %v1247
        %v1284 = vunpack.c.h.b16 %v1247
        %v1285 = vunpack.c.l.b16 %v1248
        %v1286 = vunpack.c.h.b16 %v1248
        %v1287 = vunpack.c.l.b16 %v1249
        %v1288 = vunpack.c.h.b16 %v1249
        %v1289 = vunpack.c.l.b16 %v1250
        %v1290 = vunpack.c.h.b16 %v1250
        %v1291 = vunpack.c.l.b16 %v1251
        %v1292 = vunpack.c.h.b16 %v1251
        %v1293 = vunpack.c.l.b16 %v1252
        %v1294 = vunpack.c.h.b16 %v1252
        %v1295 = vunpack.c.l.b16 %v1253
        %v1296 = vunpack.c.h.b16 %v1253
        %v1297 = vunpack.c.l.b16 %v1254
        %v1298 = vunpack.c.h.b16 %v1254
        %v1299 = vunpack.c.l.b16 %v1255
        %v1300 = vunpack.c.h.b16 %v1255
        %v1301 = vunpack.c.l.b16 %v1256
        %v1302 = vunpack.c.h.b16 %v1256
        %v1303 = vunpack.c.l.b16 %v1257
        %v1304 = vunpack.c.h.b16 %v1257
        %v1305 = vunpack.c.l.b16 %v1258
        %v1306 = vunpack.c.h.b16 %v1258
        %v1307 = vpack.c.b16 %v1279, %v1275
        %v1308 = vpack.c.b16 %v1280, %v1276
        %v1309 = vpack.c.b16 %v1281, %v1277
        %v1310 = vpack.c.b16 %v1282, %v1278
        %v1311 = vpack.c.b16 %v1287, %v1283
        %v1312 = vpack.c.b16 %v1288, %v1284
        %v1313 = vpack.c.b16 %v1289, %v1285
        %v1314 = vpack.c.b16 %v1290, %v1286
        %v1315 = vpack.c.b16 %v1295, %v1291
        %v1316 = vpack.c.b16 %v1296, %v1292
        %v1317 = vpack.c.b16 %v1297, %v1293
        %v1318 = vpack.c.b16 %v1298, %v1294
        %v1319 = vpack.c.b16 %v1303, %v1299
        %v1320 = vpack.c.b16 %v1304, %v1300
        %v1321 = vpack.c.b16 %v1305, %v1301
        %v1322 = vpack.c.b16 %v1306, %v1302
        %v1336 = vsel %vm613, %v1310, 0
        %v1339 = vsel %vm613, %v1314, 0
        %v1342 = vsel %vm613, %v1318, 0
        %v1345 = vsel %vm613, %v1322, 0
        %1347 = vmatprep.subr.bf16.mxu0 0
        %1348 = vmatpush1.bf16.msra.mxu0 %v563
        %1349 = vmatprep.subr.bf16.mxu0 0
        %1350 = vmatpush1.bf16.msra.mxu0 %v564
        %1351 = vmatprep.subr.bf16.mxu0 0
        %1352 = vmatpush1.bf16.msra.mxu0 %v565
        %1353 = vmatprep.subr.bf16.mxu0 0
        %1354 = vmatpush1.bf16.msra.mxu0 %v566
        %1355 = vmatprep.subr.bf16.mxu0 0
        %1356 = vmatpush1.bf16.msra.mxu0 %v567
        %1357 = vmatprep.subr.bf16.mxu0 0
        %1358 = vmatpush1.bf16.msra.mxu0 %v568
        %1359 = vmatprep.subr.bf16.mxu0 0
        %1360 = vmatpush1.bf16.msra.mxu0 %v569
        %1361 = vmatprep.subr.bf16.mxu0 0
        %1362 = vmatpush1.bf16.msra.mxu0 %v570
        %1363 = vmatprep.subr.bf16.mxu0 0
        %1364 = vmatpush1.bf16.msra.mxu0 %v571
        %1365 = vmatprep.subr.bf16.mxu0 0
        %1366 = vmatpush1.bf16.msra.mxu0 %v572
        %1367 = vmatprep.subr.bf16.mxu0 0
        %1368 = vmatpush1.bf16.msra.mxu0 %v573
        %1369 = vmatprep.subr.bf16.mxu0 0
        %1370 = vmatpush1.bf16.msra.mxu0 %v574
        %1371 = vmatprep.subr.bf16.mxu0 0
        %1372 = vmatpush1.bf16.msra.mxu0 %v575
        %1373 = vmatprep.subr.bf16.mxu0 0
        %1374 = vmatpush1.bf16.msra.mxu0 %v576
        %1375 = vmatprep.subr.bf16.mxu0 0
        %1376 = vmatpush1.bf16.msra.mxu0 %v577
        %1377 = vmatprep.subr.bf16.mxu0 0
        %1378 = vmatpush1.bf16.msra.mxu0 %v578
        %1379 = vmatprep.mubr.bf16.mxu0 %v1308
        %1380 = vmatmul.mubr.bf16.gmra.mrb[0].mxu0 %v1307
        %v1381 = vpop.f32.mrb[0].mxu0
        %v1382 = vadd.f32 0.0, %v1381
        %v1383 = vpop.f32.mrb[0].mxu0
        %v1384 = vpop.f32.mrb[0].mxu0
        %v1385 = vadd.f32 0.0, %v1384
        %v1386 = vpop.f32.mrb[0].mxu0
        %1387 = vmatprep.mubr.bf16.mxu0 %v1312
        %1388 = vmatmul.mubr.bf16.gmra.mrb[0].mxu0 %v1311
        %v1389 = vpop.f32.mrb[0].mxu0
        %v1390 = vadd.f32 0.0, %v1389
        %v1391 = vpop.f32.mrb[0].mxu0
        %v1392 = vpop.f32.mrb[0].mxu0
        %v1393 = vadd.f32 0.0, %v1392
        %v1394 = vpop.f32.mrb[0].mxu0
        %1395 = vmatprep.mubr.bf16.mxu0 %v1316
        %1396 = vmatmul.mubr.bf16.gmra.mrb[0].mxu0 %v1315
        %v1397 = vpop.f32.mrb[0].mxu0
        %v1398 = vadd.f32 0.0, %v1397
        %v1399 = vpop.f32.mrb[0].mxu0
        %v1400 = vpop.f32.mrb[0].mxu0
        %v1401 = vadd.f32 0.0, %v1400
        %v1402 = vpop.f32.mrb[0].mxu0
        %1403 = vmatprep.mubr.bf16.mxu0 %v1320
        %1404 = vmatmul.mubr.bf16.gmra.mrb[0].mxu0 %v1319
        %v1405 = vpop.f32.mrb[0].mxu0
        %v1406 = vadd.f32 0.0, %v1405
        %v1407 = vpop.f32.mrb[0].mxu0
        %v1408 = vpop.f32.mrb[0].mxu0
        %v1409 = vadd.f32 0.0, %v1408
        %v1410 = vpop.f32.mrb[0].mxu0
        %1411 = vdwg.mxu0
        %1412 = vmatprep.subr.bf16.mxu0 0
        %1413 = vmatpush1.bf16.msra.mxu0 %v579
        %1414 = vmatprep.subr.bf16.mxu0 0
        %1415 = vmatpush1.bf16.msra.mxu0 %v580
        %1416 = vmatprep.subr.bf16.mxu0 0
        %1417 = vmatpush1.bf16.msra.mxu0 %v581
        %1418 = vmatprep.subr.bf16.mxu0 0
        %1419 = vmatpush1.bf16.msra.mxu0 %v582
        %1420 = vmatprep.subr.bf16.mxu0 0
        %1421 = vmatpush1.bf16.msra.mxu0 %v583
        %1422 = vmatprep.subr.bf16.mxu0 0
        %1423 = vmatpush1.bf16.msra.mxu0 %v584
        %1424 = vmatprep.subr.bf16.mxu0 0
        %1425 = vmatpush1.bf16.msra.mxu0 %v585
        %1426 = vmatprep.subr.bf16.mxu0 0
        %1427 = vmatpush1.bf16.msra.mxu0 %v586
        %1428 = vmatprep.subr.bf16.mxu0 0
        %1429 = vmatpush1.bf16.msra.mxu0 %v587
        %1430 = vmatprep.subr.bf16.mxu0 0
        %1431 = vmatpush1.bf16.msra.mxu0 0
        %1432 = vmatprep.subr.bf16.mxu0 0
        %1433 = vmatpush1.bf16.msra.mxu0 0
        %1434 = vmatprep.subr.bf16.mxu0 0
        %1435 = vmatpush1.bf16.msra.mxu0 0
        %1436 = vmatprep.subr.bf16.mxu0 0
        %1437 = vmatpush1.bf16.msra.mxu0 0
        %1438 = vmatprep.subr.bf16.mxu0 0
        %1439 = vmatpush1.bf16.msra.mxu0 0
        %1440 = vmatprep.subr.bf16.mxu0 0
        %1441 = vmatpush1.bf16.msra.mxu0 0
        %1442 = vmatprep.subr.bf16.mxu0 0
        %1443 = vmatpush1.bf16.msra.mxu0 0
        %1444 = vmatprep.mubr.bf16.mxu0 %v1336
        %1445 = vmatmul.mubr.bf16.gmra.mrb[0].mxu0 %v1309
        %v1446 = vpop.f32.mrb[0].mxu0
        %v1447 = vadd.f32 %v1382, %v1446
        %v1448 = vpop.f32.mrb[0].mxu0
        %v1449 = vpop.f32.mrb[0].mxu0
        %v1450 = vadd.f32 %v1385, %v1449
        %v1451 = vpop.f32.mrb[0].mxu0
        %1452 = vmatprep.mubr.bf16.mxu0 %v1339
        %1453 = vmatmul.mubr.bf16.gmra.mrb[0].mxu0 %v1313
        %v1454 = vpop.f32.mrb[0].mxu0
        %v1455 = vadd.f32 %v1390, %v1454
        %v1456 = vpop.f32.mrb[0].mxu0
        %v1457 = vpop.f32.mrb[0].mxu0
        %v1458 = vadd.f32 %v1393, %v1457
        %v1459 = vpop.f32.mrb[0].mxu0
        %1460 = vmatprep.mubr.bf16.mxu0 %v1342
        %1461 = vmatmul.mubr.bf16.gmra.mrb[0].mxu0 %v1317
        %v1462 = vpop.f32.mrb[0].mxu0
        %v1463 = vadd.f32 %v1398, %v1462
        %v1464 = vpop.f32.mrb[0].mxu0
        %v1465 = vpop.f32.mrb[0].mxu0
        %v1466 = vadd.f32 %v1401, %v1465
        %v1467 = vpop.f32.mrb[0].mxu0
        %1468 = vmatprep.mubr.bf16.mxu0 %v1345
        %1469 = vmatmul.mubr.bf16.gmra.mrb[0].mxu0 %v1321
        %v1470 = vpop.f32.mrb[0].mxu0
        %v1471 = vadd.f32 %v1406, %v1470
        %v1472 = vpop.f32.mrb[0].mxu0
        %v1473 = vpop.f32.mrb[0].mxu0
        %v1474 = vadd.f32 %v1409, %v1473
        %v1475 = vpop.f32.mrb[0].mxu0
        %1476 = vdwg.mxu0
        %v1477 = vmax.f32 %v1234, %v1447
        %v1478 = vmax.f32 %v1235, %v1450
        %v1479 = vmax.f32 %v1236, %v1455
        %v1480 = vmax.f32 %v1237, %v1458
        %v1481 = vmax.f32 %v1238, %v1463
        %v1482 = vmax.f32 %v1239, %v1466
        %v1483 = vmax.f32 %v1240, %v1471
        %v1484 = vmax.f32 %v1241, %v1474
        %v1485 = vld [vmem:[%s2] sm:$0x1]
        %v1487 = vlaneseq
        %v1488 = vshrl.u32 %v1487, 7
        %v1489 = vsub.s32 0, %v1488
        %v1490 = vrot.slane %v1485, %v1489
        %v1492 = vadd.f32 %v1477, %v1490
        %v1493 = vadd.f32 %v1478, %v1490
        %v1494 = vadd.f32 %v1479, %v1490
        %v1495 = vadd.f32 %v1480, %v1490
        %v1496 = vadd.f32 %v1481, %v1490
        %v1497 = vadd.f32 %v1482, %v1490
        %v1498 = vadd.f32 %v1483, %v1490
        %v1499 = vadd.f32 %v1484, %v1490
        %v1500 = vmax.f32 %v1492, 0.0
        %v1501 = vmax.f32 %v1493, 0.0
        %v1502 = vmax.f32 %v1494, 0.0
        %v1503 = vmax.f32 %v1495, 0.0
        %v1504 = vmax.f32 %v1496, 0.0
        %v1505 = vmax.f32 %v1497, 0.0
        %v1506 = vmax.f32 %v1498, 0.0
        %v1507 = vmax.f32 %v1499, 0.0
        %v1508 = vpack.c.bf16 %v1501, %v1500
        %v1509 = vpack.c.bf16 %v1503, %v1502
        %v1510 = vpack.c.bf16 %v1505, %v1504
        %v1511 = vpack.c.bf16 %v1507, %v1506
        %v1516 = vunpack.c.l.b16 %v1508
        %v1517 = vunpack.c.h.b16 %v1508
        %v1518 = vunpack.c.l.b16 %v1509
        %v1519 = vunpack.c.h.b16 %v1509
        %v1520 = vunpack.c.l.b16 %v1510
        %v1521 = vunpack.c.h.b16 %v1510
        %v1522 = vunpack.c.l.b16 %v1511
        %v1523 = vunpack.c.h.b16 %v1511
        %v1524 = vpack.c.b16 %v1516, %v1516
        %v1525 = vpack.c.b16 %v1517, %v1517
        %v1526 = vpack.c.b16 %v1518, %v1518
        %v1527 = vpack.c.b16 %v1519, %v1519
        %v1528 = vpack.c.b16 %v1520, %v1520
        %v1529 = vpack.c.b16 %v1521, %v1521
        %v1530 = vpack.c.b16 %v1522, %v1522
        %v1531 = vpack.c.b16 %v1523, %v1523
        %1540 = vst [vmem:[%s318] sm:$0xf] %v1524
        %1541 = vst [vmem:[%s318 + $0x4] sm:$0xf] %v1525
        %1542 = vst [vmem:[%s318 + $0x8] sm:$0xf] %v1526
        %1543 = vst [vmem:[%s318 + $0xc] sm:$0xf] %v1527
        %1544 = vst [vmem:[%s318 + $0x10] sm:$0xf] %v1528
        %1545 = vst [vmem:[%s318 + $0x14] sm:$0xf] %v1529
        %1546 = vst [vmem:[%s318 + $0x18] sm:$0xf] %v1530
        %1547 = vst [vmem:[%s318 + $0x1c] sm:$0xf] %v1531
        %s1548 = smul.u32 8, %s14
        %p1549 = scmp.lt.s32.totalorder %s1548, 15
        %s1550 = scalar_select %p1549, %s1548, 15
        %s1551 = smul.addr %s1550, 4
        %s1552 = scalar_lea.vmem %s3, %s1551
        // Predicated region
        $region56: #{cnn_forward.4} parent=50 // pred_check
          %p1553 = pneg %p100
        $region57: #{cnn_forward.4} parent=50 // pred_check_branch
          %1555 = sbr.rel (%p1553) target = $region59
        $region58: #{cnn_forward.4} parent=50 // pred_region
          %s1556 = smul.u32 8, %s14
        $region59: #{cnn_forward.4} parent=50 // pred_fallthru
          _
      $region51: #{cnn_forward.4} parent=5 // pred_fallthru
        _
      %p1557 = scmp.le.s32.totalorder 2, %s9
      // Predicated region
      $region60: #{cnn_forward.4} parent=5 // pred_check
        %p1558 = pneg %p1557
      $region61: #{cnn_forward.4} parent=5 // pred_check_branch
        %1560 = sbr.rel (%p1558) target = $region63
      $region62: #{cnn_forward.4} parent=5 // pred_region
        %s1561 = ssub.s32 %s9, 2
        // Predicated region
        $region64: #{cnn_forward.4} parent=62 // pred_check
          %p1562 = pneg %p106
        $region65: #{cnn_forward.4} parent=62 // pred_check_branch
          %1564 = sbr.rel (%p1562) target = $region67
        $region66: #{cnn_forward.4} parent=62 // pred_region
          %s1565 = smul.u32 8, %s15
          %p1566 = scmp.lt.s32.totalorder %s1565, 15
          %s1567 = scalar_select %p1566, %s1565, 15
          %s1568 = smul.addr %s1567, 4
          %s1569 = scalar_lea.vmem %s3, %s1568
        $region67: #{cnn_forward.4} parent=62 // pred_fallthru
          _
      $region63: #{cnn_forward.4} parent=5 // pred_fallthru
        _
    $region6: #{cnn_forward.4} parent=1 // loop_footer
      %s13 = sadd.s32 1, %s9
    $region7: #{cnn_forward.4} parent=1 // loop_footer_branch
      %8 = sbr.rel target = $region3
    $region8: #{cnn_forward.4} parent=1 // loop_exit
      _

// kernel: cnn_forward.5
$region0: #{cnn_forward.5}
  #allocation0 [shape = 'u32[]', space=smem, size = 0x4, offset = 0x4, fixed_abs, tag = 'smem constant byte address 0x4 - core index']
  #allocation1 [shape = 'u32[144,128]{1,0:T(1,128)}', space=vmem, size = 0x12000, scoped, tag = 'internal scratch']
  %s0 = inlined_call_operand.vmem [shape: bf16[32,1568], index: 0, kind: input, shape index: {}]
  %s1 = inlined_call_operand.vmem [shape: bf16[1568,128], index: 1, kind: input, shape index: {}]
  %s2 = inlined_call_operand.vmem [shape: f32[1,128], index: 2, kind: input, shape index: {}]
  %s3 = inlined_call_operand.vmem [shape: f32[32,128], index: 3, kind: output, shape index: {}]
  %s4 = sld [smem:[#allocation0]]
  $region45: #{cnn_forward.5} parent=0
    _
  %s6 = ssub.s32 1, %s4
  %s7 = scalar_select 0, %s6, %s4
  loop: start=0, step=1, limit=4
  $region2: #{cnn_forward.5} parent=0 // loop_pre_header
    _
  $region3: #{cnn_forward.5} parent=0 // loop_header
    %s9 = sphi 0, %s13
    %p10 = scmp.ge.s32.totalorder %s9, 4
    %s19 = sphi 0, %s21
    %s22 = sphi 0, %s19
    %s23 = sphi 0, %s22
    %s39 = sphi 0, %s23
    %s43 = sphi 0, %s43
    %s45 = sphi 0, %s43
    %s46 = sphi 0, %s45
    %s60 = sphi 0, %s46
    %s64 = sphi 0, %s64
    %s66 = sphi 0, %s64
    %s67 = sphi 0, %s66
    %s81 = sphi 0, %s67
    %s87 = sphi 0, %s89
    %s90 = sphi 0, %s87
    %s91 = sphi 0, %s90
    %s107 = sphi 0, %s91
  $region4: #{cnn_forward.5} parent=0 // loop_header_branch
    %12 = sbr.rel (%p10) target = $region8
  $region5: #{cnn_forward.5} parent=0 // loop_body
    %s14 = ssub.s32 %s9, 1
    %s15 = ssub.s32 %s9, 2
    %s16 = sadd.s32 %s9, 1
    %s17 = ssub.s32 %s9, %s16
    %p18 = scmp.eq.s32.totalorder %s17, 0
    %s20 = sadd.s32 %s19, 1
    %s21 = scalar_select %p18, %s19, %s20
    %p24 = pneg %p18
    %p25 = scmp.eq.s32.totalorder %s9, 1
    %p26 = por %p24, %p25
    %p27 = scmp.ne.s32.totalorder %s19, %s22
    %p28 = scmp.eq.s32.totalorder %s9, 0
    %p29 = por %p27, %p28
    %p30 = scmp.ne.s32.totalorder %s19, %s22
    %p31 = scmp.eq.s32.totalorder %s14, 1
    %p32 = por %p30, %p31
    %p33 = scmp.ne.s32.totalorder %s22, %s23
    %p34 = scmp.eq.s32.totalorder %s14, 0
    %p35 = por %p33, %p34
    %p36 = scmp.ne.s32.totalorder %s22, %s23
    %p37 = scmp.eq.s32.totalorder %s15, 1
    %p38 = por %p36, %p37
    %p40 = scmp.ne.s32.totalorder %s23, %s39
    %p41 = scmp.eq.s32.totalorder %s15, 0
    %p42 = por %p40, %p41
    %s44 = sadd.s32 %s43, 1
    %p47 = scmp.eq.s32.totalorder %s9, 1
    %p48 = scmp.ne.s32.totalorder %s43, %s45
    %p49 = scmp.eq.s32.totalorder %s9, 0
    %p50 = por %p48, %p49
    %p51 = scmp.ne.s32.totalorder %s43, %s45
    %p52 = scmp.eq.s32.totalorder %s14, 1
    %p53 = por %p51, %p52
    %p54 = scmp.ne.s32.totalorder %s45, %s46
    %p55 = scmp.eq.s32.totalorder %s14, 0
    %p56 = por %p54, %p55
    %p57 = scmp.ne.s32.totalorder %s45, %s46
    %p58 = scmp.eq.s32.totalorder %s15, 1
    %p59 = por %p57, %p58
    %p61 = scmp.ne.s32.totalorder %s46, %s60
    %p62 = scmp.eq.s32.totalorder %s15, 0
    %p63 = por %p61, %p62
    %s65 = sadd.s32 %s64, 1
    %p68 = scmp.eq.s32.totalorder %s9, 1
    %p69 = scmp.ne.s32.totalorder %s64, %s66
    %p70 = scmp.eq.s32.totalorder %s9, 0
    %p71 = por %p69, %p70
    %p72 = scmp.ne.s32.totalorder %s64, %s66
    %p73 = scmp.eq.s32.totalorder %s14, 1
    %p74 = por %p72, %p73
    %p75 = scmp.ne.s32.totalorder %s66, %s67
    %p76 = scmp.eq.s32.totalorder %s14, 0
    %p77 = por %p75, %p76
    %p78 = scmp.ne.s32.totalorder %s66, %s67
    %p79 = scmp.eq.s32.totalorder %s15, 1
    %p80 = por %p78, %p79
    %p82 = scmp.ne.s32.totalorder %s67, %s81
    %p83 = scmp.eq.s32.totalorder %s15, 0
    %p84 = por %p82, %p83
    %s85 = ssub.s32 %s9, %s16
    %p86 = scmp.eq.s32.totalorder %s85, 0
    %s88 = sadd.s32 %s87, 1
    %s89 = scalar_select %p86, %s87, %s88
    %p92 = pneg %p86
    %p93 = scmp.eq.s32.totalorder %s9, 1
    %p94 = por %p92, %p93
    %p95 = scmp.ne.s32.totalorder %s87, %s90
    %p96 = scmp.eq.s32.totalorder %s9, 0
    %p97 = por %p95, %p96
    %p98 = scmp.ne.s32.totalorder %s87, %s90
    %p99 = scmp.eq.s32.totalorder %s14, 1
    %p100 = por %p98, %p99
    %p101 = scmp.ne.s32.totalorder %s90, %s91
    %p102 = scmp.eq.s32.totalorder %s14, 0
    %p103 = por %p101, %p102
    %p104 = scmp.ne.s32.totalorder %s90, %s91
    %p105 = scmp.eq.s32.totalorder %s15, 1
    %p106 = por %p104, %p105
    %p108 = scmp.ne.s32.totalorder %s91, %s107
    %p109 = scmp.eq.s32.totalorder %s15, 0
    %p110 = por %p108, %p109
    %p111 = scmp.le.s32.totalorder 1, %s9
    %p112 = scmp.lt.s32.totalorder %s9, 3
    %p113 = pnand %p111, %p112
    %p114 = pneg %p113
    // Predicated region
    $region9: #{cnn_forward.5} parent=5 // pred_check
      _
    $region10: #{cnn_forward.5} parent=5 // pred_check_branch
      %116 = sbr.rel (%p113) target = $region12
    $region11: #{cnn_forward.5} parent=5 // pred_region
      %s117 = ssub.s32 %s9, 1
      // Predicated region
      $region13: #{cnn_forward.5} parent=11 // pred_check
        %p118 = pneg %p56
      $region14: #{cnn_forward.5} parent=11 // pred_check_branch
        %120 = sbr.rel (%p118) target = $region16
      $region15: #{cnn_forward.5} parent=11 // pred_region
        _
      $region16: #{cnn_forward.5} parent=11 // pred_fallthru
        _
      // Predicated region
      $region17: #{cnn_forward.5} parent=11 // pred_check
        %p121 = pneg %p77
      $region18: #{cnn_forward.5} parent=11 // pred_check_branch
        %123 = sbr.rel (%p121) target = $region20
      $region19: #{cnn_forward.5} parent=11 // pred_region
        _
      $region20: #{cnn_forward.5} parent=11 // pred_fallthru
        _
    $region12: #{cnn_forward.5} parent=5 // pred_fallthru
      _
    %p124 = scmp.lt.s32.totalorder %s9, 2
    // Predicated region
    $region21: #{cnn_forward.5} parent=5 // pred_check
      %p125 = pneg %p124
    $region22: #{cnn_forward.5} parent=5 // pred_check_branch
      %127 = sbr.rel (%p125) target = $region24
    $region23: #{cnn_forward.5} parent=5 // pred_region
      // Predicated region
      $region25: #{cnn_forward.5} parent=23 // pred_check
        %p128 = pneg %p29
      $region26: #{cnn_forward.5} parent=23 // pred_check_branch
        %130 = sbr.rel (%p128) target = $region28
      $region27: #{cnn_forward.5} parent=23 // pred_region
        %s131 = smul.u32 2, %s9
        %p132 = scmp.lt.s32.totalorder %s131, 3
        %s133 = scalar_select %p132, %s131, 3
        %s134 = smul.addr %s133, 13
        %s135 = smul.addr %s134, 4
        %s136 = scalar_lea.vmem %s0, %s135
        %s137 = smul.u32 2, %s9
      $region28: #{cnn_forward.5} parent=23 // pred_fallthru
        _
    $region24: #{cnn_forward.5} parent=5 // pred_fallthru
      _
    %p138 = scmp.le.s32.totalorder 1, %s9
    %p139 = scmp.lt.s32.totalorder %s9, 3
    %p140 = pnand %p138, %p139
    %p141 = pneg %p140
    // Predicated region
    $region29: #{cnn_forward.5} parent=5 // pred_check
      _
    $region30: #{cnn_forward.5} parent=5 // pred_check_branch
      %143 = sbr.rel (%p140) target = $region32
    $region31: #{cnn_forward.5} parent=5 // pred_region
      %s144 = ssub.s32 %s9, 1
      %s145 = smul.u32 2, %s14
      %p146 = scmp.lt.s32.totalorder %s145, 3
      %s147 = scalar_select %p146, %s145, 3
      %s148 = smul.addr %s147, 13
      %s149 = smul.addr %s148, 4
      %s150 = scalar_lea.vmem %s0, %s149
      %p151 = pneg %p35
      %p152 = pneg %p32
      %p153 = pneg %p56
      %p154 = pneg %p53
      %p155 = pneg %p77
      %p156 = pneg %p74
      %p157 = pneg %p103
      %p158 = pneg %p100
      %s159 = smul.u32 2, %s14
      %p160 = scmp.lt.s32.totalorder %s159, 3
      %s161 = scalar_select %p160, %s159, 3
      %s162 = smul.addr %s161, 8
      %s163 = scalar_lea.vmem %s3, %s162
      %s164 = smul.u32 2, %s14
      %p165 = scmp.lt.s32.totalorder %s164, 3
      %s166 = scalar_select %p165, %s164, 3
      %s167 = smul.addr %s166, 13
      %s168 = smul.addr %s167, 4
      %s169 = scalar_lea.vmem %s0, %s168
      %s170 = smul.u32 2, %s14
      %s171 = smul.u32 2, %s14
      %p172 = scmp.lt.s32.totalorder %s171, 3
      %s173 = scalar_select %p172, %s171, 3
      %s174 = smul.addr %s173, 8
      %s175 = scalar_lea.vmem %s3, %s174
      %s176 = smul.u32 2, %s14
      %v178 = vld [vmem:[%s169] sm:$0xff]
      %v179 = vld [vmem:[%s169 + $0x8] sm:$0xff]
      %v180 = vld [vmem:[%s169 + $0x10] sm:$0xff]
      %v181 = vld [vmem:[%s169 + $0x18] sm:$0xff]
      %v182 = vld [vmem:[%s169 + $0x20] sm:$0xff]
      %v183 = vld [vmem:[%s169 + $0x28] sm:$0xff]
      %v184 = vld [vmem:[%s169 + $0x30] sm:$0xf]
      %v185 = vld [vmem:[%s169 + $0x34] sm:$0xff]
      %v186 = vld [vmem:[%s169 + $0x3c] sm:$0xff]
      %v187 = vld [vmem:[%s169 + $0x44] sm:$0xff]
      %v188 = vld [vmem:[%s169 + $0x4c] sm:$0xff]
      %v189 = vld [vmem:[%s169 + $0x54] sm:$0xff]
      %v190 = vld [vmem:[%s169 + $0x5c] sm:$0xff]
      %v191 = vld [vmem:[%s169 + $0x64] sm:$0xf]
      %v192 = vld [vmem:[%s1] sm:$0xf]
      %v193 = vld [vmem:[%s1 + $0x4] sm:$0xf]
      %v194 = vld [vmem:[%s1 + $0x8] sm:$0xf]
      %v195 = vld [vmem:[%s1 + $0xc] sm:$0xf]
      %v196 = vld [vmem:[%s1 + $0x10] sm:$0xf]
      %v197 = vld [vmem:[%s1 + $0x14] sm:$0xf]
      %v198 = vld [vmem:[%s1 + $0x18] sm:$0xf]
      %v199 = vld [vmem:[%s1 + $0x1c] sm:$0xf]
      %v200 = vld [vmem:[%s1 + $0x20] sm:$0xf]
      %v201 = vld [vmem:[%s1 + $0x24] sm:$0xf]
      %v202 = vld [vmem:[%s1 + $0x28] sm:$0xf]
      %v203 = vld [vmem:[%s1 + $0x2c] sm:$0xf]
      %v204 = vld [vmem:[%s1 + $0x30] sm:$0xf]
      %v205 = vld [vmem:[%s1 + $0x34] sm:$0xf]
      %v206 = vld [vmem:[%s1 + $0x38] sm:$0xf]
      %v207 = vld [vmem:[%s1 + $0x3c] sm:$0xf]
      %v208 = vld [vmem:[%s1 + $0x40] sm:$0xf]
      %v209 = vld [vmem:[%s1 + $0x44] sm:$0xf]
      %v210 = vld [vmem:[%s1 + $0x48] sm:$0xf]
      %v211 = vld [vmem:[%s1 + $0x4c] sm:$0xf]
      %v212 = vld [vmem:[%s1 + $0x50] sm:$0xf]
      %v213 = vld [vmem:[%s1 + $0x54] sm:$0xf]
      %v214 = vld [vmem:[%s1 + $0x58] sm:$0xf]
      %v215 = vld [vmem:[%s1 + $0x5c] sm:$0xf]
      %v216 = vld [vmem:[%s1 + $0x60] sm:$0xf]
      %v217 = vld [vmem:[%s1 + $0x64] sm:$0xf]
      %v218 = vld [vmem:[%s1 + $0x68] sm:$0xf]
      %v219 = vld [vmem:[%s1 + $0x6c] sm:$0xf]
      %v220 = vld [vmem:[%s1 + $0x70] sm:$0xf]
      %v221 = vld [vmem:[%s1 + $0x74] sm:$0xf]
      %v222 = vld [vmem:[%s1 + $0x78] sm:$0xf]
      %v223 = vld [vmem:[%s1 + $0x7c] sm:$0xf]
      %v224 = vld [vmem:[%s1 + $0x80] sm:$0xf]
      %v225 = vld [vmem:[%s1 + $0x84] sm:$0xf]
      %v226 = vld [vmem:[%s1 + $0x88] sm:$0xf]
      %v227 = vld [vmem:[%s1 + $0x8c] sm:$0xf]
      %v228 = vld [vmem:[%s1 + $0x90] sm:$0xf]
      %v229 = vld [vmem:[%s1 + $0x94] sm:$0xf]
      %v230 = vld [vmem:[%s1 + $0x98] sm:$0xf]
      %v231 = vld [vmem:[%s1 + $0x9c] sm:$0xf]
      %v232 = vld [vmem:[%s1 + $0xa0] sm:$0xf]
      %v233 = vld [vmem:[%s1 + $0xa4] sm:$0xf]
      %v234 = vld [vmem:[%s1 + $0xa8] sm:$0xf]
      %v235 = vld [vmem:[%s1 + $0xac] sm:$0xf]
      %v236 = vld [vmem:[%s1 + $0xb0] sm:$0xf]
      %v237 = vld [vmem:[%s1 + $0xb4] sm:$0xf]
      %v238 = vld [vmem:[%s1 + $0xb8] sm:$0xf]
      %v239 = vld [vmem:[%s1 + $0xbc] sm:$0xf]
      %v240 = vld [vmem:[%s1 + $0xc0] sm:$0xf]
      %v241 = vld [vmem:[%s1 + $0xc4] sm:$0xf]
      %v242 = vld [vmem:[%s1 + $0xc8] sm:$0xf]
      %v243 = vld [vmem:[%s1 + $0xcc] sm:$0xf]
      %v244 = vld [vmem:[%s1 + $0xd0] sm:$0xf]
      %v245 = vld [vmem:[%s1 + $0xd4] sm:$0xf]
      %v246 = vld [vmem:[%s1 + $0xd8] sm:$0xf]
      %v247 = vld [vmem:[%s1 + $0xdc] sm:$0xf]
      %v248 = vld [vmem:[%s1 + $0xe0] sm:$0xf]
      %v249 = vld [vmem:[%s1 + $0xe4] sm:$0xf]
      %v250 = vld [vmem:[%s1 + $0xe8] sm:$0xf]
      %v251 = vld [vmem:[%s1 + $0xec] sm:$0xf]
      %v252 = vld [vmem:[%s1 + $0xf0] sm:$0xf]
      %v253 = vld [vmem:[%s1 + $0xf4] sm:$0xf]
      %v254 = vld [vmem:[%s1 + $0xf8] sm:$0xf]
      %v255 = vld [vmem:[%s1 + $0xfc] sm:$0xf]
      %v256 = vld [vmem:[%s1 + $0x100] sm:$0xf]
      %v257 = vld [vmem:[%s1 + $0x104] sm:$0xf]
      %v258 = vld [vmem:[%s1 + $0x108] sm:$0xf]
      %v259 = vld [vmem:[%s1 + $0x10c] sm:$0xf]
      %v260 = vld [vmem:[%s1 + $0x110] sm:$0xf]
      %v261 = vld [vmem:[%s1 + $0x114] sm:$0xf]
      %v262 = vld [vmem:[%s1 + $0x118] sm:$0xf]
      %v263 = vld [vmem:[%s1 + $0x11c] sm:$0xf]
      %v264 = vld [vmem:[%s1 + $0x120] sm:$0xf]
      %v265 = vld [vmem:[%s1 + $0x124] sm:$0xf]
      %v266 = vld [vmem:[%s1 + $0x128] sm:$0xf]
      %v267 = vld [vmem:[%s1 + $0x12c] sm:$0xf]
      %v268 = vld [vmem:[%s1 + $0x130] sm:$0xf]
      %v269 = vld [vmem:[%s1 + $0x134] sm:$0xf]
      %v270 = vld [vmem:[%s1 + $0x138] sm:$0xf]
      %v271 = vld [vmem:[%s1 + $0x13c] sm:$0xf]
      %v272 = vld [vmem:[%s1 + $0x140] sm:$0xf]
      %v273 = vld [vmem:[%s1 + $0x144] sm:$0xf]
      %v274 = vld [vmem:[%s1 + $0x148] sm:$0xf]
      %v275 = vld [vmem:[%s1 + $0x14c] sm:$0xf]
      %v276 = vld [vmem:[%s1 + $0x150] sm:$0xf]
      %v277 = vld [vmem:[%s1 + $0x154] sm:$0xf]
      %v278 = vld [vmem:[%s1 + $0x158] sm:$0xf]
      %v279 = vld [vmem:[%s1 + $0x15c] sm:$0xf]
      %v280 = vld [vmem:[%s1 + $0x160] sm:$0xf]
      %v281 = vld [vmem:[%s1 + $0x164] sm:$0xf]
      %v282 = vld [vmem:[%s1 + $0x168] sm:$0xf]
      %v283 = vld [vmem:[%s1 + $0x16c] sm:$0xf]
      %v284 = vld [vmem:[%s1 + $0x170] sm:$0xf]
      %v285 = vld [vmem:[%s1 + $0x174] sm:$0xf]
      %v286 = vld [vmem:[%s1 + $0x178] sm:$0xf]
      %v287 = vld [vmem:[%s1 + $0x17c] sm:$0xf]
      %v288 = vld [vmem:[%s1 + $0x180] sm:$0xf]
      %v289 = vld [vmem:[%s1 + $0x184] sm:$0xf]
      %v290 = vld [vmem:[%s1 + $0x188] sm:$0xf]
      %v291 = vld [vmem:[%s1 + $0x18c] sm:$0xf]
      %v292 = vld [vmem:[%s1 + $0x190] sm:$0xf]
      %v293 = vld [vmem:[%s1 + $0x194] sm:$0xf]
      %v294 = vld [vmem:[%s1 + $0x198] sm:$0xf]
      %v295 = vld [vmem:[%s1 + $0x19c] sm:$0xf]
      %v296 = vld [vmem:[%s1 + $0x1a0] sm:$0xf]
      %v297 = vld [vmem:[%s1 + $0x1a4] sm:$0xf]
      %v298 = vld [vmem:[%s1 + $0x1a8] sm:$0xf]
      %v299 = vld [vmem:[%s1 + $0x1ac] sm:$0xf]
      %v300 = vld [vmem:[%s1 + $0x1b0] sm:$0xf]
      %v301 = vld [vmem:[%s1 + $0x1b4] sm:$0xf]
      %v302 = vld [vmem:[%s1 + $0x1b8] sm:$0xf]
      %v303 = vld [vmem:[%s1 + $0x1bc] sm:$0xf]
      %v304 = vld [vmem:[%s1 + $0x1c0] sm:$0xf]
      %v305 = vld [vmem:[%s1 + $0x1c4] sm:$0xf]
      %v306 = vld [vmem:[%s1 + $0x1c8] sm:$0xf]
      %v307 = vld [vmem:[%s1 + $0x1cc] sm:$0xf]
      %v308 = vld [vmem:[%s1 + $0x1d0] sm:$0xf]
      %v309 = vld [vmem:[%s1 + $0x1d4] sm:$0xf]
      %v310 = vld [vmem:[%s1 + $0x1d8] sm:$0xf]
      %v311 = vld [vmem:[%s1 + $0x1dc] sm:$0xf]
      %v312 = vld [vmem:[%s1 + $0x1e0] sm:$0xf]
      %v313 = vld [vmem:[%s1 + $0x1e4] sm:$0xf]
      %v314 = vld [vmem:[%s1 + $0x1e8] sm:$0xf]
      %v315 = vld [vmem:[%s1 + $0x1ec] sm:$0xf]
      %v316 = vld [vmem:[%s1 + $0x1f0] sm:$0xf]
      %v317 = vld [vmem:[%s1 + $0x1f4] sm:$0xf]
      %v318 = vld [vmem:[%s1 + $0x1f8] sm:$0xf]
      %v319 = vld [vmem:[%s1 + $0x1fc] sm:$0xf]
      %v320 = vld [vmem:[%s1 + $0x200] sm:$0xf]
      %v321 = vld [vmem:[%s1 + $0x204] sm:$0xf]
      %v322 = vld [vmem:[%s1 + $0x208] sm:$0xf]
      %v323 = vld [vmem:[%s1 + $0x20c] sm:$0xf]
      %v324 = vld [vmem:[%s1 + $0x210] sm:$0xf]
      %v325 = vld [vmem:[%s1 + $0x214] sm:$0xf]
      %v326 = vld [vmem:[%s1 + $0x218] sm:$0xf]
      %v327 = vld [vmem:[%s1 + $0x21c] sm:$0xf]
      %v328 = vld [vmem:[%s1 + $0x220] sm:$0xf]
      %v329 = vld [vmem:[%s1 + $0x224] sm:$0xf]
      %v330 = vld [vmem:[%s1 + $0x228] sm:$0xf]
      %v331 = vld [vmem:[%s1 + $0x22c] sm:$0xf]
      %v332 = vld [vmem:[%s1 + $0x230] sm:$0xf]
      %v333 = vld [vmem:[%s1 + $0x234] sm:$0xf]
      %v334 = vld [vmem:[%s1 + $0x238] sm:$0xf]
      %v335 = vld [vmem:[%s1 + $0x23c] sm:$0xf]
      %v336 = vld [vmem:[%s1 + $0x240] sm:$0xf]
      %v337 = vld [vmem:[%s1 + $0x244] sm:$0xf]
      %v338 = vld [vmem:[%s1 + $0x248] sm:$0xf]
      %v339 = vld [vmem:[%s1 + $0x24c] sm:$0xf]
      %v340 = vld [vmem:[%s1 + $0x250] sm:$0xf]
      %v341 = vld [vmem:[%s1 + $0x254] sm:$0xf]
      %v342 = vld [vmem:[%s1 + $0x258] sm:$0xf]
      %v343 = vld [vmem:[%s1 + $0x25c] sm:$0xf]
      %v344 = vld [vmem:[%s1 + $0x260] sm:$0xf]
      %v345 = vld [vmem:[%s1 + $0x264] sm:$0xf]
      %v346 = vld [vmem:[%s1 + $0x268] sm:$0xf]
      %v347 = vld [vmem:[%s1 + $0x26c] sm:$0xf]
      %v348 = vld [vmem:[%s1 + $0x270] sm:$0xf]
      %v349 = vld [vmem:[%s1 + $0x274] sm:$0xf]
      %v350 = vld [vmem:[%s1 + $0x278] sm:$0xf]
      %v351 = vld [vmem:[%s1 + $0x27c] sm:$0xf]
      %v352 = vld [vmem:[%s1 + $0x280] sm:$0xf]
      %v353 = vld [vmem:[%s1 + $0x284] sm:$0xf]
      %v354 = vld [vmem:[%s1 + $0x288] sm:$0xf]
      %v355 = vld [vmem:[%s1 + $0x28c] sm:$0xf]
      %v356 = vld [vmem:[%s1 + $0x290] sm:$0xf]
      %v357 = vld [vmem:[%s1 + $0x294] sm:$0xf]
      %v358 = vld [vmem:[%s1 + $0x298] sm:$0xf]
      %v359 = vld [vmem:[%s1 + $0x29c] sm:$0xf]
      %v360 = vld [vmem:[%s1 + $0x2a0] sm:$0xf]
      %v361 = vld [vmem:[%s1 + $0x2a4] sm:$0xf]
      %v362 = vld [vmem:[%s1 + $0x2a8] sm:$0xf]
      %v363 = vld [vmem:[%s1 + $0x2ac] sm:$0xf]
      %v364 = vld [vmem:[%s1 + $0x2b0] sm:$0xf]
      %v365 = vld [vmem:[%s1 + $0x2b4] sm:$0xf]
      %v366 = vld [vmem:[%s1 + $0x2b8] sm:$0xf]
      %v367 = vld [vmem:[%s1 + $0x2bc] sm:$0xf]
      %v368 = vld [vmem:[%s1 + $0x2c0] sm:$0xf]
      %v369 = vld [vmem:[%s1 + $0x2c4] sm:$0xf]
      %v370 = vld [vmem:[%s1 + $0x2c8] sm:$0xf]
      %v371 = vld [vmem:[%s1 + $0x2cc] sm:$0xf]
      %v372 = vld [vmem:[%s1 + $0x2d0] sm:$0xf]
      %v373 = vld [vmem:[%s1 + $0x2d4] sm:$0xf]
      %v374 = vld [vmem:[%s1 + $0x2d8] sm:$0xf]
      %v375 = vld [vmem:[%s1 + $0x2dc] sm:$0xf]
      %v376 = vld [vmem:[%s1 + $0x2e0] sm:$0xf]
      %v377 = vld [vmem:[%s1 + $0x2e4] sm:$0xf]
      %v378 = vld [vmem:[%s1 + $0x2e8] sm:$0xf]
      %v379 = vld [vmem:[%s1 + $0x2ec] sm:$0xf]
      %v380 = vld [vmem:[%s1 + $0x2f0] sm:$0xf]
      %v381 = vld [vmem:[%s1 + $0x2f4] sm:$0xf]
      %v382 = vld [vmem:[%s1 + $0x2f8] sm:$0xf]
      %v383 = vld [vmem:[%s1 + $0x2fc] sm:$0xf]
      %v384 = vld [vmem:[%s1 + $0x300] sm:$0xf]
      %v385 = vld [vmem:[%s1 + $0x304] sm:$0xf]
      %v386 = vld [vmem:[%s1 + $0x308] sm:$0xf]
      %v387 = vld [vmem:[%s1 + $0x30c] sm:$0xf]
      %v388 = vld [vmem:[%s2] sm:$0x1]
      %v390 = vlaneseq
      %v391 = vshrl.u32 %v390, 7
      %v392 = vsub.s32 0, %v391
      %v393 = vrot.slane %v388, %v392
      %v409 = vunpack.c.l.b16 %v178
      %v410 = vunpack.c.h.b16 %v178
      %v411 = vunpack.c.l.b16 %v179
      %v412 = vunpack.c.h.b16 %v179
      %v413 = vunpack.c.l.b16 %v180
      %v414 = vunpack.c.h.b16 %v180
      %v415 = vunpack.c.l.b16 %v181
      %v416 = vunpack.c.h.b16 %v181
      %v417 = vunpack.c.l.b16 %v182
      %v418 = vunpack.c.h.b16 %v182
      %v419 = vunpack.c.l.b16 %v183
      %v420 = vunpack.c.h.b16 %v183
      %v421 = vunpack.c.l.b16 %v184
      %v422 = vunpack.c.l.b16 %v185
      %v423 = vunpack.c.h.b16 %v185
      %v424 = vunpack.c.l.b16 %v186
      %v425 = vunpack.c.h.b16 %v186
      %v426 = vunpack.c.l.b16 %v187
      %v427 = vunpack.c.h.b16 %v187
      %v428 = vunpack.c.l.b16 %v188
      %v429 = vunpack.c.h.b16 %v188
      %v430 = vunpack.c.l.b16 %v189
      %v431 = vunpack.c.h.b16 %v189
      %v432 = vunpack.c.l.b16 %v190
      %v433 = vunpack.c.h.b16 %v190
      %v434 = vunpack.c.l.b16 %v191
      %v435 = vpack.c.b16 %v422, %v409
      %v436 = vpack.c.b16 %v423, %v410
      %v437 = vpack.c.b16 %v424, %v411
      %v438 = vpack.c.b16 %v425, %v412
      %v439 = vpack.c.b16 %v426, %v413
      %v440 = vpack.c.b16 %v427, %v414
      %v441 = vpack.c.b16 %v428, %v415
      %v442 = vpack.c.b16 %v429, %v416
      %v443 = vpack.c.b16 %v430, %v417
      %v444 = vpack.c.b16 %v431, %v418
      %v445 = vpack.c.b16 %v432, %v419
      %v446 = vpack.c.b16 %v433, %v420
      %v447 = vpack.c.b16 %v434, %v421
      %v656 = vunpack.c.l.b16 %v192
      %v657 = vunpack.c.l.b16 %v193
      %v658 = vunpack.c.l.b16 %v194
      %v659 = vunpack.c.l.b16 %v195
      %v660 = vunpack.c.l.b16 %v196
      %v661 = vunpack.c.l.b16 %v197
      %v662 = vunpack.c.l.b16 %v198
      %v663 = vunpack.c.l.b16 %v199
      %v664 = vunpack.c.l.b16 %v200
      %v665 = vunpack.c.l.b16 %v201
      %v666 = vunpack.c.l.b16 %v202
      %v667 = vunpack.c.l.b16 %v203
      %v668 = vunpack.c.l.b16 %v204
      %v669 = vunpack.c.l.b16 %v205
      %v670 = vunpack.c.l.b16 %v206
      %v671 = vunpack.c.l.b16 %v207
      %v672 = vunpack.c.l.b16 %v208
      %v673 = vunpack.c.l.b16 %v209
      %v674 = vunpack.c.l.b16 %v210
      %v675 = vunpack.c.l.b16 %v211
      %v676 = vunpack.c.l.b16 %v212
      %v677 = vunpack.c.l.b16 %v213
      %v678 = vunpack.c.l.b16 %v214
      %v679 = vunpack.c.l.b16 %v215
      %v680 = vunpack.c.l.b16 %v216
      %v681 = vunpack.c.l.b16 %v217
      %v682 = vunpack.c.l.b16 %v218
      %v683 = vunpack.c.l.b16 %v219
      %v684 = vunpack.c.l.b16 %v220
      %v685 = vunpack.c.l.b16 %v221
      %v686 = vunpack.c.l.b16 %v222
      %v687 = vunpack.c.l.b16 %v223
      %v688 = vunpack.c.l.b16 %v224
      %v689 = vunpack.c.l.b16 %v225
      %v690 = vunpack.c.l.b16 %v226
      %v691 = vunpack.c.l.b16 %v227
      %v692 = vunpack.c.l.b16 %v228
      %v693 = vunpack.c.l.b16 %v229
      %v694 = vunpack.c.l.b16 %v230
      %v695 = vunpack.c.l.b16 %v231
      %v696 = vunpack.c.l.b16 %v232
      %v697 = vunpack.c.l.b16 %v233
      %v698 = vunpack.c.l.b16 %v234
      %v699 = vunpack.c.l.b16 %v235
      %v700 = vunpack.c.l.b16 %v236
      %v701 = vunpack.c.l.b16 %v237
      %v702 = vunpack.c.l.b16 %v238
      %v703 = vunpack.c.l.b16 %v239
      %v704 = vunpack.c.l.b16 %v240
      %v705 = vunpack.c.l.b16 %v241
      %v706 = vunpack.c.l.b16 %v242
      %v707 = vunpack.c.l.b16 %v243
      %v708 = vunpack.c.l.b16 %v244
      %v709 = vunpack.c.l.b16 %v245
      %v710 = vunpack.c.l.b16 %v246
      %v711 = vunpack.c.l.b16 %v247
      %v712 = vunpack.c.l.b16 %v248
      %v713 = vunpack.c.l.b16 %v249
      %v714 = vunpack.c.l.b16 %v250
      %v715 = vunpack.c.l.b16 %v251
      %v716 = vunpack.c.l.b16 %v252
      %v717 = vunpack.c.l.b16 %v253
      %v718 = vunpack.c.l.b16 %v254
      %v719 = vunpack.c.l.b16 %v255
      %v720 = vunpack.c.l.b16 %v256
      %v721 = vunpack.c.l.b16 %v257
      %v722 = vunpack.c.l.b16 %v258
      %v723 = vunpack.c.l.b16 %v259
      %v724 = vunpack.c.l.b16 %v260
      %v725 = vunpack.c.l.b16 %v261
      %v726 = vunpack.c.l.b16 %v262
      %v727 = vunpack.c.l.b16 %v263
      %v728 = vunpack.c.l.b16 %v264
      %v729 = vunpack.c.l.b16 %v265
      %v730 = vunpack.c.l.b16 %v266
      %v731 = vunpack.c.l.b16 %v267
      %v732 = vunpack.c.l.b16 %v268
      %v733 = vunpack.c.l.b16 %v269
      %v734 = vunpack.c.l.b16 %v270
      %v735 = vunpack.c.l.b16 %v271
      %v736 = vunpack.c.l.b16 %v272
      %v737 = vunpack.c.l.b16 %v273
      %v738 = vunpack.c.l.b16 %v274
      %v739 = vunpack.c.l.b16 %v275
      %v740 = vunpack.c.l.b16 %v276
      %v741 = vunpack.c.l.b16 %v277
      %v742 = vunpack.c.l.b16 %v278
      %v743 = vunpack.c.l.b16 %v279
      %v744 = vunpack.c.l.b16 %v280
      %v745 = vunpack.c.l.b16 %v281
      %v746 = vunpack.c.l.b16 %v282
      %v747 = vunpack.c.l.b16 %v283
      %v748 = vunpack.c.l.b16 %v284
      %v749 = vunpack.c.l.b16 %v285
      %v750 = vunpack.c.l.b16 %v286
      %v751 = vunpack.c.l.b16 %v287
      %v752 = vunpack.c.l.b16 %v288
      %v753 = vunpack.c.l.b16 %v289
      %v754 = vunpack.c.l.b16 %v290
      %v755 = vunpack.c.l.b16 %v291
      %v756 = vunpack.c.l.b16 %v292
      %v757 = vunpack.c.l.b16 %v293
      %v758 = vunpack.c.l.b16 %v294
      %v759 = vunpack.c.l.b16 %v295
      %v760 = vunpack.c.l.b16 %v296
      %v761 = vunpack.c.l.b16 %v297
      %v762 = vunpack.c.l.b16 %v298
      %v763 = vunpack.c.l.b16 %v299
      %v764 = vunpack.c.l.b16 %v300
      %v765 = vunpack.c.l.b16 %v301
      %v766 = vunpack.c.l.b16 %v302
      %v767 = vunpack.c.l.b16 %v303
      %v768 = vunpack.c.l.b16 %v304
      %v769 = vunpack.c.l.b16 %v305
      %v770 = vunpack.c.l.b16 %v306
      %v771 = vunpack.c.l.b16 %v307
      %v772 = vunpack.c.l.b16 %v308
      %v773 = vunpack.c.l.b16 %v309
      %v774 = vunpack.c.l.b16 %v310
      %v775 = vunpack.c.l.b16 %v311
      %v776 = vunpack.c.l.b16 %v312
      %v777 = vunpack.c.l.b16 %v313
      %v778 = vunpack.c.l.b16 %v314
      %v779 = vunpack.c.l.b16 %v315
      %v780 = vunpack.c.l.b16 %v316
      %v781 = vunpack.c.l.b16 %v317
      %v782 = vunpack.c.l.b16 %v318
      %v783 = vunpack.c.l.b16 %v319
      %v784 = vunpack.c.l.b16 %v320
      %v785 = vunpack.c.l.b16 %v321
      %v786 = vunpack.c.l.b16 %v322
      %v787 = vunpack.c.l.b16 %v323
      %v788 = vunpack.c.l.b16 %v324
      %v789 = vunpack.c.l.b16 %v325
      %v790 = vunpack.c.l.b16 %v326
      %v791 = vunpack.c.l.b16 %v327
      %v792 = vunpack.c.l.b16 %v328
      %v793 = vunpack.c.l.b16 %v329
      %v794 = vunpack.c.l.b16 %v330
      %v795 = vunpack.c.l.b16 %v331
      %v796 = vunpack.c.l.b16 %v332
      %v797 = vunpack.c.l.b16 %v333
      %v798 = vunpack.c.l.b16 %v334
      %v799 = vunpack.c.l.b16 %v335
      %v800 = vunpack.c.l.b16 %v336
      %v801 = vunpack.c.l.b16 %v337
      %v802 = vunpack.c.l.b16 %v338
      %v803 = vunpack.c.l.b16 %v339
      %v804 = vunpack.c.l.b16 %v340
      %v805 = vunpack.c.l.b16 %v341
      %v806 = vunpack.c.l.b16 %v342
      %v807 = vunpack.c.l.b16 %v343
      %v808 = vunpack.c.l.b16 %v344
      %v809 = vunpack.c.l.b16 %v345
      %v810 = vunpack.c.l.b16 %v346
      %v811 = vunpack.c.l.b16 %v347
      %v812 = vunpack.c.l.b16 %v348
      %v813 = vunpack.c.l.b16 %v349
      %v814 = vunpack.c.l.b16 %v350
      %v815 = vunpack.c.l.b16 %v351
      %v816 = vunpack.c.l.b16 %v352
      %v817 = vunpack.c.l.b16 %v353
      %v818 = vunpack.c.l.b16 %v354
      %v819 = vunpack.c.l.b16 %v355
      %v820 = vunpack.c.l.b16 %v356
      %v821 = vunpack.c.l.b16 %v357
      %v822 = vunpack.c.l.b16 %v358
      %v823 = vunpack.c.l.b16 %v359
      %v824 = vunpack.c.l.b16 %v360
      %v825 = vunpack.c.l.b16 %v361
      %v826 = vunpack.c.l.b16 %v362
      %v827 = vunpack.c.l.b16 %v363
      %v828 = vunpack.c.l.b16 %v364
      %v829 = vunpack.c.l.b16 %v365
      %v830 = vunpack.c.l.b16 %v366
      %v831 = vunpack.c.l.b16 %v367
      %v832 = vunpack.c.l.b16 %v368
      %v833 = vunpack.c.l.b16 %v369
      %v834 = vunpack.c.l.b16 %v370
      %v835 = vunpack.c.l.b16 %v371
      %v836 = vunpack.c.l.b16 %v372
      %v837 = vunpack.c.l.b16 %v373
      %v838 = vunpack.c.l.b16 %v374
      %v839 = vunpack.c.l.b16 %v375
      %v840 = vunpack.c.l.b16 %v376
      %v841 = vunpack.c.l.b16 %v377
      %v842 = vunpack.c.l.b16 %v378
      %v843 = vunpack.c.l.b16 %v379
      %v844 = vunpack.c.l.b16 %v380
      %v845 = vunpack.c.l.b16 %v381
      %v846 = vunpack.c.l.b16 %v382
      %v847 = vunpack.c.l.b16 %v383
      %v848 = vunpack.c.l.b16 %v384
      %v849 = vunpack.c.l.b16 %v385
      %v850 = vunpack.c.l.b16 %v386
      %v851 = vunpack.c.l.b16 %v387
      %v852 = vpack.c.b16 %v657, %v656
      %v853 = vpack.c.b16 %v659, %v658
      %v854 = vpack.c.b16 %v661, %v660
      %v855 = vpack.c.b16 %v663, %v662
      %v856 = vpack.c.b16 %v665, %v664
      %v857 = vpack.c.b16 %v667, %v666
      %v858 = vpack.c.b16 %v669, %v668
      %v859 = vpack.c.b16 %v671, %v670
      %v860 = vpack.c.b16 %v673, %v672
      %v861 = vpack.c.b16 %v675, %v674
      %v862 = vpack.c.b16 %v677, %v676
      %v863 = vpack.c.b16 %v679, %v678
      %v864 = vpack.c.b16 %v681, %v680
      %v865 = vpack.c.b16 %v683, %v682
      %v866 = vpack.c.b16 %v685, %v684
      %v867 = vpack.c.b16 %v687, %v686
      %v868 = vpack.c.b16 %v689, %v688
      %v869 = vpack.c.b16 %v691, %v690
      %v870 = vpack.c.b16 %v693, %v692
      %v871 = vpack.c.b16 %v695, %v694
      %v872 = vpack.c.b16 %v697, %v696
      %v873 = vpack.c.b16 %v699, %v698
      %v874 = vpack.c.b16 %v701, %v700
      %v875 = vpack.c.b16 %v703, %v702
      %v876 = vpack.c.b16 %v705, %v704
      %v877 = vpack.c.b16 %v707, %v706
      %v878 = vpack.c.b16 %v709, %v708
      %v879 = vpack.c.b16 %v711, %v710
      %v880 = vpack.c.b16 %v713, %v712
      %v881 = vpack.c.b16 %v715, %v714
      %v882 = vpack.c.b16 %v717, %v716
      %v883 = vpack.c.b16 %v719, %v718
      %v884 = vpack.c.b16 %v721, %v720
      %v885 = vpack.c.b16 %v723, %v722
      %v886 = vpack.c.b16 %v725, %v724
      %v887 = vpack.c.b16 %v727, %v726
      %v888 = vpack.c.b16 %v729, %v728
      %v889 = vpack.c.b16 %v731, %v730
      %v890 = vpack.c.b16 %v733, %v732
      %v891 = vpack.c.b16 %v735, %v734
      %v892 = vpack.c.b16 %v737, %v736
      %v893 = vpack.c.b16 %v739, %v738
      %v894 = vpack.c.b16 %v741, %v740
      %v895 = vpack.c.b16 %v743, %v742
      %v896 = vpack.c.b16 %v745, %v744
      %v897 = vpack.c.b16 %v747, %v746
      %v898 = vpack.c.b16 %v749, %v748
      %v899 = vpack.c.b16 %v751, %v750
      %v900 = vpack.c.b16 %v753, %v752
      %v901 = vpack.c.b16 %v755, %v754
      %v902 = vpack.c.b16 %v757, %v756
      %v903 = vpack.c.b16 %v759, %v758
      %v904 = vpack.c.b16 %v761, %v760
      %v905 = vpack.c.b16 %v763, %v762
      %v906 = vpack.c.b16 %v765, %v764
      %v907 = vpack.c.b16 %v767, %v766
      %v908 = vpack.c.b16 %v769, %v768
      %v909 = vpack.c.b16 %v771, %v770
      %v910 = vpack.c.b16 %v773, %v772
      %v911 = vpack.c.b16 %v775, %v774
      %v912 = vpack.c.b16 %v777, %v776
      %v913 = vpack.c.b16 %v779, %v778
      %v914 = vpack.c.b16 %v781, %v780
      %v915 = vpack.c.b16 %v783, %v782
      %v916 = vpack.c.b16 %v785, %v784
      %v917 = vpack.c.b16 %v787, %v786
      %v918 = vpack.c.b16 %v789, %v788
      %v919 = vpack.c.b16 %v791, %v790
      %v920 = vpack.c.b16 %v793, %v792
      %v921 = vpack.c.b16 %v795, %v794
      %v922 = vpack.c.b16 %v797, %v796
      %v923 = vpack.c.b16 %v799, %v798
      %v924 = vpack.c.b16 %v801, %v800
      %v925 = vpack.c.b16 %v803, %v802
      %v926 = vpack.c.b16 %v805, %v804
      %v927 = vpack.c.b16 %v807, %v806
      %v928 = vpack.c.b16 %v809, %v808
      %v929 = vpack.c.b16 %v811, %v810
      %v930 = vpack.c.b16 %v813, %v812
      %v931 = vpack.c.b16 %v815, %v814
      %v932 = vpack.c.b16 %v817, %v816
      %v933 = vpack.c.b16 %v819, %v818
      %v934 = vpack.c.b16 %v821, %v820
      %v935 = vpack.c.b16 %v823, %v822
      %v936 = vpack.c.b16 %v825, %v824
      %v937 = vpack.c.b16 %v827, %v826
      %v938 = vpack.c.b16 %v829, %v828
      %v939 = vpack.c.b16 %v831, %v830
      %v940 = vpack.c.b16 %v833, %v832
      %v941 = vpack.c.b16 %v835, %v834
      %v942 = vpack.c.b16 %v837, %v836
      %v943 = vpack.c.b16 %v839, %v838
      %v944 = vpack.c.b16 %v841, %v840
      %v945 = vpack.c.b16 %v843, %v842
      %v946 = vpack.c.b16 %v845, %v844
      %v947 = vpack.c.b16 %v847, %v846
      %v948 = vpack.c.b16 %v849, %v848
      %v949 = vpack.c.b16 %v851, %v850
      %vm1048 = vcmask 261120
      %v1050 = vsel %vm1048, %v447, 0
      %1052 = vmatprep.subr.bf16.mxu0 0
      %1053 = vmatpush1.bf16.msra.mxu0 %v852
      %1054 = vmatprep.subr.bf16.mxu0 0
      %1055 = vmatpush1.bf16.msra.mxu0 %v853
      %1056 = vmatprep.subr.bf16.mxu0 0
      %1057 = vmatpush1.bf16.msra.mxu0 %v854
      %1058 = vmatprep.subr.bf16.mxu0 0
      %1059 = vmatpush1.bf16.msra.mxu0 %v855
      %1060 = vmatprep.subr.bf16.mxu0 0
      %1061 = vmatpush1.bf16.msra.mxu0 %v856
      %1062 = vmatprep.subr.bf16.mxu0 0
      %1063 = vmatpush1.bf16.msra.mxu0 %v857
      %1064 = vmatprep.subr.bf16.mxu0 0
      %1065 = vmatpush1.bf16.msra.mxu0 %v858
      %1066 = vmatprep.subr.bf16.mxu0 0
      %1067 = vmatpush1.bf16.msra.mxu0 %v859
      %1068 = vmatprep.subr.bf16.mxu0 0
      %1069 = vmatpush1.bf16.msra.mxu0 %v860
      %1070 = vmatprep.subr.bf16.mxu0 0
      %1071 = vmatpush1.bf16.msra.mxu0 %v861
      %1072 = vmatprep.subr.bf16.mxu0 0
      %1073 = vmatpush1.bf16.msra.mxu0 %v862
      %1074 = vmatprep.subr.bf16.mxu0 0
      %1075 = vmatpush1.bf16.msra.mxu0 %v863
      %1076 = vmatprep.subr.bf16.mxu0 0
      %1077 = vmatpush1.bf16.msra.mxu0 %v864
      %1078 = vmatprep.subr.bf16.mxu0 0
      %1079 = vmatpush1.bf16.msra.mxu0 %v865
      %1080 = vmatprep.subr.bf16.mxu0 0
      %1081 = vmatpush1.bf16.msra.mxu0 %v866
      %1082 = vmatprep.subr.bf16.mxu0 0
      %1083 = vmatpush1.bf16.msra.mxu0 %v867
      %1084 = vmatprep.mubr.bf16.mxu0 %v436
      %1085 = vmatmul.mubr.bf16.gmra.mrb[0].mxu0 %v435
      %v1086 = vpop.f32.mrb[0].mxu0
      %v1087 = vadd.f32 %v393, %v1086
      %v1088 = vpop.f32.mrb[0].mxu0
      %v1089 = vpop.f32.mrb[0].mxu0
      %v1090 = vadd.f32 %v393, %v1089
      %v1091 = vpop.f32.mrb[0].mxu0
      %1092 = vdwg.mxu0
      %1093 = vmatprep.subr.bf16.mxu0 0
      %1094 = vmatpush1.bf16.msra.mxu0 %v868
      %1095 = vmatprep.subr.bf16.mxu0 0
      %1096 = vmatpush1.bf16.msra.mxu0 %v869
      %1097 = vmatprep.subr.bf16.mxu0 0
      %1098 = vmatpush1.bf16.msra.mxu0 %v870
      %1099 = vmatprep.subr.bf16.mxu0 0
      %1100 = vmatpush1.bf16.msra.mxu0 %v871
      %1101 = vmatprep.subr.bf16.mxu0 0
      %1102 = vmatpush1.bf16.msra.mxu0 %v872
      %1103 = vmatprep.subr.bf16.mxu0 0
      %1104 = vmatpush1.bf16.msra.mxu0 %v873
      %1105 = vmatprep.subr.bf16.mxu0 0
      %1106 = vmatpush1.bf16.msra.mxu0 %v874
      %1107 = vmatprep.subr.bf16.mxu0 0
      %1108 = vmatpush1.bf16.msra.mxu0 %v875
      %1109 = vmatprep.subr.bf16.mxu0 0
      %1110 = vmatpush1.bf16.msra.mxu0 %v876
      %1111 = vmatprep.subr.bf16.mxu0 0
      %1112 = vmatpush1.bf16.msra.mxu0 %v877
      %1113 = vmatprep.subr.bf16.mxu0 0
      %1114 = vmatpush1.bf16.msra.mxu0 %v878
      %1115 = vmatprep.subr.bf16.mxu0 0
      %1116 = vmatpush1.bf16.msra.mxu0 %v879
      %1117 = vmatprep.subr.bf16.mxu0 0
      %1118 = vmatpush1.bf16.msra.mxu0 %v880
      %1119 = vmatprep.subr.bf16.mxu0 0
      %1120 = vmatpush1.bf16.msra.mxu0 %v881
      %1121 = vmatprep.subr.bf16.mxu0 0
      %1122 = vmatpush1.bf16.msra.mxu0 %v882
      %1123 = vmatprep.subr.bf16.mxu0 0
      %1124 = vmatpush1.bf16.msra.mxu0 %v883
      %1125 = vmatprep.mubr.bf16.mxu0 %v438
      %1126 = vmatmul.mubr.bf16.gmra.mrb[0].mxu0 %v437
      %v1127 = vpop.f32.mrb[0].mxu0
      %v1128 = vadd.f32 %v1087, %v1127
      %v1129 = vpop.f32.mrb[0].mxu0
      %v1130 = vpop.f32.mrb[0].mxu0
      %v1131 = vadd.f32 %v1090, %v1130
      %v1132 = vpop.f32.mrb[0].mxu0
      %1133 = vdwg.mxu0
      %1134 = vmatprep.subr.bf16.mxu0 0
      %1135 = vmatpush1.bf16.msra.mxu0 %v884
      %1136 = vmatprep.subr.bf16.mxu0 0
      %1137 = vmatpush1.bf16.msra.mxu0 %v885
      %1138 = vmatprep.subr.bf16.mxu0 0
      %1139 = vmatpush1.bf16.msra.mxu0 %v886
      %1140 = vmatprep.subr.bf16.mxu0 0
      %1141 = vmatpush1.bf16.msra.mxu0 %v887
      %1142 = vmatprep.subr.bf16.mxu0 0
      %1143 = vmatpush1.bf16.msra.mxu0 %v888
      %1144 = vmatprep.subr.bf16.mxu0 0
      %1145 = vmatpush1.bf16.msra.mxu0 %v889
      %1146 = vmatprep.subr.bf16.mxu0 0
      %1147 = vmatpush1.bf16.msra.mxu0 %v890
      %1148 = vmatprep.subr.bf16.mxu0 0
      %1149 = vmatpush1.bf16.msra.mxu0 %v891
      %1150 = vmatprep.subr.bf16.mxu0 0
      %1151 = vmatpush1.bf16.msra.mxu0 %v892
      %1152 = vmatprep.subr.bf16.mxu0 0
      %1153 = vmatpush1.bf16.msra.mxu0 %v893
      %1154 = vmatprep.subr.bf16.mxu0 0
      %1155 = vmatpush1.bf16.msra.mxu0 %v894
      %1156 = vmatprep.subr.bf16.mxu0 0
      %1157 = vmatpush1.bf16.msra.mxu0 %v895
      %1158 = vmatprep.subr.bf16.mxu0 0
      %1159 = vmatpush1.bf16.msra.mxu0 %v896
      %1160 = vmatprep.subr.bf16.mxu0 0
      %1161 = vmatpush1.bf16.msra.mxu0 %v897
      %1162 = vmatprep.subr.bf16.mxu0 0
      %1163 = vmatpush1.bf16.msra.mxu0 %v898
      %1164 = vmatprep.subr.bf16.mxu0 0
      %1165 = vmatpush1.bf16.msra.mxu0 %v899
      %1166 = vmatprep.mubr.bf16.mxu0 %v440
      %1167 = vmatmul.mubr.bf16.gmra.mrb[0].mxu0 %v439
      %v1168 = vpop.f32.mrb[0].mxu0
      %v1169 = vadd.f32 %v1128, %v1168
      %v1170 = vpop.f32.mrb[0].mxu0
      %v1171 = vpop.f32.mrb[0].mxu0
      %v1172 = vadd.f32 %v1131, %v1171
      %v1173 = vpop.f32.mrb[0].mxu0
      %1174 = vdwg.mxu0
      %1175 = vmatprep.subr.bf16.mxu0 0
      %1176 = vmatpush1.bf16.msra.mxu0 %v900
      %1177 = vmatprep.subr.bf16.mxu0 0
      %1178 = vmatpush1.bf16.msra.mxu0 %v901
      %1179 = vmatprep.subr.bf16.mxu0 0
      %1180 = vmatpush1.bf16.msra.mxu0 %v902
      %1181 = vmatprep.subr.bf16.mxu0 0
      %1182 = vmatpush1.bf16.msra.mxu0 %v903
      %1183 = vmatprep.subr.bf16.mxu0 0
      %1184 = vmatpush1.bf16.msra.mxu0 %v904
      %1185 = vmatprep.subr.bf16.mxu0 0
      %1186 = vmatpush1.bf16.msra.mxu0 %v905
      %1187 = vmatprep.subr.bf16.mxu0 0
      %1188 = vmatpush1.bf16.msra.mxu0 %v906
      %1189 = vmatprep.subr.bf16.mxu0 0
      %1190 = vmatpush1.bf16.msra.mxu0 %v907
      %1191 = vmatprep.subr.bf16.mxu0 0
      %1192 = vmatpush1.bf16.msra.mxu0 %v908
      %1193 = vmatprep.subr.bf16.mxu0 0
      %1194 = vmatpush1.bf16.msra.mxu0 %v909
      %1195 = vmatprep.subr.bf16.mxu0 0
      %1196 = vmatpush1.bf16.msra.mxu0 %v910
      %1197 = vmatprep.subr.bf16.mxu0 0
      %1198 = vmatpush1.bf16.msra.mxu0 %v911
      %1199 = vmatprep.subr.bf16.mxu0 0
      %1200 = vmatpush1.bf16.msra.mxu0 %v912
      %1201 = vmatprep.subr.bf16.mxu0 0
      %1202 = vmatpush1.bf16.msra.mxu0 %v913
      %1203 = vmatprep.subr.bf16.mxu0 0
      %1204 = vmatpush1.bf16.msra.mxu0 %v914
      %1205 = vmatprep.subr.bf16.mxu0 0
      %1206 = vmatpush1.bf16.msra.mxu0 %v915
      %1207 = vmatprep.mubr.bf16.mxu0 %v442
      %1208 = vmatmul.mubr.bf16.gmra.mrb[0].mxu0 %v441
      %v1209 = vpop.f32.mrb[0].mxu0
      %v1210 = vadd.f32 %v1169, %v1209
      %v1211 = vpop.f32.mrb[0].mxu0
      %v1212 = vpop.f32.mrb[0].mxu0
      %v1213 = vadd.f32 %v1172, %v1212
      %v1214 = vpop.f32.mrb[0].mxu0
      %1215 = vdwg.mxu0
      %1216 = vmatprep.subr.bf16.mxu0 0
      %1217 = vmatpush1.bf16.msra.mxu0 %v916
      %1218 = vmatprep.subr.bf16.mxu0 0
      %1219 = vmatpush1.bf16.msra.mxu0 %v917
      %1220 = vmatprep.subr.bf16.mxu0 0
      %1221 = vmatpush1.bf16.msra.mxu0 %v918
      %1222 = vmatprep.subr.bf16.mxu0 0
      %1223 = vmatpush1.bf16.msra.mxu0 %v919
      %1224 = vmatprep.subr.bf16.mxu0 0
      %1225 = vmatpush1.bf16.msra.mxu0 %v920
      %1226 = vmatprep.subr.bf16.mxu0 0
      %1227 = vmatpush1.bf16.msra.mxu0 %v921
      %1228 = vmatprep.subr.bf16.mxu0 0
      %1229 = vmatpush1.bf16.msra.mxu0 %v922
      %1230 = vmatprep.subr.bf16.mxu0 0
      %1231 = vmatpush1.bf16.msra.mxu0 %v923
      %1232 = vmatprep.subr.bf16.mxu0 0
      %1233 = vmatpush1.bf16.msra.mxu0 %v924
      %1234 = vmatprep.subr.bf16.mxu0 0
      %1235 = vmatpush1.bf16.msra.mxu0 %v925
      %1236 = vmatprep.subr.bf16.mxu0 0
      %1237 = vmatpush1.bf16.msra.mxu0 %v926
      %1238 = vmatprep.subr.bf16.mxu0 0
      %1239 = vmatpush1.bf16.msra.mxu0 %v927
      %1240 = vmatprep.subr.bf16.mxu0 0
      %1241 = vmatpush1.bf16.msra.mxu0 %v928
      %1242 = vmatprep.subr.bf16.mxu0 0
      %1243 = vmatpush1.bf16.msra.mxu0 %v929
      %1244 = vmatprep.subr.bf16.mxu0 0
      %1245 = vmatpush1.bf16.msra.mxu0 %v930
      %1246 = vmatprep.subr.bf16.mxu0 0
      %1247 = vmatpush1.bf16.msra.mxu0 %v931
      %1248 = vmatprep.mubr.bf16.mxu0 %v444
      %1249 = vmatmul.mubr.bf16.gmra.mrb[0].mxu0 %v443
      %v1250 = vpop.f32.mrb[0].mxu0
      %v1251 = vadd.f32 %v1210, %v1250
      %v1252 = vpop.f32.mrb[0].mxu0
      %v1253 = vpop.f32.mrb[0].mxu0
      %v1254 = vadd.f32 %v1213, %v1253
      %v1255 = vpop.f32.mrb[0].mxu0
      %1256 = vdwg.mxu0
      %1257 = vmatprep.subr.bf16.mxu0 0
      %1258 = vmatpush1.bf16.msra.mxu0 %v932
      %1259 = vmatprep.subr.bf16.mxu0 0
      %1260 = vmatpush1.bf16.msra.mxu0 %v933
      %1261 = vmatprep.subr.bf16.mxu0 0
      %1262 = vmatpush1.bf16.msra.mxu0 %v934
      %1263 = vmatprep.subr.bf16.mxu0 0
      %1264 = vmatpush1.bf16.msra.mxu0 %v935
      %1265 = vmatprep.subr.bf16.mxu0 0
      %1266 = vmatpush1.bf16.msra.mxu0 %v936
      %1267 = vmatprep.subr.bf16.mxu0 0
      %1268 = vmatpush1.bf16.msra.mxu0 %v937
      %1269 = vmatprep.subr.bf16.mxu0 0
      %1270 = vmatpush1.bf16.msra.mxu0 %v938
      %1271 = vmatprep.subr.bf16.mxu0 0
      %1272 = vmatpush1.bf16.msra.mxu0 %v939
      %1273 = vmatprep.subr.bf16.mxu0 0
      %1274 = vmatpush1.bf16.msra.mxu0 %v940
      %1275 = vmatprep.subr.bf16.mxu0 0
      %1276 = vmatpush1.bf16.msra.mxu0 %v941
      %1277 = vmatprep.subr.bf16.mxu0 0
      %1278 = vmatpush1.bf16.msra.mxu0 %v942
      %1279 = vmatprep.subr.bf16.mxu0 0
      %1280 = vmatpush1.bf16.msra.mxu0 %v943
      %1281 = vmatprep.subr.bf16.mxu0 0
      %1282 = vmatpush1.bf16.msra.mxu0 %v944
      %1283 = vmatprep.subr.bf16.mxu0 0
      %1284 = vmatpush1.bf16.msra.mxu0 %v945
      %1285 = vmatprep.subr.bf16.mxu0 0
      %1286 = vmatpush1.bf16.msra.mxu0 %v946
      %1287 = vmatprep.subr.bf16.mxu0 0
      %1288 = vmatpush1.bf16.msra.mxu0 %v947
      %1289 = vmatprep.mubr.bf16.mxu0 %v446
      %1290 = vmatmul.mubr.bf16.gmra.mrb[0].mxu0 %v445
      %v1291 = vpop.f32.mrb[0].mxu0
      %v1292 = vadd.f32 %v1251, %v1291
      %v1293 = vpop.f32.mrb[0].mxu0
      %v1294 = vpop.f32.mrb[0].mxu0
      %v1295 = vadd.f32 %v1254, %v1294
      %v1296 = vpop.f32.mrb[0].mxu0
      %1297 = vdwg.mxu0
      %1298 = vmatprep.subr.bf16.mxu0 0
      %1299 = vmatpush1.bf16.msra.mxu0 %v948
      %1300 = vmatprep.subr.bf16.mxu0 0
      %1301 = vmatpush1.bf16.msra.mxu0 %v949
      %1302 = vmatprep.subr.bf16.mxu0 0
      %1303 = vmatpush1.bf16.msra.mxu0 0
      %1304 = vmatprep.subr.bf16.mxu0 0
      %1305 = vmatpush1.bf16.msra.mxu0 0
      %1306 = vmatprep.subr.bf16.mxu0 0
      %1307 = vmatpush1.bf16.msra.mxu0 0
      %1308 = vmatprep.subr.bf16.mxu0 0
      %1309 = vmatpush1.bf16.msra.mxu0 0
      %1310 = vmatprep.subr.bf16.mxu0 0
      %1311 = vmatpush1.bf16.msra.mxu0 0
      %1312 = vmatprep.subr.bf16.mxu0 0
      %1313 = vmatpush1.bf16.msra.mxu0 0
      %1314 = vmatprep.subr.bf16.mxu0 0
      %1315 = vmatpush1.bf16.msra.mxu0 0
      %1316 = vmatprep.subr.bf16.mxu0 0
      %1317 = vmatpush1.bf16.msra.mxu0 0
      %1318 = vmatprep.subr.bf16.mxu0 0
      %1319 = vmatpush1.bf16.msra.mxu0 0
      %1320 = vmatprep.subr.bf16.mxu0 0
      %1321 = vmatpush1.bf16.msra.mxu0 0
      %1322 = vmatprep.subr.bf16.mxu0 0
      %1323 = vmatpush1.bf16.msra.mxu0 0
      %1324 = vmatprep.subr.bf16.mxu0 0
      %1325 = vmatpush1.bf16.msra.mxu0 0
      %1326 = vmatprep.subr.bf16.mxu0 0
      %1327 = vmatpush1.bf16.msra.mxu0 0
      %1328 = vmatprep.subr.bf16.mxu0 0
      %1329 = vmatpush1.bf16.msra.mxu0 0
      %1330 = vmatprep.mubr.bf16.mxu0 0
      %1331 = vmatmul.mubr.bf16.gmra.mrb[0].mxu0 %v1050
      %v1332 = vpop.f32.mrb[0].mxu0
      %v1333 = vadd.f32 %v1292, %v1332
      %v1334 = vpop.f32.mrb[0].mxu0
      %v1335 = vpop.f32.mrb[0].mxu0
      %v1336 = vadd.f32 %v1295, %v1335
      %v1337 = vpop.f32.mrb[0].mxu0
      %1338 = vdwg.mxu0
      %1339 = vst [vmem:[%s175] sm:$0xff] %v1333
      %1340 = vst [vmem:[%s175 + $0x8] sm:$0xff] %v1336
      %s1341 = smul.u32 2, %s14
      %p1342 = scmp.lt.s32.totalorder %s1341, 3
      %s1343 = scalar_select %p1342, %s1341, 3
      %s1344 = smul.addr %s1343, 8
      %s1345 = scalar_lea.vmem %s3, %s1344
      // Predicated region
      $region33: #{cnn_forward.5} parent=31 // pred_check
        %p1346 = pneg %p100
      $region34: #{cnn_forward.5} parent=31 // pred_check_branch
        %1348 = sbr.rel (%p1346) target = $region36
      $region35: #{cnn_forward.5} parent=31 // pred_region
        %s1349 = smul.u32 2, %s14
      $region36: #{cnn_forward.5} parent=31 // pred_fallthru
        _
    $region32: #{cnn_forward.5} parent=5 // pred_fallthru
      _
    %p1350 = scmp.le.s32.totalorder 2, %s9
    // Predicated region
    $region37: #{cnn_forward.5} parent=5 // pred_check
      %p1351 = pneg %p1350
    $region38: #{cnn_forward.5} parent=5 // pred_check_branch
      %1353 = sbr.rel (%p1351) target = $region40
    $region39: #{cnn_forward.5} parent=5 // pred_region
      %s1354 = ssub.s32 %s9, 2
      // Predicated region
      $region41: #{cnn_forward.5} parent=39 // pred_check
        %p1355 = pneg %p106
      $region42: #{cnn_forward.5} parent=39 // pred_check_branch
        %1357 = sbr.rel (%p1355) target = $region44
      $region43: #{cnn_forward.5} parent=39 // pred_region
        %s1358 = smul.u32 2, %s15
        %p1359 = scmp.lt.s32.totalorder %s1358, 3
        %s1360 = scalar_select %p1359, %s1358, 3
        %s1361 = smul.addr %s1360, 8
        %s1362 = scalar_lea.vmem %s3, %s1361
      $region44: #{cnn_forward.5} parent=39 // pred_fallthru
        _
    $region40: #{cnn_forward.5} parent=5 // pred_fallthru
      _
  $region6: #{cnn_forward.5} parent=0 // loop_footer
    %s13 = sadd.s32 1, %s9
  $region7: #{cnn_forward.5} parent=0 // loop_footer_branch
    %8 = sbr.rel target = $region3
  $region8: #{cnn_forward.5} parent=0 // loop_exit
    _

</llo_original>
